<compile_context>
chip_gen: v7x
topology: tpu7x:2x2x1
jax: 0.10.0
libtpu: 0.0.40
codegen_flags: <defaults>
</compile_context>

<pallas_src>
import functools

import jax
import jax.numpy as jnp
from jax import lax
from jax.experimental import pallas as pl
from jax.experimental.pallas import tpu as pltpu


def bi_attention_kernel(v_ref, q_ref,            # (Bblk*V, vdim), (Bblk*Q, qdim)  bf16
                        wv_ref, bv_ref,          # (vdim, Ht) bf16, (1, Ht) f32
                        wq_ref, bq_ref,          # (qdim, Ht) bf16, (1, Ht) f32
                        hm_ref, hb_ref,          # (G, Ht) bf16,    (G, 1) f32
                        p_ref, logits_ref,       # (1, G*Bblk, VQ) f32 each
                        acc_ref,                 # (G, Bblk*VQ) f32 VMEM scratch
                        *, batch_block, v_num, q_num, glimpse):
    V, Q, G, Bblk = v_num, q_num, glimpse, batch_block
    VQ = V * Q
    k_idx = pl.program_id(1)

    @pl.when(k_idx == 0)
    def _init():
        acc_ref[...] = jnp.zeros_like(acc_ref)

    v = v_ref[...]                               # [Bblk*V, vdim]  (batch folded into M)
    q = q_ref[...]                               # [Bblk*Q, qdim]

    # FCNet: weight-normalized Linear + ReLU (dropout is identity in eval mode).
    # One bf16 MXU matmul per modality for the whole batch block and H-tile.
    v_ = jnp.maximum(
        jnp.dot(v, wv_ref[...], preferred_element_type=jnp.float32) + bv_ref[...], 0.0)
    q_ = jnp.maximum(
        jnp.dot(q, wq_ref[...], preferred_element_type=jnp.float32) + bq_ref[...], 0.0)

    # Outer product for the WHOLE batch block, flattened so the lane axis indexes
    # (b, i, j):  vq[(b*V+i)*Q + j, k] = v_[b*V+i, k] * q_[b*Q+j, k].  Kept in bf16.
    Ht = v_.shape[1]
    vq = (v_.astype(jnp.bfloat16).reshape(Bblk, V, 1, Ht) *
          q_.astype(jnp.bfloat16).reshape(Bblk, 1, Q, Ht)).reshape(Bblk * VQ, Ht)

    # ONE contraction for all glimpses and the whole batch block (H-tile partial sum):
    #   partial[g, b*VQ + i*Q + j] = sum_k hm[g,k] * vq[b*VQ+i*Q+j, k]
    acc_ref[...] += lax.dot_general(hm_ref[...], vq, (((1,), (1,)), ((), ())),
                                    preferred_element_type=jnp.float32)

    @pl.when(k_idx == pl.num_programs(1) - 1)
    def _finalize():
        # v_mask: visual rows whose |v| row-sum is zero get -inf logits.
        # Move the per-(b,i) abs-row-sums onto the lane axis (repeated over j) with one
        # tiny M=1 MXU contraction, done once per block (hoisted out of any batch loop).
        # NOTE: abs_flat is 8x the true abs-row-sum (dot with ones(1,8)); only the
        # ==0 test is used, so the factor is irrelevant.
        row_abs = jnp.sum(jnp.abs(v.astype(jnp.float32)), axis=1, keepdims=True)
        rowq = jnp.broadcast_to(row_abs[:, None, :],
                                (Bblk * V, Q, 8)).reshape(Bblk * VQ, 8)
        ones8 = jnp.ones((1, 8), jnp.float32)
        abs_flat = lax.dot_general(ones8, rowq, (((1,), (1,)), ((), ())),
                                   preferred_element_type=jnp.float32)   # [1, Bblk*VQ]

        # bias then mask (mask overrides bias), matching the reference ordering.
        flat = jnp.where(abs_flat == 0.0, -jnp.inf,
                         acc_ref[...] + hb_ref[...])                     # [G, Bblk*VQ]

        # Sublane+lane dense slab [G*Bblk, VQ] (row = g*Bblk + b); the wrapper
        # untangles the (g, b) ordering with a cheap XLA transpose.
        rows = flat.reshape(G * Bblk, VQ)
        logits_ref[0] = rows

        # Softmax over the flattened V*Q axis: plain lane-axis reductions.
        # (A fully-masked batch element yields a NaN row, same as the reference.)
        m = jnp.max(rows, axis=-1, keepdims=True)
        e = jnp.exp(rows - m)
        s = jnp.sum(e, axis=-1, keepdims=True)
        p_ref[0] = e * pl.reciprocal(s, approx=True)


def bi_attention(v, q, wv_t, bv, wq_t, bq, h_mat, h_bias, *, glimpse,
                 batch_block=None, h_block=None):
    """v: [B,V,vdim], q: [B,Q,qdim]; returns (p, logits) each [B, glimpse, V, Q]."""
    B, V, vdim = v.shape
    _, Q, qdim = q.shape
    H = wv_t.shape[1]
    G = glimpse
    VQ = V * Q

    if batch_block is None:
        # Single grid step is best on v5e/v6e (one TensorCore). On v7x (2 TCs,
        # 64 MiB VMEM) pass batch_block = B // 2 so both cores get a "parallel" step.
        batch_block = B
    assert B % batch_block == 0
    num_blocks = B // batch_block

    # Pad H to a multiple of 128 lanes. Zero padding is exact: ReLU(0+0)=0 and the
    # zero h_mat columns contribute nothing to the contraction.
    Hp = -(-H // 128) * 128
    if Hp != H:
        pad = [(0, 0), (0, Hp - H)]
        wv_t, wq_t = jnp.pad(wv_t, pad), jnp.pad(wq_t, pad)
        bv, bq = jnp.pad(bv, pad), jnp.pad(bq, pad)
        h_mat = jnp.pad(h_mat, pad)

    if h_block is None:
        h_block = 512 if (Hp > 512 and Hp % 512 == 0) else Hp
    assert Hp % h_block == 0 and h_block % 128 == 0
    num_h = Hp // h_block

    # bf16 MXU operands (accumulation stays f32 via preferred_element_type);
    # biases stay f32 and are added after the matmuls.
    bf16 = jnp.bfloat16
    v2 = v.reshape(B * V, vdim).astype(bf16)
    q2 = q.reshape(B * Q, qdim).astype(bf16)
    wv_b, wq_b, hm_b = wv_t.astype(bf16), wq_t.astype(bf16), h_mat.astype(bf16)
    bv_f, bq_f = bv.astype(jnp.float32), bq.astype(jnp.float32)
    hb = h_bias.reshape(G, 1).astype(jnp.float32)

    # TODO(synk): for production shapes also pad Q (e.g. 14 -> 16, masking pad columns)
    # so the [Bblk,V,Q,Ht] -> [Bblk*V*Q, Ht] reshape stays (8,128)-tile aligned.

    kernel = functools.partial(bi_attention_kernel, batch_block=batch_block,
                               v_num=V, q_num=Q, glimpse=G)
    out_shape = (jax.ShapeDtypeStruct((num_blocks, G * batch_block, VQ), jnp.float32),
                 jax.ShapeDtypeStruct((num_blocks, G * batch_block, VQ), jnp.float32))

    # Explicit VMEM budget (bytes): double-buffered activation/output blocks,
    # single/double-buffered weight blocks, accumulator scratch, live intermediates.
    wbuf = 1 if num_h == 1 else 2
    est = (2 * (batch_block * V * vdim + batch_block * Q * qdim) * 2        # v, q (bf16)
           + wbuf * ((vdim + qdim + G) * h_block * 2 + 2 * h_block * 4)     # weights+biases
           + 2 * 2 * G * batch_block * VQ * 4                               # p + logits
           + G * batch_block * VQ * 4                                       # acc scratch
           + batch_block * (V + Q) * h_block * 4                            # v_, q_
           + batch_block * VQ * h_block * 2                                 # vq (bf16)
           + 2 * G * batch_block * VQ * 4)                                  # rows / exp
    vmem_limit = int(min(max(2 * est, 32 * 1024 * 1024), 64 * 1024 * 1024))

    def run(single_buffer_consts):
        def const_spec(shape, index_map, is_const):
            if single_buffer_consts and is_const:
                # Constant-index blocks are never re-fetched; don't reserve a 2nd buffer.
                return pl.BlockSpec(shape, index_map, pipeline_mode=pl.Buffered(1))
            return pl.BlockSpec(shape, index_map)

        w_const = num_h == 1   # weight blocks vary along the H grid axis when H-tiled
        grid_spec = pltpu.PrefetchScalarGridSpec(
            num_scalar_prefetch=0,
            grid=(num_blocks, num_h),
            in_specs=[
                pl.BlockSpec((batch_block * V, vdim), lambda b, k: (b, 0)),
                pl.BlockSpec((batch_block * Q, qdim), lambda b, k: (b, 0)),
                const_spec((vdim, h_block), lambda b, k: (0, k), w_const),
                const_spec((1, h_block), lambda b, k: (0, k), w_const),
                const_spec((qdim, h_block), lambda b, k: (0, k), w_const),
                const_spec((1, h_block), lambda b, k: (0, k), w_const),
                const_spec((G, h_block), lambda b, k: (0, k), w_const),
                const_spec((G, 1), lambda b, k: (0, 0), True),
            ],
            out_specs=[
                pl.BlockSpec((1, G * batch_block, VQ), lambda b, k: (b, 0, 0)),
                pl.BlockSpec((1, G * batch_block, VQ), lambda b, k: (b, 0, 0)),
            ],
            scratch_shapes=[pltpu.VMEM((G, batch_block * VQ), jnp.float32)],
        )
        return pl.pallas_call(
            kernel,
            out_shape=out_shape,
            grid_spec=grid_spec,
            compiler_params=pltpu.CompilerParams(
                dimension_semantics=("parallel", "arbitrary"),
                vmem_limit_bytes=vmem_limit),
        )(v2, q2, wv_b, bv_f, wq_b, bq_f, hm_b, hb)

    try:
        p_flat, logits_flat = run(True)
    except Exception:
        # pl.Buffered(1) (single-buffered constants) unsupported on this jax version;
        # fall back to default double buffering (correctness identical).
        p_flat, logits_flat = run(False)

    def unflatten(x):
        x = x.reshape(num_blocks, G, batch_block, V, Q)
        return jnp.transpose(x, (0, 2, 1, 3, 4)).reshape(B, G, V, Q)

    return unflatten(p_flat), unflatten(logits_flat)


def _weight_norm(w, g):
    """PyTorch weight_norm with dim=None: w_eff = g * w / ||w||_F (g scalar)."""
    return g * w / jnp.linalg.norm(w)


def make_params(key, vdim, qdim, h_dim, k, glimpse):
    H = h_dim * k
    ks = jax.random.split(key, 6)
    # FCNet Linear weights are [out, in] in torch; keep g scalars deterministic.
    wv_raw = jax.random.normal(ks[0], (H, vdim), jnp.float32) * 0.05
    wq_raw = jax.random.normal(ks[1], (H, qdim), jnp.float32) * 0.05
    bv = jax.random.normal(ks[2], (H,), jnp.float32) * 0.01
    bq = jax.random.normal(ks[3], (H,), jnp.float32) * 0.01
    # BCNet h_mat: [1, glimpse, 1, H] (normal init), h_bias: [1, glimpse, 1, 1]
    h_mat_raw = jax.random.normal(ks[4], (glimpse, H), jnp.float32)
    h_bias = jax.random.normal(ks[5], (glimpse,), jnp.float32)

    wv_eff = _weight_norm(wv_raw, jnp.float32(1.5))
    wq_eff = _weight_norm(wq_raw, jnp.float32(0.8))
    # outer weight_norm on BiAttention.logits (name='h_mat', dim=None)
    h_mat_eff = _weight_norm(h_mat_raw, jnp.float32(2.0))

    return dict(
        wv_t=wv_eff.T,                 # [vdim, H]
        bv=bv.reshape(1, H),
        wq_t=wq_eff.T,                 # [qdim, H]
        bq=bq.reshape(1, H),
        h_mat=h_mat_eff,               # [G, H]
        h_bias=h_bias,                 # [G]
    )


def reference(v, q, params, glimpse):
    v_ = jax.nn.relu(v @ params["wv_t"] + params["bv"][0])
    q_ = jax.nn.relu(q @ params["wq_t"] + params["bq"][0])
    logits = jnp.einsum("hk,bvk,bqk->bhvq", params["h_mat"], v_, q_)
    logits = logits + params["h_bias"][None, :, None, None]
    mask = (jnp.sum(jnp.abs(v), axis=2) == 0.0)[:, None, :, None]
    logits = jnp.where(mask, -jnp.inf, logits)
    B, G, V, Q = logits.shape
    p = jax.nn.softmax(logits.reshape(B, G, V * Q), axis=2).reshape(B, G, V, Q)
    return p, logits


if __name__ == "__main__":
    B, V, Q = 2, 16, 8            # batch, num visual objects, num question tokens
    vdim, qdim = 32, 32
    h_dim, k, glimpse = 64, 3, 2  # BCNet hidden dim, k=3, glimpses (H=192 -> padded 256)

    key = jax.random.PRNGKey(0)
    k_v, k_q, k_p = jax.random.split(key, 3)
    v = jax.random.normal(k_v, (B, V, vdim), jnp.float32)
    v = v.at[:, -1, :].set(0.0)   # zero out the last visual object: exercises v_mask
    q = jax.random.normal(k_q, (B, Q, qdim), jnp.float32)

    params = make_params(k_p, vdim, qdim, h_dim, k, glimpse)
    p_want, logits_want = reference(v, q, params, glimpse)
    finite = jnp.isfinite(logits_want)

    def check(p_out, logits_out):
        assert p_out.shape == (B, glimpse, V, Q) and logits_out.shape == (B, glimpse, V, Q)
        assert jnp.allclose(p_out, p_want, rtol=1e-2, atol=1e-2)
        assert jnp.allclose(jnp.where(finite, logits_out, 0.0),
                            jnp.where(finite, logits_want, 0.0), rtol=1e-2, atol=1e-2)
        assert bool(jnp.all(jnp.isneginf(logits_out[:, :, -1, :])))  # masked row

    args = (v, q, params["wv_t"], params["bv"], params["wq_t"], params["bq"],
            params["h_mat"], params["h_bias"])

    # 1) default config: one grid step over the batch, no H tiling.
    out1 = bi_attention(*args, glimpse=glimpse)
    jax.block_until_ready(out1)
    check(*out1)

    # 2) multi-step grid: 2 "parallel" batch blocks x 2 "arbitrary" H tiles
    #    (exercises the VMEM accumulator path / v7x-style configuration).
    out2 = bi_attention(*args, glimpse=glimpse, batch_block=1, h_block=128)
    jax.block_until_ready(out2)
    check(*out2)

    print("KERNEL_OK")
</pallas_src>

<mosaic_0001>
module attributes {stable_mosaic.version = 11 : i64} {
  func.func @bi_attention_kernel(%arg0: i32, %arg1: i32, %arg2: memref<32x32xbf16, #tpu.memory_space<vmem>>, %arg3: memref<16x32xbf16, #tpu.memory_space<vmem>>, %arg4: memref<32x256xbf16, #tpu.memory_space<vmem>>, %arg5: memref<1x256xf32, #tpu.memory_space<vmem>>, %arg6: memref<32x256xbf16, #tpu.memory_space<vmem>>, %arg7: memref<1x256xf32, #tpu.memory_space<vmem>>, %arg8: memref<2x256xbf16, #tpu.memory_space<vmem>>, %arg9: memref<2x1xf32, #tpu.memory_space<vmem>>, %arg10: memref<1x4x128xf32, #tpu.memory_space<vmem>>, %arg11: memref<1x4x128xf32, #tpu.memory_space<vmem>>, %arg12: memref<2x256xf32, #tpu.memory_space<vmem>>) attributes {dimension_semantics = [#tpu.dimension_semantics<parallel>, #tpu.dimension_semantics<arbitrary>], iteration_bounds = array<i64: 1, 1>, scalar_prefetch = 0 : i64, scratch_operands = 1 : i64, tpu.core_type = #tpu.core_type<tc>, window_params = [{transform_indices = @transform_0, window_bounds = array<i64: 32, 32>}, {transform_indices = @transform_1, window_bounds = array<i64: 16, 32>}, {pipeline_mode = #tpu.pipeline_mode<synchronous>, transform_indices = @transform_2, window_bounds = array<i64: 32, 256>}, {pipeline_mode = #tpu.pipeline_mode<synchronous>, transform_indices = @transform_3, window_bounds = array<i64: 1, 256>}, {pipeline_mode = #tpu.pipeline_mode<synchronous>, transform_indices = @transform_4, window_bounds = array<i64: 32, 256>}, {pipeline_mode = #tpu.pipeline_mode<synchronous>, transform_indices = @transform_5, window_bounds = array<i64: 1, 256>}, {pipeline_mode = #tpu.pipeline_mode<synchronous>, transform_indices = @transform_6, window_bounds = array<i64: 2, 256>}, {pipeline_mode = #tpu.pipeline_mode<synchronous>, transform_indices = @transform_7, window_bounds = array<i64: 2, 1>}, {transform_indices = @transform_8, window_bounds = array<i64: 1, 4, 128>}, {transform_indices = @transform_9, window_bounds = array<i64: 1, 4, 128>}]} {
    %c0_i32 = arith.constant 0 : i32
    %0 = arith.cmpi eq, %arg1, %c0_i32 : i32
    %1 = arith.extui %0 : i1 to i32
    %c0_i32_0 = arith.constant 0 : i32
    %2 = arith.cmpi ne, %1, %c0_i32_0 : i32
    scf.if %2 {
      %cst_24 = arith.constant 0.000000e+00 : f32
      %35 = vector.broadcast %cst_24 : f32 to vector<2x256xf32>
      %c0_25 = arith.constant 0 : index
      %c0_26 = arith.constant 0 : index
      %36 = vector.load %arg12[%c0_25, %c0_26] : memref<2x256xf32, #tpu.memory_space<vmem>>, vector<2x256xf32>
      tpu.vector_store %arg12[%c0_25, %c0_26], %35 {strides = array<i32>} : memref<2x256xf32, #tpu.memory_space<vmem>>, vector<2x256xf32>,
    } else {
    }
    %c0 = arith.constant 0 : index
    %c0_1 = arith.constant 0 : index
    %3 = vector.load %arg2[%c0, %c0_1] : memref<32x32xbf16, #tpu.memory_space<vmem>>, vector<32x32xbf16>
    %c0_2 = arith.constant 0 : index
    %c0_3 = arith.constant 0 : index
    %4 = vector.load %arg3[%c0_2, %c0_3] : memref<16x32xbf16, #tpu.memory_space<vmem>>, vector<16x32xbf16>
    %c0_4 = arith.constant 0 : index
    %c0_5 = arith.constant 0 : index
    %5 = vector.load %arg4[%c0_4, %c0_5] : memref<32x256xbf16, #tpu.memory_space<vmem>>, vector<32x256xbf16>
    %cst = arith.constant dense<0.000000e+00> : vector<32x256xf32>
    %6 = tpu.matmul %3, %5, %cst {dimension_numbers = #tpu.dot_dimension_numbers<[1], [0], [0], [1], [0, 0, 1, 1], [], []>} : vector<32x32xbf16>, vector<32x256xbf16>, vector<32x256xf32> -> vector<32x256xf32>
    %c0_6 = arith.constant 0 : index
    %c0_7 = arith.constant 0 : index
    %7 = vector.load %arg5[%c0_6, %c0_7] : memref<1x256xf32, #tpu.memory_space<vmem>>, vector<1x256xf32>
    %8 = vector.broadcast %7 : vector<1x256xf32> to vector<32x256xf32>
    %9 = arith.addf %6, %8 : vector<32x256xf32>
    %cst_8 = arith.constant 0.000000e+00 : f32
    %10 = vector.broadcast %cst_8 : f32 to vector<32x256xf32>
    %11 = arith.maximumf %9, %10 : vector<32x256xf32>
    %c0_9 = arith.constant 0 : index
    %c0_10 = arith.constant 0 : index
    %12 = vector.load %arg6[%c0_9, %c0_10] : memref<32x256xbf16, #tpu.memory_space<vmem>>, vector<32x256xbf16>
    %cst_11 = arith.constant dense<0.000000e+00> : vector<16x256xf32>
    %13 = tpu.matmul %4, %12, %cst_11 {dimension_numbers = #tpu.dot_dimension_numbers<[1], [0], [0], [1], [0, 0, 1, 1], [], []>} : vector<16x32xbf16>, vector<32x256xbf16>, vector<16x256xf32> -> vector<16x256xf32>
    %c0_12 = arith.constant 0 : index
    %c0_13 = arith.constant 0 : index
    %14 = vector.load %arg7[%c0_12, %c0_13] : memref<1x256xf32, #tpu.memory_space<vmem>>, vector<1x256xf32>
    %15 = vector.broadcast %14 : vector<1x256xf32> to vector<16x256xf32>
    %16 = arith.addf %13, %15 : vector<16x256xf32>
    %cst_14 = arith.constant 0.000000e+00 : f32
    %17 = vector.broadcast %cst_14 : f32 to vector<16x256xf32>
    %18 = arith.maximumf %16, %17 : vector<16x256xf32>
    %19 = arith.truncf %11 : vector<32x256xf32> to vector<32x256xbf16>
    %20 = vector.shape_cast %19 : vector<32x256xbf16> to vector<2x16x1x256xbf16>
    %21 = arith.truncf %18 : vector<16x256xf32> to vector<16x256xbf16>
    %22 = vector.shape_cast %21 : vector<16x256xbf16> to vector<2x1x8x256xbf16>
    %23 = vector.broadcast %20 : vector<2x16x1x256xbf16> to vector<2x16x8x256xbf16>
    %24 = vector.broadcast %22 : vector<2x1x8x256xbf16> to vector<2x16x8x256xbf16>
    %25 = arith.mulf %23, %24 : vector<2x16x8x256xbf16>
    %26 = vector.shape_cast %25 : vector<2x16x8x256xbf16> to vector<256x256xbf16>
    %c0_15 = arith.constant 0 : index
    %c0_16 = arith.constant 0 : index
    %27 = vector.load %arg12[%c0_15, %c0_16] : memref<2x256xf32, #tpu.memory_space<vmem>>, vector<2x256xf32>
    %c0_17 = arith.constant 0 : index
    %c0_18 = arith.constant 0 : index
    %28 = vector.load %arg8[%c0_17, %c0_18] : memref<2x256xbf16, #tpu.memory_space<vmem>>, vector<2x256xbf16>
    %cst_19 = arith.constant dense<0.000000e+00> : vector<2x256xf32>
    %29 = tpu.matmul %28, %26, %cst_19 {dimension_numbers = #tpu.dot_dimension_numbers<[1], [1], [0], [0], [0, 0, 1, 0], [], []>} : vector<2x256xbf16>, vector<256x256xbf16>, vector<2x256xf32> -> vector<2x256xf32>
    %30 = arith.addf %27, %29 : vector<2x256xf32>
    %c0_20 = arith.constant 0 : index
    %c0_21 = arith.constant 0 : index
    %31 = vector.load %arg12[%c0_20, %c0_21] : memref<2x256xf32, #tpu.memory_space<vmem>>, vector<2x256xf32>
    tpu.vector_store %arg12[%c0_20, %c0_21], %30 {strides = array<i32>} : memref<2x256xf32, #tpu.memory_space<vmem>>, vector<2x256xf32>,
    %c0_i32_22 = arith.constant 0 : i32
    %32 = arith.cmpi eq, %arg1, %c0_i32_22 : i32
    %33 = arith.extui %32 : i1 to i32
    %c0_i32_23 = arith.constant 0 : i32
    %34 = arith.cmpi ne, %33, %c0_i32_23 : i32
    scf.if %34 {
      %35 = arith.extf %3 : vector<32x32xbf16> to vector<32x32xf32>
      %36 = math.absf %35 : vector<32x32xf32>
      %cst_24 = arith.constant dense<0.000000e+00> : vector<32xf32>
      %37 = vector.multi_reduction <add>, %36, %cst_24 [1] : vector<32x32xf32> to vector<32xf32>
      %38 = vector.shape_cast %37 : vector<32xf32> to vector<32x1xf32>
      %39 = vector.shape_cast %38 : vector<32x1xf32> to vector<32x1x1xf32>
      %40 = vector.shape_cast %39 : vector<32x1x1xf32> to vector<32x1x1xf32>
      %41 = vector.broadcast %40 : vector<32x1x1xf32> to vector<32x8x8xf32>
      %42 = vector.shape_cast %41 : vector<32x8x8xf32> to vector<256x8xf32>
      %cst_25 = arith.constant 1.000000e+00 : f32
      %43 = vector.broadcast %cst_25 : f32 to vector<1x8xf32>
      %cst_26 = arith.constant dense<0.000000e+00> : vector<1x256xf32>
      %44 = tpu.matmul %43, %42, %cst_26 {dimension_numbers = #tpu.dot_dimension_numbers<[1], [1], [0], [0], [0, 0, 1, 0], [], []>} : vector<1x8xf32>, vector<256x8xf32>, vector<1x256xf32> -> vector<1x256xf32>
      %cst_27 = arith.constant 0.000000e+00 : f32
      %45 = vector.broadcast %cst_27 : f32 to vector<1x256xf32>
      %46 = arith.cmpf oeq, %44, %45 : vector<1x256xf32>
      %c0_28 = arith.constant 0 : index
      %c0_29 = arith.constant 0 : index
      %47 = vector.load %arg12[%c0_28, %c0_29] : memref<2x256xf32, #tpu.memory_space<vmem>>, vector<2x256xf32>
      %c0_30 = arith.constant 0 : index
      %c0_31 = arith.constant 0 : index
      %48 = vector.load %arg9[%c0_30, %c0_31] : memref<2x1xf32, #tpu.memory_space<vmem>>, vector<2x1xf32>
      %49 = vector.broadcast %48 : vector<2x1xf32> to vector<2x256xf32>
      %50 = arith.addf %47, %49 : vector<2x256xf32>
      %cst_32 = arith.constant 0xFF800000 : f32
      %51 = vector.shape_cast %46 : vector<1x256xi1> to vector<1x256xi1>
      %52 = vector.broadcast %51 : vector<1x256xi1> to vector<2x256xi1>
      %53 = vector.broadcast %cst_32 : f32 to vector<2x256xf32>
      %54 = arith.select %52, %53, %50 : vector<2x256xi1>, vector<2x256xf32>
      %55 = vector.shape_cast %54 : vector<2x256xf32> to vector<4x128xf32>
      %c0_33 = arith.constant 0 : index
      %c0_34 = arith.constant 0 : index
      %c0_35 = arith.constant 0 : index
      %56 = vector.load %arg11[%c0_33, %c0_34, %c0_35] : memref<1x4x128xf32, #tpu.memory_space<vmem>>, vector<1x4x128xf32>
      %57 = vector.shape_cast %56 : vector<1x4x128xf32> to vector<4x128xf32>
      %58 = vector.shape_cast %55 : vector<4x128xf32> to vector<1x4x128xf32>
      tpu.vector_store %arg11[%c0_33, %c0_34, %c0_35], %58 {strides = array<i32>} : memref<1x4x128xf32, #tpu.memory_space<vmem>>, vector<1x4x128xf32>,
      %cst_36 = arith.constant dense<0xFF800000> : vector<4xf32>
      %59 = vector.multi_reduction <maximumf>, %55, %cst_36 [1] : vector<4x128xf32> to vector<4xf32>
      %60 = vector.shape_cast %59 : vector<4xf32> to vector<4x1xf32>
      %61 = vector.broadcast %60 : vector<4x1xf32> to vector<4x128xf32>
      %62 = arith.subf %55, %61 : vector<4x128xf32>
      %63 = math.exp %62 : vector<4x128xf32>
      %cst_37 = arith.constant dense<0.000000e+00> : vector<4xf32>
      %64 = vector.multi_reduction <add>, %63, %cst_37 [1] : vector<4x128xf32> to vector<4xf32>
      %65 = vector.shape_cast %64 : vector<4xf32> to vector<4x1xf32>
      %66 = tpu.reciprocal %65 {approx = true} : vector<4x1xf32> -> vector<4x1xf32>
      %67 = vector.broadcast %66 : vector<4x1xf32> to vector<4x128xf32>
      %68 = arith.mulf %63, %67 : vector<4x128xf32>
      %c0_38 = arith.constant 0 : index
      %c0_39 = arith.constant 0 : index
      %c0_40 = arith.constant 0 : index
      %69 = vector.load %arg10[%c0_38, %c0_39, %c0_40] : memref<1x4x128xf32, #tpu.memory_space<vmem>>, vector<1x4x128xf32>
      %70 = vector.shape_cast %69 : vector<1x4x128xf32> to vector<4x128xf32>
      %71 = vector.shape_cast %68 : vector<4x128xf32> to vector<1x4x128xf32>
      tpu.vector_store %arg10[%c0_38, %c0_39, %c0_40], %71 {strides = array<i32>} : memref<1x4x128xf32, #tpu.memory_space<vmem>>, vector<1x4x128xf32>,
    } else {
    }
    return
  }
  func.func @transform_0(%arg0: i32, %arg1: i32) -> (i32, i32) {
    %c0_i32 = arith.constant 0 : i32
    %c0_i32_0 = arith.constant 0 : i32
    return %arg0, %c0_i32 : i32, i32
  }
  func.func @transform_1(%arg0: i32, %arg1: i32) -> (i32, i32) {
    %c0_i32 = arith.constant 0 : i32
    %c0_i32_0 = arith.constant 0 : i32
    return %arg0, %c0_i32 : i32, i32
  }
  func.func @transform_2(%arg0: i32, %arg1: i32) -> (i32, i32) {
    %c0_i32 = arith.constant 0 : i32
    %c0_i32_0 = arith.constant 0 : i32
    return %c0_i32, %arg1 : i32, i32
  }
  func.func @transform_3(%arg0: i32, %arg1: i32) -> (i32, i32) {
    %c0_i32 = arith.constant 0 : i32
    %c0_i32_0 = arith.constant 0 : i32
    return %c0_i32, %arg1 : i32, i32
  }
  func.func @transform_4(%arg0: i32, %arg1: i32) -> (i32, i32) {
    %c0_i32 = arith.constant 0 : i32
    %c0_i32_0 = arith.constant 0 : i32
    return %c0_i32, %arg1 : i32, i32
  }
  func.func @transform_5(%arg0: i32, %arg1: i32) -> (i32, i32) {
    %c0_i32 = arith.constant 0 : i32
    %c0_i32_0 = arith.constant 0 : i32
    return %c0_i32, %arg1 : i32, i32
  }
  func.func @transform_6(%arg0: i32, %arg1: i32) -> (i32, i32) {
    %c0_i32 = arith.constant 0 : i32
    %c0_i32_0 = arith.constant 0 : i32
    return %c0_i32, %arg1 : i32, i32
  }
  func.func @transform_7(%arg0: i32, %arg1: i32) -> (i32, i32) {
    %c0_i32 = arith.constant 0 : i32
    %c0_i32_0 = arith.constant 0 : i32
    %c0_i32_1 = arith.constant 0 : i32
    return %c0_i32, %c0_i32_0 : i32, i32
  }
  func.func @transform_8(%arg0: i32, %arg1: i32) -> (i32, i32, i32) {
    %c0_i32 = arith.constant 0 : i32
    %c0_i32_0 = arith.constant 0 : i32
    %c0_i32_1 = arith.constant 0 : i32
    return %arg0, %c0_i32, %c0_i32_0 : i32, i32, i32
  }
  func.func @transform_9(%arg0: i32, %arg1: i32) -> (i32, i32, i32) {
    %c0_i32 = arith.constant 0 : i32
    %c0_i32_0 = arith.constant 0 : i32
    %c0_i32_1 = arith.constant 0 : i32
    return %arg0, %c0_i32, %c0_i32_0 : i32, i32, i32
  }
}

module attributes {stable_mosaic.version = 11 : i64} {
  func.func @bi_attention_kernel(%arg0: i32, %arg1: i32, %arg2: memref<32x32xbf16, #tpu.memory_space<vmem>>, %arg3: memref<16x32xbf16, #tpu.memory_space<vmem>>, %arg4: memref<32x256xbf16, #tpu.memory_space<vmem>>, %arg5: memref<1x256xf32, #tpu.memory_space<vmem>>, %arg6: memref<32x256xbf16, #tpu.memory_space<vmem>>, %arg7: memref<1x256xf32, #tpu.memory_space<vmem>>, %arg8: memref<2x256xbf16, #tpu.memory_space<vmem>>, %arg9: memref<2x1xf32, #tpu.memory_space<vmem>>, %arg10: memref<1x4x128xf32, #tpu.memory_space<vmem>>, %arg11: memref<1x4x128xf32, #tpu.memory_space<vmem>>, %arg12: memref<2x256xf32, #tpu.memory_space<vmem>>) attributes {dimension_semantics = [#tpu.dimension_semantics<parallel>, #tpu.dimension_semantics<arbitrary>], iteration_bounds = array<i64: 1, 1>, scalar_prefetch = 0 : i64, scratch_operands = 1 : i64, tpu.core_type = #tpu.core_type<tc>, window_params = [{transform_indices = @transform_0, window_bounds = array<i64: 32, 32>}, {transform_indices = @transform_1, window_bounds = array<i64: 16, 32>}, {transform_indices = @transform_2, window_bounds = array<i64: 32, 256>}, {transform_indices = @transform_3, window_bounds = array<i64: 1, 256>}, {transform_indices = @transform_4, window_bounds = array<i64: 32, 256>}, {transform_indices = @transform_5, window_bounds = array<i64: 1, 256>}, {transform_indices = @transform_6, window_bounds = array<i64: 2, 256>}, {pipeline_mode = #tpu.pipeline_mode<synchronous>, transform_indices = @transform_7, window_bounds = array<i64: 2, 1>}, {transform_indices = @transform_8, window_bounds = array<i64: 1, 4, 128>}, {transform_indices = @transform_9, window_bounds = array<i64: 1, 4, 128>}]} {
    %c0_i32 = arith.constant 0 : i32
    %0 = arith.cmpi eq, %arg1, %c0_i32 : i32
    %1 = arith.extui %0 : i1 to i32
    %c0_i32_0 = arith.constant 0 : i32
    %2 = arith.cmpi ne, %1, %c0_i32_0 : i32
    scf.if %2 {
      %cst_24 = arith.constant 0.000000e+00 : f32
      %35 = vector.broadcast %cst_24 : f32 to vector<2x256xf32>
      %c0_25 = arith.constant 0 : index
      %c0_26 = arith.constant 0 : index
      %36 = vector.load %arg12[%c0_25, %c0_26] : memref<2x256xf32, #tpu.memory_space<vmem>>, vector<2x256xf32>
      tpu.vector_store %arg12[%c0_25, %c0_26], %35 {strides = array<i32>} : memref<2x256xf32, #tpu.memory_space<vmem>>, vector<2x256xf32>,
    } else {
    }
    %c0 = arith.constant 0 : index
    %c0_1 = arith.constant 0 : index
    %3 = vector.load %arg2[%c0, %c0_1] : memref<32x32xbf16, #tpu.memory_space<vmem>>, vector<32x32xbf16>
    %c0_2 = arith.constant 0 : index
    %c0_3 = arith.constant 0 : index
    %4 = vector.load %arg3[%c0_2, %c0_3] : memref<16x32xbf16, #tpu.memory_space<vmem>>, vector<16x32xbf16>
    %c0_4 = arith.constant 0 : index
    %c0_5 = arith.constant 0 : index
    %5 = vector.load %arg4[%c0_4, %c0_5] : memref<32x256xbf16, #tpu.memory_space<vmem>>, vector<32x256xbf16>
    %cst = arith.constant dense<0.000000e+00> : vector<32x256xf32>
    %6 = tpu.matmul %3, %5, %cst {dimension_numbers = #tpu.dot_dimension_numbers<[1], [0], [0], [1], [0, 0, 1, 1], [], []>} : vector<32x32xbf16>, vector<32x256xbf16>, vector<32x256xf32> -> vector<32x256xf32>
    %c0_6 = arith.constant 0 : index
    %c0_7 = arith.constant 0 : index
    %7 = vector.load %arg5[%c0_6, %c0_7] : memref<1x256xf32, #tpu.memory_space<vmem>>, vector<1x256xf32>
    %8 = vector.broadcast %7 : vector<1x256xf32> to vector<32x256xf32>
    %9 = arith.addf %6, %8 : vector<32x256xf32>
    %cst_8 = arith.constant 0.000000e+00 : f32
    %10 = vector.broadcast %cst_8 : f32 to vector<32x256xf32>
    %11 = arith.maximumf %9, %10 : vector<32x256xf32>
    %c0_9 = arith.constant 0 : index
    %c0_10 = arith.constant 0 : index
    %12 = vector.load %arg6[%c0_9, %c0_10] : memref<32x256xbf16, #tpu.memory_space<vmem>>, vector<32x256xbf16>
    %cst_11 = arith.constant dense<0.000000e+00> : vector<16x256xf32>
    %13 = tpu.matmul %4, %12, %cst_11 {dimension_numbers = #tpu.dot_dimension_numbers<[1], [0], [0], [1], [0, 0, 1, 1], [], []>} : vector<16x32xbf16>, vector<32x256xbf16>, vector<16x256xf32> -> vector<16x256xf32>
    %c0_12 = arith.constant 0 : index
    %c0_13 = arith.constant 0 : index
    %14 = vector.load %arg7[%c0_12, %c0_13] : memref<1x256xf32, #tpu.memory_space<vmem>>, vector<1x256xf32>
    %15 = vector.broadcast %14 : vector<1x256xf32> to vector<16x256xf32>
    %16 = arith.addf %13, %15 : vector<16x256xf32>
    %cst_14 = arith.constant 0.000000e+00 : f32
    %17 = vector.broadcast %cst_14 : f32 to vector<16x256xf32>
    %18 = arith.maximumf %16, %17 : vector<16x256xf32>
    %19 = arith.truncf %11 : vector<32x256xf32> to vector<32x256xbf16>
    %20 = vector.shape_cast %19 : vector<32x256xbf16> to vector<2x16x1x256xbf16>
    %21 = arith.truncf %18 : vector<16x256xf32> to vector<16x256xbf16>
    %22 = vector.shape_cast %21 : vector<16x256xbf16> to vector<2x1x8x256xbf16>
    %23 = vector.broadcast %20 : vector<2x16x1x256xbf16> to vector<2x16x8x256xbf16>
    %24 = vector.broadcast %22 : vector<2x1x8x256xbf16> to vector<2x16x8x256xbf16>
    %25 = arith.mulf %23, %24 : vector<2x16x8x256xbf16>
    %26 = vector.shape_cast %25 : vector<2x16x8x256xbf16> to vector<256x256xbf16>
    %c0_15 = arith.constant 0 : index
    %c0_16 = arith.constant 0 : index
    %27 = vector.load %arg12[%c0_15, %c0_16] : memref<2x256xf32, #tpu.memory_space<vmem>>, vector<2x256xf32>
    %c0_17 = arith.constant 0 : index
    %c0_18 = arith.constant 0 : index
    %28 = vector.load %arg8[%c0_17, %c0_18] : memref<2x256xbf16, #tpu.memory_space<vmem>>, vector<2x256xbf16>
    %cst_19 = arith.constant dense<0.000000e+00> : vector<2x256xf32>
    %29 = tpu.matmul %28, %26, %cst_19 {dimension_numbers = #tpu.dot_dimension_numbers<[1], [1], [0], [0], [0, 0, 1, 0], [], []>} : vector<2x256xbf16>, vector<256x256xbf16>, vector<2x256xf32> -> vector<2x256xf32>
    %30 = arith.addf %27, %29 : vector<2x256xf32>
    %c0_20 = arith.constant 0 : index
    %c0_21 = arith.constant 0 : index
    %31 = vector.load %arg12[%c0_20, %c0_21] : memref<2x256xf32, #tpu.memory_space<vmem>>, vector<2x256xf32>
    tpu.vector_store %arg12[%c0_20, %c0_21], %30 {strides = array<i32>} : memref<2x256xf32, #tpu.memory_space<vmem>>, vector<2x256xf32>,
    %c0_i32_22 = arith.constant 0 : i32
    %32 = arith.cmpi eq, %arg1, %c0_i32_22 : i32
    %33 = arith.extui %32 : i1 to i32
    %c0_i32_23 = arith.constant 0 : i32
    %34 = arith.cmpi ne, %33, %c0_i32_23 : i32
    scf.if %34 {
      %35 = arith.extf %3 : vector<32x32xbf16> to vector<32x32xf32>
      %36 = math.absf %35 : vector<32x32xf32>
      %cst_24 = arith.constant dense<0.000000e+00> : vector<32xf32>
      %37 = vector.multi_reduction <add>, %36, %cst_24 [1] : vector<32x32xf32> to vector<32xf32>
      %38 = vector.shape_cast %37 : vector<32xf32> to vector<32x1xf32>
      %39 = vector.shape_cast %38 : vector<32x1xf32> to vector<32x1x1xf32>
      %40 = vector.shape_cast %39 : vector<32x1x1xf32> to vector<32x1x1xf32>
      %41 = vector.broadcast %40 : vector<32x1x1xf32> to vector<32x8x8xf32>
      %42 = vector.shape_cast %41 : vector<32x8x8xf32> to vector<256x8xf32>
      %cst_25 = arith.constant 1.000000e+00 : f32
      %43 = vector.broadcast %cst_25 : f32 to vector<1x8xf32>
      %cst_26 = arith.constant dense<0.000000e+00> : vector<1x256xf32>
      %44 = tpu.matmul %43, %42, %cst_26 {dimension_numbers = #tpu.dot_dimension_numbers<[1], [1], [0], [0], [0, 0, 1, 0], [], []>} : vector<1x8xf32>, vector<256x8xf32>, vector<1x256xf32> -> vector<1x256xf32>
      %cst_27 = arith.constant 0.000000e+00 : f32
      %45 = vector.broadcast %cst_27 : f32 to vector<1x256xf32>
      %46 = arith.cmpf oeq, %44, %45 : vector<1x256xf32>
      %c0_28 = arith.constant 0 : index
      %c0_29 = arith.constant 0 : index
      %47 = vector.load %arg12[%c0_28, %c0_29] : memref<2x256xf32, #tpu.memory_space<vmem>>, vector<2x256xf32>
      %c0_30 = arith.constant 0 : index
      %c0_31 = arith.constant 0 : index
      %48 = vector.load %arg9[%c0_30, %c0_31] : memref<2x1xf32, #tpu.memory_space<vmem>>, vector<2x1xf32>
      %49 = vector.broadcast %48 : vector<2x1xf32> to vector<2x256xf32>
      %50 = arith.addf %47, %49 : vector<2x256xf32>
      %cst_32 = arith.constant 0xFF800000 : f32
      %51 = vector.shape_cast %46 : vector<1x256xi1> to vector<1x256xi1>
      %52 = vector.broadcast %51 : vector<1x256xi1> to vector<2x256xi1>
      %53 = vector.broadcast %cst_32 : f32 to vector<2x256xf32>
      %54 = arith.select %52, %53, %50 : vector<2x256xi1>, vector<2x256xf32>
      %55 = vector.shape_cast %54 : vector<2x256xf32> to vector<4x128xf32>
      %c0_33 = arith.constant 0 : index
      %c0_34 = arith.constant 0 : index
      %c0_35 = arith.constant 0 : index
      %56 = vector.load %arg11[%c0_33, %c0_34, %c0_35] : memref<1x4x128xf32, #tpu.memory_space<vmem>>, vector<1x4x128xf32>
      %57 = vector.shape_cast %56 : vector<1x4x128xf32> to vector<4x128xf32>
      %58 = vector.shape_cast %55 : vector<4x128xf32> to vector<1x4x128xf32>
      tpu.vector_store %arg11[%c0_33, %c0_34, %c0_35], %58 {strides = array<i32>} : memref<1x4x128xf32, #tpu.memory_space<vmem>>, vector<1x4x128xf32>,
      %cst_36 = arith.constant dense<0xFF800000> : vector<4xf32>
      %59 = vector.multi_reduction <maximumf>, %55, %cst_36 [1] : vector<4x128xf32> to vector<4xf32>
      %60 = vector.shape_cast %59 : vector<4xf32> to vector<4x1xf32>
      %61 = vector.broadcast %60 : vector<4x1xf32> to vector<4x128xf32>
      %62 = arith.subf %55, %61 : vector<4x128xf32>
      %63 = math.exp %62 : vector<4x128xf32>
      %cst_37 = arith.constant dense<0.000000e+00> : vector<4xf32>
      %64 = vector.multi_reduction <add>, %63, %cst_37 [1] : vector<4x128xf32> to vector<4xf32>
      %65 = vector.shape_cast %64 : vector<4xf32> to vector<4x1xf32>
      %66 = tpu.reciprocal %65 {approx = true} : vector<4x1xf32> -> vector<4x1xf32>
      %67 = vector.broadcast %66 : vector<4x1xf32> to vector<4x128xf32>
      %68 = arith.mulf %63, %67 : vector<4x128xf32>
      %c0_38 = arith.constant 0 : index
      %c0_39 = arith.constant 0 : index
      %c0_40 = arith.constant 0 : index
      %69 = vector.load %arg10[%c0_38, %c0_39, %c0_40] : memref<1x4x128xf32, #tpu.memory_space<vmem>>, vector<1x4x128xf32>
      %70 = vector.shape_cast %69 : vector<1x4x128xf32> to vector<4x128xf32>
      %71 = vector.shape_cast %68 : vector<4x128xf32> to vector<1x4x128xf32>
      tpu.vector_store %arg10[%c0_38, %c0_39, %c0_40], %71 {strides = array<i32>} : memref<1x4x128xf32, #tpu.memory_space<vmem>>, vector<1x4x128xf32>,
    } else {
    }
    return
  }
  func.func @transform_0(%arg0: i32, %arg1: i32) -> (i32, i32) {
    %c0_i32 = arith.constant 0 : i32
    %c0_i32_0 = arith.constant 0 : i32
    return %arg0, %c0_i32 : i32, i32
  }
  func.func @transform_1(%arg0: i32, %arg1: i32) -> (i32, i32) {
    %c0_i32 = arith.constant 0 : i32
    %c0_i32_0 = arith.constant 0 : i32
    return %arg0, %c0_i32 : i32, i32
  }
  func.func @transform_2(%arg0: i32, %arg1: i32) -> (i32, i32) {
    %c0_i32 = arith.constant 0 : i32
    %c0_i32_0 = arith.constant 0 : i32
    return %c0_i32, %arg1 : i32, i32
  }
  func.func @transform_3(%arg0: i32, %arg1: i32) -> (i32, i32) {
    %c0_i32 = arith.constant 0 : i32
    %c0_i32_0 = arith.constant 0 : i32
    return %c0_i32, %arg1 : i32, i32
  }
  func.func @transform_4(%arg0: i32, %arg1: i32) -> (i32, i32) {
    %c0_i32 = arith.constant 0 : i32
    %c0_i32_0 = arith.constant 0 : i32
    return %c0_i32, %arg1 : i32, i32
  }
  func.func @transform_5(%arg0: i32, %arg1: i32) -> (i32, i32) {
    %c0_i32 = arith.constant 0 : i32
    %c0_i32_0 = arith.constant 0 : i32
    return %c0_i32, %arg1 : i32, i32
  }
  func.func @transform_6(%arg0: i32, %arg1: i32) -> (i32, i32) {
    %c0_i32 = arith.constant 0 : i32
    %c0_i32_0 = arith.constant 0 : i32
    return %c0_i32, %arg1 : i32, i32
  }
  func.func @transform_7(%arg0: i32, %arg1: i32) -> (i32, i32) {
    %c0_i32 = arith.constant 0 : i32
    %c0_i32_0 = arith.constant 0 : i32
    %c0_i32_1 = arith.constant 0 : i32
    return %c0_i32, %c0_i32_0 : i32, i32
  }
  func.func @transform_8(%arg0: i32, %arg1: i32) -> (i32, i32, i32) {
    %c0_i32 = arith.constant 0 : i32
    %c0_i32_0 = arith.constant 0 : i32
    %c0_i32_1 = arith.constant 0 : i32
    return %arg0, %c0_i32, %c0_i32_0 : i32, i32, i32
  }
  func.func @transform_9(%arg0: i32, %arg1: i32) -> (i32, i32, i32) {
    %c0_i32 = arith.constant 0 : i32
    %c0_i32_0 = arith.constant 0 : i32
    %c0_i32_1 = arith.constant 0 : i32
    return %arg0, %c0_i32, %c0_i32_0 : i32, i32, i32
  }
}

</mosaic_0001>

<llo_original>
// kernel: tpu_custom_call.1
$region0: #{tpu_custom_call.1}
  #allocation0 [shape = 'u32[]', space=smem, size = 0x4, offset = 0x4, fixed_abs, tag = 'smem constant byte address 0x4 - core index']
  #allocation1 [shape = 'u32[144,128]{1,0:T(1,128)}', space=vmem, size = 0x12000, scoped, tag = 'internal scratch']
  #allocation2 [shape = 'f32[2,256]{1,0:T(2,128)}', space=vmem, size = 0x800, scoped, tag = 'scratch operand']
  %s0 = inlined_call_operand.hbm [shape: bf16[32,32], index: 0, kind: input, shape index: {}]
  %s1 = inlined_call_operand.hbm [shape: bf16[16,32], index: 1, kind: input, shape index: {}]
  %s2 = inlined_call_operand.hbm [shape: bf16[32,256], index: 2, kind: input, shape index: {}]
  %s3 = inlined_call_operand.vmem [shape: f32[1,256], index: 3, kind: input, shape index: {}]
  %s4 = inlined_call_operand.hbm [shape: bf16[32,256], index: 4, kind: input, shape index: {}]
  %s5 = inlined_call_operand.vmem [shape: f32[1,256], index: 5, kind: input, shape index: {}]
  %s6 = inlined_call_operand.vmem [shape: bf16[2,256], index: 6, kind: input, shape index: {}]
  %s7 = inlined_call_operand.vmem [shape: f32[2,1], index: 7, kind: input, shape index: {}]
  %s8 = inlined_call_operand.hbm [shape: f32[1,4,128], index: 8, kind: output, shape index: {0}]
  %s9 = inlined_call_operand.hbm [shape: f32[1,4,128], index: 9, kind: output, shape index: {1}]
  %10 = xla_tuple %s8, %s9
  %s11 = sld [smem:[#allocation0]]
  $region74: #{tpu_custom_call.1} parent=0
    _
  %s13 = ssub.s32 1, %s11
  %s14 = scalar_select 0, %s13, %s11
  $region1: #{tpu_custom_call.1} parent=0
    #allocation3 [shape = 'u8[8192]{0}', space=vmem, size = 0x2000, scoped, tag = 'input window, operand 0, single buffered']
    #allocation4 [shape = 's32[1]{0}', space=sflag, size = 0x4, scoped, tag = 'scoped memory for tpu_custom_call.1']
    #allocation5 [shape = 's32[1]{0}', space=sflag, size = 0x4, scoped, tag = 'scoped memory for tpu_custom_call.1']
    #allocation6 [shape = 'u8[4096]{0}', space=vmem, size = 0x1000, scoped, tag = 'input window, operand 1, single buffered']
    #allocation7 [shape = 's32[1]{0}', space=sflag, size = 0x4, scoped, tag = 'scoped memory for tpu_custom_call.1']
    #allocation8 [shape = 'u8[16384]{0}', space=vmem, size = 0x4000, scoped, tag = 'input window, operand 2, single buffered']
    #allocation9 [shape = 'u8[16384]{0}', space=vmem, size = 0x4000, scoped, tag = 'input window, operand 4, single buffered']
    #allocation10 [shape = 's32[1]{0}', space=sflag, size = 0x4, scoped, tag = 'scoped memory for tpu_custom_call.1']
    #allocation11 [shape = 'u8[2048]{0}', space=vmem, size = 0x800, scoped, tag = 'output window, operand 0, single buffered']
    #allocation12 [shape = 'u8[2048]{0}', space=vmem, size = 0x800, scoped, tag = 'output window, operand 1, single buffered']
    #allocation13 [shape = 's32[1]{0}', space=sflag, size = 0x4, scoped, tag = 'scoped memory for tpu_custom_call.1']
    %15 = vsyncpa [#allocation4], 0
    %16 = vsyncpa [#allocation7], 0
    %17 = vsyncpa [#allocation10], 0
    %18 = vsyncpa [#allocation5], 0
    %19 = vsyncpa [#allocation13], 0
    // Predicated region
    $region2: #{tpu_custom_call.1} parent=1 // pred_check
      _
    $region3: #{tpu_custom_call.1} parent=1 // pred_check_branch
      %21 = sbr.rel (0) target = $region5
    $region4: #{tpu_custom_call.1} parent=1 // pred_region
      %s23 = ssub.s32 256, 256
      %24 = vsyncadd [#allocation4], %s23
      %s25 = sshll.u32 [#allocation3], 4
      %s26 = int_to_ptr.vmem [resolvable:$true] %s25
      %31 = dma.hbm_to_vmem [thread:$0]  %s0, 256, %s26, [#allocation4], 64, 64, 4
    $region5: #{tpu_custom_call.1} parent=1 // pred_fallthru
      _
    // Predicated region
    $region6: #{tpu_custom_call.1} parent=1 // pred_check
      _
    $region7: #{tpu_custom_call.1} parent=1 // pred_check_branch
      %33 = sbr.rel (0) target = $region9
    $region8: #{tpu_custom_call.1} parent=1 // pred_region
      %s35 = ssub.s32 128, 128
      %36 = vsyncadd [#allocation7], %s35
      %s37 = sshll.u32 [#allocation6], 4
      %s38 = int_to_ptr.vmem [resolvable:$true] %s37
      %43 = dma.hbm_to_vmem [thread:$0]  %s1, 128, %s38, [#allocation7], 64, 64, 4
    $region9: #{tpu_custom_call.1} parent=1 // pred_fallthru
      _
    // Predicated region
    $region10: #{tpu_custom_call.1} parent=1 // pred_check
      _
    $region11: #{tpu_custom_call.1} parent=1 // pred_check_branch
      %45 = sbr.rel (0) target = $region13
    $region12: #{tpu_custom_call.1} parent=1 // pred_region
      %s47 = ssub.s32 512, 512
      %48 = vsyncadd [#allocation7], %s47
      %s49 = sshll.u32 [#allocation8], 4
      %s50 = int_to_ptr.vmem [resolvable:$true] %s49
      %55 = dma.hbm_to_vmem [thread:$0]  %s2, 512, %s50, [#allocation7], 128, 128, 8
    $region13: #{tpu_custom_call.1} parent=1 // pred_fallthru
      _
    // Predicated region
    $region14: #{tpu_custom_call.1} parent=1 // pred_check
      _
    $region15: #{tpu_custom_call.1} parent=1 // pred_check_branch
      %57 = sbr.rel (0) target = $region17
    $region16: #{tpu_custom_call.1} parent=1 // pred_region
      _
    $region17: #{tpu_custom_call.1} parent=1 // pred_fallthru
      _
    // Predicated region
    $region18: #{tpu_custom_call.1} parent=1 // pred_check
      _
    $region19: #{tpu_custom_call.1} parent=1 // pred_check_branch
      %59 = sbr.rel (0) target = $region21
    $region20: #{tpu_custom_call.1} parent=1 // pred_region
      %s61 = ssub.s32 512, 512
      %62 = vsyncadd [#allocation10], %s61
      %s63 = sshll.u32 [#allocation9], 4
      %s64 = int_to_ptr.vmem [resolvable:$true] %s63
      %69 = dma.hbm_to_vmem [thread:$0]  %s4, 512, %s64, [#allocation10], 128, 128, 8
    $region21: #{tpu_custom_call.1} parent=1 // pred_fallthru
      _
    // Predicated region
    $region22: #{tpu_custom_call.1} parent=1 // pred_check
      _
    $region23: #{tpu_custom_call.1} parent=1 // pred_check_branch
      %71 = sbr.rel (0) target = $region25
    $region24: #{tpu_custom_call.1} parent=1 // pred_region
      _
    $region25: #{tpu_custom_call.1} parent=1 // pred_fallthru
      _
    // Predicated region
    $region26: #{tpu_custom_call.1} parent=1 // pred_check
      _
    $region27: #{tpu_custom_call.1} parent=1 // pred_check_branch
      %73 = sbr.rel (0) target = $region29
    $region28: #{tpu_custom_call.1} parent=1 // pred_region
      _
    $region29: #{tpu_custom_call.1} parent=1 // pred_fallthru
      _
    // Predicated region
    $region30: #{tpu_custom_call.1} parent=1 // pred_check
      _
    $region31: #{tpu_custom_call.1} parent=1 // pred_check_branch
      %75 = sbr.rel (0) target = $region33
    $region32: #{tpu_custom_call.1} parent=1 // pred_region
      _
    $region33: #{tpu_custom_call.1} parent=1 // pred_fallthru
      _
    // Predicated region
    $region34: #{tpu_custom_call.1} parent=1 // pred_check
      _
    $region35: #{tpu_custom_call.1} parent=1 // pred_check_branch
      %77 = sbr.rel (0) target = $region37
    $region36: #{tpu_custom_call.1} parent=1 // pred_region
      %78 = dma.done [#allocation4], 256
    $region37: #{tpu_custom_call.1} parent=1 // pred_fallthru
      _
    // Predicated region
    $region38: #{tpu_custom_call.1} parent=1 // pred_check
      _
    $region39: #{tpu_custom_call.1} parent=1 // pred_check_branch
      %80 = sbr.rel (0) target = $region41
    $region40: #{tpu_custom_call.1} parent=1 // pred_region
      %81 = dma.done [#allocation7], 128
    $region41: #{tpu_custom_call.1} parent=1 // pred_fallthru
      _
    // Predicated region
    $region42: #{tpu_custom_call.1} parent=1 // pred_check
      _
    $region43: #{tpu_custom_call.1} parent=1 // pred_check_branch
      %83 = sbr.rel (0) target = $region45
    $region44: #{tpu_custom_call.1} parent=1 // pred_region
      %84 = dma.done [#allocation7], 512
    $region45: #{tpu_custom_call.1} parent=1 // pred_fallthru
      _
    // Predicated region
    $region46: #{tpu_custom_call.1} parent=1 // pred_check
      _
    $region47: #{tpu_custom_call.1} parent=1 // pred_check_branch
      %86 = sbr.rel (0) target = $region49
    $region48: #{tpu_custom_call.1} parent=1 // pred_region
      %87 = dma.done [#allocation10], 512
    $region49: #{tpu_custom_call.1} parent=1 // pred_fallthru
      _
    %p89 = scmp.eq.s32.totalorder 0, 0
    // Predicated region
    $region50: #{tpu_custom_call.1} parent=1 // pred_check
      %p90 = pneg %p89
    $region51: #{tpu_custom_call.1} parent=1 // pred_check_branch
      %92 = sbr.rel (%p90) target = $region53
    $region52: #{tpu_custom_call.1} parent=1 // pred_region
      %93 = vst [vmem:[#allocation2] sm:$0xf] 0.0
    $region53: #{tpu_custom_call.1} parent=1 // pred_fallthru
      _
    %v94 = vld [vmem:[#allocation3] sm:$0xf]
    %v95 = vld [vmem:[#allocation3 + $0x4] sm:$0xf]
    %v96 = vld [vmem:[#allocation3 + $0x8] sm:$0xf]
    %v97 = vld [vmem:[#allocation3 + $0xc] sm:$0xf]
    %v98 = vld [vmem:[#allocation6] sm:$0xf]
    %v99 = vld [vmem:[#allocation6 + $0x4] sm:$0xf]
    %v100 = vld [vmem:[#allocation8] sm:$0xff]
    %v101 = vld [vmem:[#allocation8 + $0x8] sm:$0xff]
    %v102 = vld [vmem:[#allocation8 + $0x10] sm:$0xff]
    %v103 = vld [vmem:[#allocation8 + $0x18] sm:$0xff]
    %v104 = vld [vmem:[%s3] sm:$0x3]
    %v106 = vlaneseq
    %v107 = vshrl.u32 %v106, 7
    %v108 = vsub.s32 0, %v107
    %v109 = vrot.slane %v104, %v108
    %v110 = vlaneseq
    %v111 = vshrl.u32 %v110, 7
    %v112 = vsub.s32 1, %v111
    %v113 = vrot.slane %v104, %v112
    %v120 = vunpack.c.l.b16 %v94
    %v121 = vunpack.c.l.b16 %v95
    %v122 = vunpack.c.l.b16 %v96
    %v123 = vunpack.c.l.b16 %v97
    %v124 = vpack.c.b16 %v121, %v120
    %v125 = vpack.c.b16 %v123, %v122
    %v130 = vunpack.c.l.b16 %v100
    %v131 = vunpack.c.h.b16 %v100
    %v132 = vunpack.c.l.b16 %v101
    %v133 = vunpack.c.h.b16 %v101
    %v134 = vunpack.c.l.b16 %v102
    %v135 = vunpack.c.h.b16 %v102
    %v136 = vunpack.c.l.b16 %v103
    %v137 = vunpack.c.h.b16 %v103
    %v138 = vpack.c.b16 %v132, %v130
    %v139 = vpack.c.b16 %v133, %v131
    %v140 = vpack.c.b16 %v136, %v134
    %v141 = vpack.c.b16 %v137, %v135
    %vm146 = vcmask 261120
    %v148 = vsel %vm146, %v124, 0
    %v151 = vsel %vm146, %v125, 0
    %153 = vmatprep.subr.bf16.mxu0 %v139
    %154 = vmatpush1.bf16.msra.mxu0 %v138
    %155 = vmatprep.subr.bf16.mxu0 %v141
    %156 = vmatpush1.bf16.msra.mxu0 %v140
    %157 = vmatprep.subr.bf16.mxu0 0
    %158 = vmatpush1.bf16.msra.mxu0 0
    %159 = vmatprep.subr.bf16.mxu0 0
    %160 = vmatpush1.bf16.msra.mxu0 0
    %161 = vmatprep.subr.bf16.mxu0 0
    %162 = vmatpush1.bf16.msra.mxu0 0
    %163 = vmatprep.subr.bf16.mxu0 0
    %164 = vmatpush1.bf16.msra.mxu0 0
    %165 = vmatprep.subr.bf16.mxu0 0
    %166 = vmatpush1.bf16.msra.mxu0 0
    %167 = vmatprep.subr.bf16.mxu0 0
    %168 = vmatpush1.bf16.msra.mxu0 0
    %169 = vmatprep.subr.bf16.mxu0 0
    %170 = vmatpush1.bf16.msra.mxu0 0
    %171 = vmatprep.subr.bf16.mxu0 0
    %172 = vmatpush1.bf16.msra.mxu0 0
    %173 = vmatprep.subr.bf16.mxu0 0
    %174 = vmatpush1.bf16.msra.mxu0 0
    %175 = vmatprep.subr.bf16.mxu0 0
    %176 = vmatpush1.bf16.msra.mxu0 0
    %177 = vmatprep.subr.bf16.mxu0 0
    %178 = vmatpush1.bf16.msra.mxu0 0
    %179 = vmatprep.subr.bf16.mxu0 0
    %180 = vmatpush1.bf16.msra.mxu0 0
    %181 = vmatprep.subr.bf16.mxu0 0
    %182 = vmatpush1.bf16.msra.mxu0 0
    %183 = vmatprep.subr.bf16.mxu0 0
    %184 = vmatpush1.bf16.msra.mxu0 0
    %185 = vmatprep.mubr.bf16.mxu0 0
    %186 = vmatmul.mubr.bf16.gmra.mrb[0].mxu0 %v148
    %v187 = vpop.f32.mrb[0].mxu0
    %v188 = vadd.f32 %v109, %v187
    %v189 = vpop.f32.mrb[0].mxu0
    %v190 = vadd.f32 %v113, %v189
    %v191 = vpop.f32.mrb[0].mxu0
    %v192 = vadd.f32 %v109, %v191
    %v193 = vpop.f32.mrb[0].mxu0
    %v194 = vadd.f32 %v113, %v193
    %195 = vmatprep.mubr.bf16.mxu0 0
    %196 = vmatmul.mubr.bf16.gmra.mrb[0].mxu0 %v151
    %v197 = vpop.f32.mrb[0].mxu0
    %v198 = vadd.f32 %v109, %v197
    %v199 = vpop.f32.mrb[0].mxu0
    %v200 = vadd.f32 %v113, %v199
    %v201 = vpop.f32.mrb[0].mxu0
    %v202 = vadd.f32 %v109, %v201
    %v203 = vpop.f32.mrb[0].mxu0
    %v204 = vadd.f32 %v113, %v203
    %205 = vdwg.mxu0
    %v206 = vmax.f32 %v188, 0.0
    %v207 = vmax.f32 %v190, 0.0
    %v208 = vmax.f32 %v192, 0.0
    %v209 = vmax.f32 %v194, 0.0
    %v210 = vmax.f32 %v198, 0.0
    %v211 = vmax.f32 %v200, 0.0
    %v212 = vmax.f32 %v202, 0.0
    %v213 = vmax.f32 %v204, 0.0
    %v214 = vld [vmem:[#allocation9] sm:$0xff]
    %v215 = vld [vmem:[#allocation9 + $0x8] sm:$0xff]
    %v216 = vld [vmem:[#allocation9 + $0x10] sm:$0xff]
    %v217 = vld [vmem:[#allocation9 + $0x18] sm:$0xff]
    %v218 = vld [vmem:[%s5] sm:$0x3]
    %v220 = vlaneseq
    %v221 = vshrl.u32 %v220, 7
    %v222 = vsub.s32 0, %v221
    %v223 = vrot.slane %v218, %v222
    %v224 = vlaneseq
    %v225 = vshrl.u32 %v224, 7
    %v226 = vsub.s32 1, %v225
    %v227 = vrot.slane %v218, %v226
    %v232 = vunpack.c.l.b16 %v98
    %v233 = vunpack.c.l.b16 %v99
    %v234 = vpack.c.b16 %v233, %v232
    %v239 = vunpack.c.l.b16 %v214
    %v240 = vunpack.c.h.b16 %v214
    %v241 = vunpack.c.l.b16 %v215
    %v242 = vunpack.c.h.b16 %v215
    %v243 = vunpack.c.l.b16 %v216
    %v244 = vunpack.c.h.b16 %v216
    %v245 = vunpack.c.l.b16 %v217
    %v246 = vunpack.c.h.b16 %v217
    %v247 = vpack.c.b16 %v241, %v239
    %v248 = vpack.c.b16 %v242, %v240
    %v249 = vpack.c.b16 %v245, %v243
    %v250 = vpack.c.b16 %v246, %v244
    %v256 = vsel %vm146, %v234, 0
    %258 = vmatprep.subr.bf16.mxu0 %v248
    %259 = vmatpush1.bf16.msra.mxu0 %v247
    %260 = vmatprep.subr.bf16.mxu0 %v250
    %261 = vmatpush1.bf16.msra.mxu0 %v249
    %262 = vmatprep.subr.bf16.mxu0 0
    %263 = vmatpush1.bf16.msra.mxu0 0
    %264 = vmatprep.subr.bf16.mxu0 0
    %265 = vmatpush1.bf16.msra.mxu0 0
    %266 = vmatprep.subr.bf16.mxu0 0
    %267 = vmatpush1.bf16.msra.mxu0 0
    %268 = vmatprep.subr.bf16.mxu0 0
    %269 = vmatpush1.bf16.msra.mxu0 0
    %270 = vmatprep.subr.bf16.mxu0 0
    %271 = vmatpush1.bf16.msra.mxu0 0
    %272 = vmatprep.subr.bf16.mxu0 0
    %273 = vmatpush1.bf16.msra.mxu0 0
    %274 = vmatprep.subr.bf16.mxu0 0
    %275 = vmatpush1.bf16.msra.mxu0 0
    %276 = vmatprep.subr.bf16.mxu0 0
    %277 = vmatpush1.bf16.msra.mxu0 0
    %278 = vmatprep.subr.bf16.mxu0 0
    %279 = vmatpush1.bf16.msra.mxu0 0
    %280 = vmatprep.subr.bf16.mxu0 0
    %281 = vmatpush1.bf16.msra.mxu0 0
    %282 = vmatprep.subr.bf16.mxu0 0
    %283 = vmatpush1.bf16.msra.mxu0 0
    %284 = vmatprep.subr.bf16.mxu0 0
    %285 = vmatpush1.bf16.msra.mxu0 0
    %286 = vmatprep.subr.bf16.mxu0 0
    %287 = vmatpush1.bf16.msra.mxu0 0
    %288 = vmatprep.subr.bf16.mxu0 0
    %289 = vmatpush1.bf16.msra.mxu0 0
    %290 = vmatprep.mubr.bf16.mxu0 0
    %291 = vmatmul.mubr.bf16.gmra.mrb[0].mxu0 %v256
    %v292 = vpop.f32.mrb[0].mxu0
    %v293 = vadd.f32 %v223, %v292
    %v294 = vpop.f32.mrb[0].mxu0
    %v295 = vadd.f32 %v227, %v294
    %v296 = vpop.f32.mrb[0].mxu0
    %v297 = vadd.f32 %v223, %v296
    %v298 = vpop.f32.mrb[0].mxu0
    %v299 = vadd.f32 %v227, %v298
    %300 = vdwg.mxu0
    %v301 = vmax.f32 %v293, 0.0
    %v302 = vmax.f32 %v295, 0.0
    %v303 = vmax.f32 %v297, 0.0
    %v304 = vmax.f32 %v299, 0.0
    %v305 = vpack.c.bf16 %v208, %v206
    %v306 = vpack.c.bf16 %v209, %v207
    %v307 = vpack.c.bf16 %v212, %v210
    %v308 = vpack.c.bf16 %v213, %v211
    %v313 = vcombine.low %v305, %v306
    %v314 = vcombine.high %v305, %v306
    %v316 = vunpack.c.l.s4 1966171168
    %v317 = vunpack.c.0.s8 %v316
    %v318 = vlaneseq
    %v319 = vshrl.u32 %v318, 7
    %v320 = vsub.s32 %v317, %v319
    %v321 = vrot.slane %v313, %v320
    %v323 = vunpack.c.l.s4 1966171168
    %v324 = vunpack.c.0.s8 %v323
    %v325 = vlaneseq
    %v326 = vshrl.u32 %v325, 7
    %v327 = vsub.s32 %v324, %v326
    %v328 = vrot.slane %v314, %v327
    %v329 = vcombine.high %v321, %v321
    %v330 = vcombine.high %v328, %v328
    %v332 = vunpack.c.l.s4 1966171168
    %v333 = vunpack.c.0.s8 %v332
    %v334 = vlaneseq
    %v335 = vshrl.u32 %v334, 7
    %v336 = vsub.s32 %v333, %v335
    %v337 = vrot.slane %v321, %v336
    %v339 = vunpack.c.l.s4 1966171168
    %v340 = vunpack.c.0.s8 %v339
    %v341 = vlaneseq
    %v342 = vshrl.u32 %v341, 7
    %v343 = vsub.s32 %v340, %v342
    %v344 = vrot.slane %v328, %v343
    %v346 = vunpack.c.l.s4 1966171168
    %v347 = vunpack.c.0.s8 %v346
    %v348 = vlaneseq
    %v349 = vshrl.u32 %v348, 7
    %v350 = vsub.s32 %v347, %v349
    %v351 = vrot.slane %v329, %v350
    %v353 = vunpack.c.l.s4 1966171168
    %v354 = vunpack.c.0.s8 %v353
    %v355 = vlaneseq
    %v356 = vshrl.u32 %v355, 7
    %v357 = vsub.s32 %v354, %v356
    %v358 = vrot.slane %v330, %v357
    %v359 = vcombine.high %v337, %v337
    %v360 = vcombine.high %v344, %v344
    %v361 = vcombine.high %v351, %v351
    %v362 = vcombine.high %v358, %v358
    %v363 = vcombine.low %v307, %v308
    %v364 = vcombine.high %v307, %v308
    %v366 = vunpack.c.l.s4 1966171168
    %v367 = vunpack.c.0.s8 %v366
    %v368 = vlaneseq
    %v369 = vshrl.u32 %v368, 7
    %v370 = vsub.s32 %v367, %v369
    %v371 = vrot.slane %v363, %v370
    %v373 = vunpack.c.l.s4 1966171168
    %v374 = vunpack.c.0.s8 %v373
    %v375 = vlaneseq
    %v376 = vshrl.u32 %v375, 7
    %v377 = vsub.s32 %v374, %v376
    %v378 = vrot.slane %v364, %v377
    %v379 = vcombine.high %v371, %v371
    %v380 = vcombine.high %v378, %v378
    %v382 = vunpack.c.l.s4 1966171168
    %v383 = vunpack.c.0.s8 %v382
    %v384 = vlaneseq
    %v385 = vshrl.u32 %v384, 7
    %v386 = vsub.s32 %v383, %v385
    %v387 = vrot.slane %v371, %v386
    %v389 = vunpack.c.l.s4 1966171168
    %v390 = vunpack.c.0.s8 %v389
    %v391 = vlaneseq
    %v392 = vshrl.u32 %v391, 7
    %v393 = vsub.s32 %v390, %v392
    %v394 = vrot.slane %v378, %v393
    %v396 = vunpack.c.l.s4 1966171168
    %v397 = vunpack.c.0.s8 %v396
    %v398 = vlaneseq
    %v399 = vshrl.u32 %v398, 7
    %v400 = vsub.s32 %v397, %v399
    %v401 = vrot.slane %v379, %v400
    %v403 = vunpack.c.l.s4 1966171168
    %v404 = vunpack.c.0.s8 %v403
    %v405 = vlaneseq
    %v406 = vshrl.u32 %v405, 7
    %v407 = vsub.s32 %v404, %v406
    %v408 = vrot.slane %v380, %v407
    %v409 = vcombine.high %v387, %v387
    %v410 = vcombine.high %v394, %v394
    %v411 = vcombine.high %v401, %v401
    %v412 = vcombine.high %v408, %v408
    %v413 = vunpack.i.l.s16 %v337
    %v414 = vunpack.i.h.s16 %v337
    %v415 = vunpack.i.l.s16 %v351
    %v416 = vunpack.i.h.s16 %v351
    %v417 = vunpack.i.l.s16 %v359
    %v418 = vunpack.i.h.s16 %v359
    %v419 = vunpack.i.l.s16 %v361
    %v420 = vunpack.i.h.s16 %v361
    %v421 = vunpack.i.l.s16 %v344
    %v422 = vunpack.i.h.s16 %v344
    %v423 = vunpack.i.l.s16 %v358
    %v424 = vunpack.i.h.s16 %v358
    %v425 = vunpack.i.l.s16 %v360
    %v426 = vunpack.i.h.s16 %v360
    %v427 = vunpack.i.l.s16 %v362
    %v428 = vunpack.i.h.s16 %v362
    %v429 = vunpack.i.l.s16 %v387
    %v430 = vunpack.i.h.s16 %v387
    %v431 = vunpack.i.l.s16 %v401
    %v432 = vunpack.i.h.s16 %v401
    %v433 = vunpack.i.l.s16 %v409
    %v434 = vunpack.i.h.s16 %v409
    %v435 = vunpack.i.l.s16 %v411
    %v436 = vunpack.i.h.s16 %v411
    %v437 = vunpack.i.l.s16 %v394
    %v438 = vunpack.i.h.s16 %v394
    %v439 = vunpack.i.l.s16 %v408
    %v440 = vunpack.i.h.s16 %v408
    %v441 = vunpack.i.l.s16 %v410
    %v442 = vunpack.i.h.s16 %v410
    %v443 = vunpack.i.l.s16 %v412
    %v444 = vunpack.i.h.s16 %v412
    %v445 = vpack.c.bf16 %v303, %v301
    %v446 = vpack.c.bf16 %v304, %v302
    %v449 = vunpack.c.l.b16 %v445
    %v450 = vunpack.c.l.b16 %v446
    %v451 = vunpack.c.h.b16 %v445
    %v452 = vunpack.c.h.b16 %v446
    %v453 = vpack.i.b16 %v413, %v413
    %v454 = vpack.i.b16 %v414, %v414
    %v455 = vpack.i.b16 %v415, %v415
    %v456 = vpack.i.b16 %v416, %v416
    %v457 = vpack.i.b16 %v417, %v417
    %v458 = vpack.i.b16 %v418, %v418
    %v459 = vpack.i.b16 %v419, %v419
    %v460 = vpack.i.b16 %v420, %v420
    %v461 = vpack.i.b16 %v421, %v421
    %v462 = vpack.i.b16 %v422, %v422
    %v463 = vpack.i.b16 %v423, %v423
    %v464 = vpack.i.b16 %v424, %v424
    %v465 = vpack.i.b16 %v425, %v425
    %v466 = vpack.i.b16 %v426, %v426
    %v467 = vpack.i.b16 %v427, %v427
    %v468 = vpack.i.b16 %v428, %v428
    %v469 = vpack.i.b16 %v429, %v429
    %v470 = vpack.i.b16 %v430, %v430
    %v471 = vpack.i.b16 %v431, %v431
    %v472 = vpack.i.b16 %v432, %v432
    %v473 = vpack.i.b16 %v433, %v433
    %v474 = vpack.i.b16 %v434, %v434
    %v475 = vpack.i.b16 %v435, %v435
    %v476 = vpack.i.b16 %v436, %v436
    %v477 = vpack.i.b16 %v437, %v437
    %v478 = vpack.i.b16 %v438, %v438
    %v479 = vpack.i.b16 %v439, %v439
    %v480 = vpack.i.b16 %v440, %v440
    %v481 = vpack.i.b16 %v441, %v441
    %v482 = vpack.i.b16 %v442, %v442
    %v483 = vpack.i.b16 %v443, %v443
    %v484 = vpack.i.b16 %v444, %v444
    %v485 = vlaneseq
    %v486 = vshrl.u32 %v485, 7
    %v487 = vsub.s32 0, %v486
    %v488 = vrot.slane %v453, %v487
    %v489 = vlaneseq
    %v490 = vshrl.u32 %v489, 7
    %v491 = vsub.s32 1, %v490
    %v492 = vrot.slane %v453, %v491
    %v493 = vlaneseq
    %v494 = vshrl.u32 %v493, 7
    %v495 = vsub.s32 0, %v494
    %v496 = vrot.slane %v454, %v495
    %v497 = vlaneseq
    %v498 = vshrl.u32 %v497, 7
    %v499 = vsub.s32 1, %v498
    %v500 = vrot.slane %v454, %v499
    %v501 = vlaneseq
    %v502 = vshrl.u32 %v501, 7
    %v503 = vsub.s32 0, %v502
    %v504 = vrot.slane %v455, %v503
    %v505 = vlaneseq
    %v506 = vshrl.u32 %v505, 7
    %v507 = vsub.s32 1, %v506
    %v508 = vrot.slane %v455, %v507
    %v509 = vlaneseq
    %v510 = vshrl.u32 %v509, 7
    %v511 = vsub.s32 0, %v510
    %v512 = vrot.slane %v456, %v511
    %v513 = vlaneseq
    %v514 = vshrl.u32 %v513, 7
    %v515 = vsub.s32 1, %v514
    %v516 = vrot.slane %v456, %v515
    %v517 = vlaneseq
    %v518 = vshrl.u32 %v517, 7
    %v519 = vsub.s32 0, %v518
    %v520 = vrot.slane %v457, %v519
    %v521 = vlaneseq
    %v522 = vshrl.u32 %v521, 7
    %v523 = vsub.s32 1, %v522
    %v524 = vrot.slane %v457, %v523
    %v525 = vlaneseq
    %v526 = vshrl.u32 %v525, 7
    %v527 = vsub.s32 0, %v526
    %v528 = vrot.slane %v458, %v527
    %v529 = vlaneseq
    %v530 = vshrl.u32 %v529, 7
    %v531 = vsub.s32 1, %v530
    %v532 = vrot.slane %v458, %v531
    %v533 = vlaneseq
    %v534 = vshrl.u32 %v533, 7
    %v535 = vsub.s32 0, %v534
    %v536 = vrot.slane %v459, %v535
    %v537 = vlaneseq
    %v538 = vshrl.u32 %v537, 7
    %v539 = vsub.s32 1, %v538
    %v540 = vrot.slane %v459, %v539
    %v541 = vlaneseq
    %v542 = vshrl.u32 %v541, 7
    %v543 = vsub.s32 0, %v542
    %v544 = vrot.slane %v460, %v543
    %v545 = vlaneseq
    %v546 = vshrl.u32 %v545, 7
    %v547 = vsub.s32 1, %v546
    %v548 = vrot.slane %v460, %v547
    %v549 = vlaneseq
    %v550 = vshrl.u32 %v549, 7
    %v551 = vsub.s32 0, %v550
    %v552 = vrot.slane %v461, %v551
    %v553 = vlaneseq
    %v554 = vshrl.u32 %v553, 7
    %v555 = vsub.s32 1, %v554
    %v556 = vrot.slane %v461, %v555
    %v557 = vlaneseq
    %v558 = vshrl.u32 %v557, 7
    %v559 = vsub.s32 0, %v558
    %v560 = vrot.slane %v462, %v559
    %v561 = vlaneseq
    %v562 = vshrl.u32 %v561, 7
    %v563 = vsub.s32 1, %v562
    %v564 = vrot.slane %v462, %v563
    %v565 = vlaneseq
    %v566 = vshrl.u32 %v565, 7
    %v567 = vsub.s32 0, %v566
    %v568 = vrot.slane %v463, %v567
    %v569 = vlaneseq
    %v570 = vshrl.u32 %v569, 7
    %v571 = vsub.s32 1, %v570
    %v572 = vrot.slane %v463, %v571
    %v573 = vlaneseq
    %v574 = vshrl.u32 %v573, 7
    %v575 = vsub.s32 0, %v574
    %v576 = vrot.slane %v464, %v575
    %v577 = vlaneseq
    %v578 = vshrl.u32 %v577, 7
    %v579 = vsub.s32 1, %v578
    %v580 = vrot.slane %v464, %v579
    %v581 = vlaneseq
    %v582 = vshrl.u32 %v581, 7
    %v583 = vsub.s32 0, %v582
    %v584 = vrot.slane %v465, %v583
    %v585 = vlaneseq
    %v586 = vshrl.u32 %v585, 7
    %v587 = vsub.s32 1, %v586
    %v588 = vrot.slane %v465, %v587
    %v589 = vlaneseq
    %v590 = vshrl.u32 %v589, 7
    %v591 = vsub.s32 0, %v590
    %v592 = vrot.slane %v466, %v591
    %v593 = vlaneseq
    %v594 = vshrl.u32 %v593, 7
    %v595 = vsub.s32 1, %v594
    %v596 = vrot.slane %v466, %v595
    %v597 = vlaneseq
    %v598 = vshrl.u32 %v597, 7
    %v599 = vsub.s32 0, %v598
    %v600 = vrot.slane %v467, %v599
    %v601 = vlaneseq
    %v602 = vshrl.u32 %v601, 7
    %v603 = vsub.s32 1, %v602
    %v604 = vrot.slane %v467, %v603
    %v605 = vlaneseq
    %v606 = vshrl.u32 %v605, 7
    %v607 = vsub.s32 0, %v606
    %v608 = vrot.slane %v468, %v607
    %v609 = vlaneseq
    %v610 = vshrl.u32 %v609, 7
    %v611 = vsub.s32 1, %v610
    %v612 = vrot.slane %v468, %v611
    %v613 = vlaneseq
    %v614 = vshrl.u32 %v613, 7
    %v615 = vsub.s32 0, %v614
    %v616 = vrot.slane %v469, %v615
    %v617 = vlaneseq
    %v618 = vshrl.u32 %v617, 7
    %v619 = vsub.s32 1, %v618
    %v620 = vrot.slane %v469, %v619
    %v621 = vlaneseq
    %v622 = vshrl.u32 %v621, 7
    %v623 = vsub.s32 0, %v622
    %v624 = vrot.slane %v470, %v623
    %v625 = vlaneseq
    %v626 = vshrl.u32 %v625, 7
    %v627 = vsub.s32 1, %v626
    %v628 = vrot.slane %v470, %v627
    %v629 = vlaneseq
    %v630 = vshrl.u32 %v629, 7
    %v631 = vsub.s32 0, %v630
    %v632 = vrot.slane %v471, %v631
    %v633 = vlaneseq
    %v634 = vshrl.u32 %v633, 7
    %v635 = vsub.s32 1, %v634
    %v636 = vrot.slane %v471, %v635
    %v637 = vlaneseq
    %v638 = vshrl.u32 %v637, 7
    %v639 = vsub.s32 0, %v638
    %v640 = vrot.slane %v472, %v639
    %v641 = vlaneseq
    %v642 = vshrl.u32 %v641, 7
    %v643 = vsub.s32 1, %v642
    %v644 = vrot.slane %v472, %v643
    %v645 = vlaneseq
    %v646 = vshrl.u32 %v645, 7
    %v647 = vsub.s32 0, %v646
    %v648 = vrot.slane %v473, %v647
    %v649 = vlaneseq
    %v650 = vshrl.u32 %v649, 7
    %v651 = vsub.s32 1, %v650
    %v652 = vrot.slane %v473, %v651
    %v653 = vlaneseq
    %v654 = vshrl.u32 %v653, 7
    %v655 = vsub.s32 0, %v654
    %v656 = vrot.slane %v474, %v655
    %v657 = vlaneseq
    %v658 = vshrl.u32 %v657, 7
    %v659 = vsub.s32 1, %v658
    %v660 = vrot.slane %v474, %v659
    %v661 = vlaneseq
    %v662 = vshrl.u32 %v661, 7
    %v663 = vsub.s32 0, %v662
    %v664 = vrot.slane %v475, %v663
    %v665 = vlaneseq
    %v666 = vshrl.u32 %v665, 7
    %v667 = vsub.s32 1, %v666
    %v668 = vrot.slane %v475, %v667
    %v669 = vlaneseq
    %v670 = vshrl.u32 %v669, 7
    %v671 = vsub.s32 0, %v670
    %v672 = vrot.slane %v476, %v671
    %v673 = vlaneseq
    %v674 = vshrl.u32 %v673, 7
    %v675 = vsub.s32 1, %v674
    %v676 = vrot.slane %v476, %v675
    %v677 = vlaneseq
    %v678 = vshrl.u32 %v677, 7
    %v679 = vsub.s32 0, %v678
    %v680 = vrot.slane %v477, %v679
    %v681 = vlaneseq
    %v682 = vshrl.u32 %v681, 7
    %v683 = vsub.s32 1, %v682
    %v684 = vrot.slane %v477, %v683
    %v685 = vlaneseq
    %v686 = vshrl.u32 %v685, 7
    %v687 = vsub.s32 0, %v686
    %v688 = vrot.slane %v478, %v687
    %v689 = vlaneseq
    %v690 = vshrl.u32 %v689, 7
    %v691 = vsub.s32 1, %v690
    %v692 = vrot.slane %v478, %v691
    %v693 = vlaneseq
    %v694 = vshrl.u32 %v693, 7
    %v695 = vsub.s32 0, %v694
    %v696 = vrot.slane %v479, %v695
    %v697 = vlaneseq
    %v698 = vshrl.u32 %v697, 7
    %v699 = vsub.s32 1, %v698
    %v700 = vrot.slane %v479, %v699
    %v701 = vlaneseq
    %v702 = vshrl.u32 %v701, 7
    %v703 = vsub.s32 0, %v702
    %v704 = vrot.slane %v480, %v703
    %v705 = vlaneseq
    %v706 = vshrl.u32 %v705, 7
    %v707 = vsub.s32 1, %v706
    %v708 = vrot.slane %v480, %v707
    %v709 = vlaneseq
    %v710 = vshrl.u32 %v709, 7
    %v711 = vsub.s32 0, %v710
    %v712 = vrot.slane %v481, %v711
    %v713 = vlaneseq
    %v714 = vshrl.u32 %v713, 7
    %v715 = vsub.s32 1, %v714
    %v716 = vrot.slane %v481, %v715
    %v717 = vlaneseq
    %v718 = vshrl.u32 %v717, 7
    %v719 = vsub.s32 0, %v718
    %v720 = vrot.slane %v482, %v719
    %v721 = vlaneseq
    %v722 = vshrl.u32 %v721, 7
    %v723 = vsub.s32 1, %v722
    %v724 = vrot.slane %v482, %v723
    %v725 = vlaneseq
    %v726 = vshrl.u32 %v725, 7
    %v727 = vsub.s32 0, %v726
    %v728 = vrot.slane %v483, %v727
    %v729 = vlaneseq
    %v730 = vshrl.u32 %v729, 7
    %v731 = vsub.s32 1, %v730
    %v732 = vrot.slane %v483, %v731
    %v733 = vlaneseq
    %v734 = vshrl.u32 %v733, 7
    %v735 = vsub.s32 0, %v734
    %v736 = vrot.slane %v484, %v735
    %v737 = vlaneseq
    %v738 = vshrl.u32 %v737, 7
    %v739 = vsub.s32 1, %v738
    %v740 = vrot.slane %v484, %v739
    %v742 = vpack.i.b16 %v488, %v488
    %v744 = vlaneseq
    %v745 = vshrl.u32 %v744, 7
    %v746 = vsub.s32 0, %v745
    %v747 = vrot.slane %v742, %v746
    %v749 = vpack.i.b16 %v492, %v492
    %v751 = vlaneseq
    %v752 = vshrl.u32 %v751, 7
    %v753 = vsub.s32 0, %v752
    %v754 = vrot.slane %v749, %v753
    %v756 = vpack.i.b16 %v496, %v496
    %v758 = vlaneseq
    %v759 = vshrl.u32 %v758, 7
    %v760 = vsub.s32 0, %v759
    %v761 = vrot.slane %v756, %v760
    %v763 = vpack.i.b16 %v500, %v500
    %v765 = vlaneseq
    %v766 = vshrl.u32 %v765, 7
    %v767 = vsub.s32 0, %v766
    %v768 = vrot.slane %v763, %v767
    %v770 = vpack.i.b16 %v504, %v504
    %v772 = vlaneseq
    %v773 = vshrl.u32 %v772, 7
    %v774 = vsub.s32 0, %v773
    %v775 = vrot.slane %v770, %v774
    %v777 = vpack.i.b16 %v508, %v508
    %v779 = vlaneseq
    %v780 = vshrl.u32 %v779, 7
    %v781 = vsub.s32 0, %v780
    %v782 = vrot.slane %v777, %v781
    %v784 = vpack.i.b16 %v512, %v512
    %v786 = vlaneseq
    %v787 = vshrl.u32 %v786, 7
    %v788 = vsub.s32 0, %v787
    %v789 = vrot.slane %v784, %v788
    %v791 = vpack.i.b16 %v516, %v516
    %v793 = vlaneseq
    %v794 = vshrl.u32 %v793, 7
    %v795 = vsub.s32 0, %v794
    %v796 = vrot.slane %v791, %v795
    %v798 = vpack.i.b16 %v520, %v520
    %v800 = vlaneseq
    %v801 = vshrl.u32 %v800, 7
    %v802 = vsub.s32 0, %v801
    %v803 = vrot.slane %v798, %v802
    %v805 = vpack.i.b16 %v524, %v524
    %v807 = vlaneseq
    %v808 = vshrl.u32 %v807, 7
    %v809 = vsub.s32 0, %v808
    %v810 = vrot.slane %v805, %v809
    %v812 = vpack.i.b16 %v528, %v528
    %v814 = vlaneseq
    %v815 = vshrl.u32 %v814, 7
    %v816 = vsub.s32 0, %v815
    %v817 = vrot.slane %v812, %v816
    %v819 = vpack.i.b16 %v532, %v532
    %v821 = vlaneseq
    %v822 = vshrl.u32 %v821, 7
    %v823 = vsub.s32 0, %v822
    %v824 = vrot.slane %v819, %v823
    %v826 = vpack.i.b16 %v536, %v536
    %v828 = vlaneseq
    %v829 = vshrl.u32 %v828, 7
    %v830 = vsub.s32 0, %v829
    %v831 = vrot.slane %v826, %v830
    %v833 = vpack.i.b16 %v540, %v540
    %v835 = vlaneseq
    %v836 = vshrl.u32 %v835, 7
    %v837 = vsub.s32 0, %v836
    %v838 = vrot.slane %v833, %v837
    %v840 = vpack.i.b16 %v544, %v544
    %v842 = vlaneseq
    %v843 = vshrl.u32 %v842, 7
    %v844 = vsub.s32 0, %v843
    %v845 = vrot.slane %v840, %v844
    %v847 = vpack.i.b16 %v548, %v548
    %v849 = vlaneseq
    %v850 = vshrl.u32 %v849, 7
    %v851 = vsub.s32 0, %v850
    %v852 = vrot.slane %v847, %v851
    %v854 = vpack.i.b16 %v552, %v552
    %v856 = vlaneseq
    %v857 = vshrl.u32 %v856, 7
    %v858 = vsub.s32 0, %v857
    %v859 = vrot.slane %v854, %v858
    %v861 = vpack.i.b16 %v556, %v556
    %v863 = vlaneseq
    %v864 = vshrl.u32 %v863, 7
    %v865 = vsub.s32 0, %v864
    %v866 = vrot.slane %v861, %v865
    %v868 = vpack.i.b16 %v560, %v560
    %v870 = vlaneseq
    %v871 = vshrl.u32 %v870, 7
    %v872 = vsub.s32 0, %v871
    %v873 = vrot.slane %v868, %v872
    %v875 = vpack.i.b16 %v564, %v564
    %v877 = vlaneseq
    %v878 = vshrl.u32 %v877, 7
    %v879 = vsub.s32 0, %v878
    %v880 = vrot.slane %v875, %v879
    %v882 = vpack.i.b16 %v568, %v568
    %v884 = vlaneseq
    %v885 = vshrl.u32 %v884, 7
    %v886 = vsub.s32 0, %v885
    %v887 = vrot.slane %v882, %v886
    %v889 = vpack.i.b16 %v572, %v572
    %v891 = vlaneseq
    %v892 = vshrl.u32 %v891, 7
    %v893 = vsub.s32 0, %v892
    %v894 = vrot.slane %v889, %v893
    %v896 = vpack.i.b16 %v576, %v576
    %v898 = vlaneseq
    %v899 = vshrl.u32 %v898, 7
    %v900 = vsub.s32 0, %v899
    %v901 = vrot.slane %v896, %v900
    %v903 = vpack.i.b16 %v580, %v580
    %v905 = vlaneseq
    %v906 = vshrl.u32 %v905, 7
    %v907 = vsub.s32 0, %v906
    %v908 = vrot.slane %v903, %v907
    %v910 = vpack.i.b16 %v584, %v584
    %v912 = vlaneseq
    %v913 = vshrl.u32 %v912, 7
    %v914 = vsub.s32 0, %v913
    %v915 = vrot.slane %v910, %v914
    %v917 = vpack.i.b16 %v588, %v588
    %v919 = vlaneseq
    %v920 = vshrl.u32 %v919, 7
    %v921 = vsub.s32 0, %v920
    %v922 = vrot.slane %v917, %v921
    %v924 = vpack.i.b16 %v592, %v592
    %v926 = vlaneseq
    %v927 = vshrl.u32 %v926, 7
    %v928 = vsub.s32 0, %v927
    %v929 = vrot.slane %v924, %v928
    %v931 = vpack.i.b16 %v596, %v596
    %v933 = vlaneseq
    %v934 = vshrl.u32 %v933, 7
    %v935 = vsub.s32 0, %v934
    %v936 = vrot.slane %v931, %v935
    %v938 = vpack.i.b16 %v600, %v600
    %v940 = vlaneseq
    %v941 = vshrl.u32 %v940, 7
    %v942 = vsub.s32 0, %v941
    %v943 = vrot.slane %v938, %v942
    %v945 = vpack.i.b16 %v604, %v604
    %v947 = vlaneseq
    %v948 = vshrl.u32 %v947, 7
    %v949 = vsub.s32 0, %v948
    %v950 = vrot.slane %v945, %v949
    %v952 = vpack.i.b16 %v608, %v608
    %v954 = vlaneseq
    %v955 = vshrl.u32 %v954, 7
    %v956 = vsub.s32 0, %v955
    %v957 = vrot.slane %v952, %v956
    %v959 = vpack.i.b16 %v612, %v612
    %v961 = vlaneseq
    %v962 = vshrl.u32 %v961, 7
    %v963 = vsub.s32 0, %v962
    %v964 = vrot.slane %v959, %v963
    %v966 = vpack.i.b16 %v616, %v616
    %v968 = vlaneseq
    %v969 = vshrl.u32 %v968, 7
    %v970 = vsub.s32 0, %v969
    %v971 = vrot.slane %v966, %v970
    %v973 = vpack.i.b16 %v620, %v620
    %v975 = vlaneseq
    %v976 = vshrl.u32 %v975, 7
    %v977 = vsub.s32 0, %v976
    %v978 = vrot.slane %v973, %v977
    %v980 = vpack.i.b16 %v624, %v624
    %v982 = vlaneseq
    %v983 = vshrl.u32 %v982, 7
    %v984 = vsub.s32 0, %v983
    %v985 = vrot.slane %v980, %v984
    %v987 = vpack.i.b16 %v628, %v628
    %v989 = vlaneseq
    %v990 = vshrl.u32 %v989, 7
    %v991 = vsub.s32 0, %v990
    %v992 = vrot.slane %v987, %v991
    %v994 = vpack.i.b16 %v632, %v632
    %v996 = vlaneseq
    %v997 = vshrl.u32 %v996, 7
    %v998 = vsub.s32 0, %v997
    %v999 = vrot.slane %v994, %v998
    %v1001 = vpack.i.b16 %v636, %v636
    %v1003 = vlaneseq
    %v1004 = vshrl.u32 %v1003, 7
    %v1005 = vsub.s32 0, %v1004
    %v1006 = vrot.slane %v1001, %v1005
    %v1008 = vpack.i.b16 %v640, %v640
    %v1010 = vlaneseq
    %v1011 = vshrl.u32 %v1010, 7
    %v1012 = vsub.s32 0, %v1011
    %v1013 = vrot.slane %v1008, %v1012
    %v1015 = vpack.i.b16 %v644, %v644
    %v1017 = vlaneseq
    %v1018 = vshrl.u32 %v1017, 7
    %v1019 = vsub.s32 0, %v1018
    %v1020 = vrot.slane %v1015, %v1019
    %v1022 = vpack.i.b16 %v648, %v648
    %v1024 = vlaneseq
    %v1025 = vshrl.u32 %v1024, 7
    %v1026 = vsub.s32 0, %v1025
    %v1027 = vrot.slane %v1022, %v1026
    %v1029 = vpack.i.b16 %v652, %v652
    %v1031 = vlaneseq
    %v1032 = vshrl.u32 %v1031, 7
    %v1033 = vsub.s32 0, %v1032
    %v1034 = vrot.slane %v1029, %v1033
    %v1036 = vpack.i.b16 %v656, %v656
    %v1038 = vlaneseq
    %v1039 = vshrl.u32 %v1038, 7
    %v1040 = vsub.s32 0, %v1039
    %v1041 = vrot.slane %v1036, %v1040
    %v1043 = vpack.i.b16 %v660, %v660
    %v1045 = vlaneseq
    %v1046 = vshrl.u32 %v1045, 7
    %v1047 = vsub.s32 0, %v1046
    %v1048 = vrot.slane %v1043, %v1047
    %v1050 = vpack.i.b16 %v664, %v664
    %v1052 = vlaneseq
    %v1053 = vshrl.u32 %v1052, 7
    %v1054 = vsub.s32 0, %v1053
    %v1055 = vrot.slane %v1050, %v1054
    %v1057 = vpack.i.b16 %v668, %v668
    %v1059 = vlaneseq
    %v1060 = vshrl.u32 %v1059, 7
    %v1061 = vsub.s32 0, %v1060
    %v1062 = vrot.slane %v1057, %v1061
    %v1064 = vpack.i.b16 %v672, %v672
    %v1066 = vlaneseq
    %v1067 = vshrl.u32 %v1066, 7
    %v1068 = vsub.s32 0, %v1067
    %v1069 = vrot.slane %v1064, %v1068
    %v1071 = vpack.i.b16 %v676, %v676
    %v1073 = vlaneseq
    %v1074 = vshrl.u32 %v1073, 7
    %v1075 = vsub.s32 0, %v1074
    %v1076 = vrot.slane %v1071, %v1075
    %v1078 = vpack.i.b16 %v680, %v680
    %v1080 = vlaneseq
    %v1081 = vshrl.u32 %v1080, 7
    %v1082 = vsub.s32 0, %v1081
    %v1083 = vrot.slane %v1078, %v1082
    %v1085 = vpack.i.b16 %v684, %v684
    %v1087 = vlaneseq
    %v1088 = vshrl.u32 %v1087, 7
    %v1089 = vsub.s32 0, %v1088
    %v1090 = vrot.slane %v1085, %v1089
    %v1092 = vpack.i.b16 %v688, %v688
    %v1094 = vlaneseq
    %v1095 = vshrl.u32 %v1094, 7
    %v1096 = vsub.s32 0, %v1095
    %v1097 = vrot.slane %v1092, %v1096
    %v1099 = vpack.i.b16 %v692, %v692
    %v1101 = vlaneseq
    %v1102 = vshrl.u32 %v1101, 7
    %v1103 = vsub.s32 0, %v1102
    %v1104 = vrot.slane %v1099, %v1103
    %v1106 = vpack.i.b16 %v696, %v696
    %v1108 = vlaneseq
    %v1109 = vshrl.u32 %v1108, 7
    %v1110 = vsub.s32 0, %v1109
    %v1111 = vrot.slane %v1106, %v1110
    %v1113 = vpack.i.b16 %v700, %v700
    %v1115 = vlaneseq
    %v1116 = vshrl.u32 %v1115, 7
    %v1117 = vsub.s32 0, %v1116
    %v1118 = vrot.slane %v1113, %v1117
    %v1120 = vpack.i.b16 %v704, %v704
    %v1122 = vlaneseq
    %v1123 = vshrl.u32 %v1122, 7
    %v1124 = vsub.s32 0, %v1123
    %v1125 = vrot.slane %v1120, %v1124
    %v1127 = vpack.i.b16 %v708, %v708
    %v1129 = vlaneseq
    %v1130 = vshrl.u32 %v1129, 7
    %v1131 = vsub.s32 0, %v1130
    %v1132 = vrot.slane %v1127, %v1131
    %v1134 = vpack.i.b16 %v712, %v712
    %v1136 = vlaneseq
    %v1137 = vshrl.u32 %v1136, 7
    %v1138 = vsub.s32 0, %v1137
    %v1139 = vrot.slane %v1134, %v1138
    %v1141 = vpack.i.b16 %v716, %v716
    %v1143 = vlaneseq
    %v1144 = vshrl.u32 %v1143, 7
    %v1145 = vsub.s32 0, %v1144
    %v1146 = vrot.slane %v1141, %v1145
    %v1148 = vpack.i.b16 %v720, %v720
    %v1150 = vlaneseq
    %v1151 = vshrl.u32 %v1150, 7
    %v1152 = vsub.s32 0, %v1151
    %v1153 = vrot.slane %v1148, %v1152
    %v1155 = vpack.i.b16 %v724, %v724
    %v1157 = vlaneseq
    %v1158 = vshrl.u32 %v1157, 7
    %v1159 = vsub.s32 0, %v1158
    %v1160 = vrot.slane %v1155, %v1159
    %v1162 = vpack.i.b16 %v728, %v728
    %v1164 = vlaneseq
    %v1165 = vshrl.u32 %v1164, 7
    %v1166 = vsub.s32 0, %v1165
    %v1167 = vrot.slane %v1162, %v1166
    %v1169 = vpack.i.b16 %v732, %v732
    %v1171 = vlaneseq
    %v1172 = vshrl.u32 %v1171, 7
    %v1173 = vsub.s32 0, %v1172
    %v1174 = vrot.slane %v1169, %v1173
    %v1176 = vpack.i.b16 %v736, %v736
    %v1178 = vlaneseq
    %v1179 = vshrl.u32 %v1178, 7
    %v1180 = vsub.s32 0, %v1179
    %v1181 = vrot.slane %v1176, %v1180
    %v1183 = vpack.i.b16 %v740, %v740
    %v1185 = vlaneseq
    %v1186 = vshrl.u32 %v1185, 7
    %v1187 = vsub.s32 0, %v1186
    %v1188 = vrot.slane %v1183, %v1187
    %v1189 = vpack.c.b16 %v449, %v449
    %v1190 = vpack.c.b16 %v450, %v450
    %v1191 = vpack.c.b16 %v451, %v451
    %v1192 = vpack.c.b16 %v452, %v452
    %v1197 = vmul.bf16 %v747, %v1189
    %v1198 = vmul.bf16 %v754, %v1190
    %v1199 = vmul.bf16 %v761, %v1189
    %v1200 = vmul.bf16 %v768, %v1190
    %v1201 = vmul.bf16 %v775, %v1189
    %v1202 = vmul.bf16 %v782, %v1190
    %v1203 = vmul.bf16 %v789, %v1189
    %v1204 = vmul.bf16 %v796, %v1190
    %v1205 = vmul.bf16 %v803, %v1189
    %v1206 = vmul.bf16 %v810, %v1190
    %v1207 = vmul.bf16 %v817, %v1189
    %v1208 = vmul.bf16 %v824, %v1190
    %v1209 = vmul.bf16 %v831, %v1189
    %v1210 = vmul.bf16 %v838, %v1190
    %v1211 = vmul.bf16 %v845, %v1189
    %v1212 = vmul.bf16 %v852, %v1190
    %v1213 = vmul.bf16 %v859, %v1189
    %v1214 = vmul.bf16 %v866, %v1190
    %v1215 = vmul.bf16 %v873, %v1189
    %v1216 = vmul.bf16 %v880, %v1190
    %v1217 = vmul.bf16 %v887, %v1189
    %v1218 = vmul.bf16 %v894, %v1190
    %v1219 = vmul.bf16 %v901, %v1189
    %v1220 = vmul.bf16 %v908, %v1190
    %v1221 = vmul.bf16 %v915, %v1189
    %v1222 = vmul.bf16 %v922, %v1190
    %v1223 = vmul.bf16 %v929, %v1189
    %v1224 = vmul.bf16 %v936, %v1190
    %v1225 = vmul.bf16 %v943, %v1189
    %v1226 = vmul.bf16 %v950, %v1190
    %v1227 = vmul.bf16 %v957, %v1189
    %v1228 = vmul.bf16 %v964, %v1190
    %v1229 = vmul.bf16 %v971, %v1191
    %v1230 = vmul.bf16 %v978, %v1192
    %v1231 = vmul.bf16 %v985, %v1191
    %v1232 = vmul.bf16 %v992, %v1192
    %v1233 = vmul.bf16 %v999, %v1191
    %v1234 = vmul.bf16 %v1006, %v1192
    %v1235 = vmul.bf16 %v1013, %v1191
    %v1236 = vmul.bf16 %v1020, %v1192
    %v1237 = vmul.bf16 %v1027, %v1191
    %v1238 = vmul.bf16 %v1034, %v1192
    %v1239 = vmul.bf16 %v1041, %v1191
    %v1240 = vmul.bf16 %v1048, %v1192
    %v1241 = vmul.bf16 %v1055, %v1191
    %v1242 = vmul.bf16 %v1062, %v1192
    %v1243 = vmul.bf16 %v1069, %v1191
    %v1244 = vmul.bf16 %v1076, %v1192
    %v1245 = vmul.bf16 %v1083, %v1191
    %v1246 = vmul.bf16 %v1090, %v1192
    %v1247 = vmul.bf16 %v1097, %v1191
    %v1248 = vmul.bf16 %v1104, %v1192
    %v1249 = vmul.bf16 %v1111, %v1191
    %v1250 = vmul.bf16 %v1118, %v1192
    %v1251 = vmul.bf16 %v1125, %v1191
    %v1252 = vmul.bf16 %v1132, %v1192
    %v1253 = vmul.bf16 %v1139, %v1191
    %v1254 = vmul.bf16 %v1146, %v1192
    %v1255 = vmul.bf16 %v1153, %v1191
    %v1256 = vmul.bf16 %v1160, %v1192
    %v1257 = vmul.bf16 %v1167, %v1191
    %v1258 = vmul.bf16 %v1174, %v1192
    %v1259 = vmul.bf16 %v1181, %v1191
    %v1260 = vmul.bf16 %v1188, %v1192
    %v1325 = vunpack.c.l.b16 %v1197
    %v1326 = vunpack.c.l.b16 %v1198
    %v1327 = vunpack.c.l.b16 %v1199
    %v1328 = vunpack.c.l.b16 %v1200
    %v1329 = vunpack.c.l.b16 %v1201
    %v1330 = vunpack.c.l.b16 %v1202
    %v1331 = vunpack.c.l.b16 %v1203
    %v1332 = vunpack.c.l.b16 %v1204
    %v1333 = vunpack.c.l.b16 %v1205
    %v1334 = vunpack.c.l.b16 %v1206
    %v1335 = vunpack.c.l.b16 %v1207
    %v1336 = vunpack.c.l.b16 %v1208
    %v1337 = vunpack.c.l.b16 %v1209
    %v1338 = vunpack.c.l.b16 %v1210
    %v1339 = vunpack.c.l.b16 %v1211
    %v1340 = vunpack.c.l.b16 %v1212
    %v1341 = vunpack.c.l.b16 %v1213
    %v1342 = vunpack.c.l.b16 %v1214
    %v1343 = vunpack.c.l.b16 %v1215
    %v1344 = vunpack.c.l.b16 %v1216
    %v1345 = vunpack.c.l.b16 %v1217
    %v1346 = vunpack.c.l.b16 %v1218
    %v1347 = vunpack.c.l.b16 %v1219
    %v1348 = vunpack.c.l.b16 %v1220
    %v1349 = vunpack.c.l.b16 %v1221
    %v1350 = vunpack.c.l.b16 %v1222
    %v1351 = vunpack.c.l.b16 %v1223
    %v1352 = vunpack.c.l.b16 %v1224
    %v1353 = vunpack.c.l.b16 %v1225
    %v1354 = vunpack.c.l.b16 %v1226
    %v1355 = vunpack.c.l.b16 %v1227
    %v1356 = vunpack.c.l.b16 %v1228
    %v1357 = vunpack.c.l.b16 %v1229
    %v1358 = vunpack.c.l.b16 %v1230
    %v1359 = vunpack.c.l.b16 %v1231
    %v1360 = vunpack.c.l.b16 %v1232
    %v1361 = vunpack.c.l.b16 %v1233
    %v1362 = vunpack.c.l.b16 %v1234
    %v1363 = vunpack.c.l.b16 %v1235
    %v1364 = vunpack.c.l.b16 %v1236
    %v1365 = vunpack.c.l.b16 %v1237
    %v1366 = vunpack.c.l.b16 %v1238
    %v1367 = vunpack.c.l.b16 %v1239
    %v1368 = vunpack.c.l.b16 %v1240
    %v1369 = vunpack.c.l.b16 %v1241
    %v1370 = vunpack.c.l.b16 %v1242
    %v1371 = vunpack.c.l.b16 %v1243
    %v1372 = vunpack.c.l.b16 %v1244
    %v1373 = vunpack.c.l.b16 %v1245
    %v1374 = vunpack.c.l.b16 %v1246
    %v1375 = vunpack.c.l.b16 %v1247
    %v1376 = vunpack.c.l.b16 %v1248
    %v1377 = vunpack.c.l.b16 %v1249
    %v1378 = vunpack.c.l.b16 %v1250
    %v1379 = vunpack.c.l.b16 %v1251
    %v1380 = vunpack.c.l.b16 %v1252
    %v1381 = vunpack.c.l.b16 %v1253
    %v1382 = vunpack.c.l.b16 %v1254
    %v1383 = vunpack.c.l.b16 %v1255
    %v1384 = vunpack.c.l.b16 %v1256
    %v1385 = vunpack.c.l.b16 %v1257
    %v1386 = vunpack.c.l.b16 %v1258
    %v1387 = vunpack.c.l.b16 %v1259
    %v1388 = vunpack.c.l.b16 %v1260
    %v1389 = vld [vmem:[#allocation2] sm:$0xf]
    %v1390 = vld [vmem:[%s6] sm:$0x3]
    %v1393 = vunpack.c.l.s4 1966171168
    %v1394 = vunpack.c.0.s8 %v1393
    %v1395 = vlaneseq
    %v1396 = vshrl.u32 %v1395, 7
    %v1397 = vsub.s32 %v1394, %v1396
    %v1398 = vrot.slane %v1390, %v1397
    %v1399 = vcombine.high %v1398, %v1398
    %v1401 = vunpack.c.l.s4 1966171168
    %v1402 = vunpack.c.0.s8 %v1401
    %v1403 = vlaneseq
    %v1404 = vshrl.u32 %v1403, 7
    %v1405 = vsub.s32 %v1402, %v1404
    %v1406 = vrot.slane %v1398, %v1405
    %v1408 = vunpack.c.l.s4 1966171168
    %v1409 = vunpack.c.0.s8 %v1408
    %v1410 = vlaneseq
    %v1411 = vshrl.u32 %v1410, 7
    %v1412 = vsub.s32 %v1409, %v1411
    %v1413 = vrot.slane %v1399, %v1412
    %v1416 = vpack.c.b16 %v1327, %v1325
    %v1417 = vpack.c.b16 %v1328, %v1326
    %v1418 = vpack.c.b16 %v1331, %v1329
    %v1419 = vpack.c.b16 %v1332, %v1330
    %v1420 = vpack.c.b16 %v1335, %v1333
    %v1421 = vpack.c.b16 %v1336, %v1334
    %v1422 = vpack.c.b16 %v1339, %v1337
    %v1423 = vpack.c.b16 %v1340, %v1338
    %v1424 = vpack.c.b16 %v1343, %v1341
    %v1425 = vpack.c.b16 %v1344, %v1342
    %v1426 = vpack.c.b16 %v1347, %v1345
    %v1427 = vpack.c.b16 %v1348, %v1346
    %v1428 = vpack.c.b16 %v1351, %v1349
    %v1429 = vpack.c.b16 %v1352, %v1350
    %v1430 = vpack.c.b16 %v1355, %v1353
    %v1431 = vpack.c.b16 %v1356, %v1354
    %v1432 = vpack.c.b16 %v1359, %v1357
    %v1433 = vpack.c.b16 %v1360, %v1358
    %v1434 = vpack.c.b16 %v1363, %v1361
    %v1435 = vpack.c.b16 %v1364, %v1362
    %v1436 = vpack.c.b16 %v1367, %v1365
    %v1437 = vpack.c.b16 %v1368, %v1366
    %v1438 = vpack.c.b16 %v1371, %v1369
    %v1439 = vpack.c.b16 %v1372, %v1370
    %v1440 = vpack.c.b16 %v1375, %v1373
    %v1441 = vpack.c.b16 %v1376, %v1374
    %v1442 = vpack.c.b16 %v1379, %v1377
    %v1443 = vpack.c.b16 %v1380, %v1378
    %v1444 = vpack.c.b16 %v1383, %v1381
    %v1445 = vpack.c.b16 %v1384, %v1382
    %v1446 = vpack.c.b16 %v1387, %v1385
    %v1447 = vpack.c.b16 %v1388, %v1386
    %1480 = vmatprep.subr.bf16.mxu0 %v1417
    %1481 = vmatpush1.bf16.xpose.msra.mxu0 %v1416
    %1482 = vmatprep.subr.bf16.mxu0 %v1419
    %1483 = vmatpush1.bf16.xpose.msra.mxu0 %v1418
    %1484 = vmatprep.subr.bf16.mxu0 %v1421
    %1485 = vmatpush1.bf16.xpose.msra.mxu0 %v1420
    %1486 = vmatprep.subr.bf16.mxu0 %v1423
    %1487 = vmatpush1.bf16.xpose.msra.mxu0 %v1422
    %1488 = vmatprep.subr.bf16.mxu0 %v1425
    %1489 = vmatpush1.bf16.xpose.msra.mxu0 %v1424
    %1490 = vmatprep.subr.bf16.mxu0 %v1427
    %1491 = vmatpush1.bf16.xpose.msra.mxu0 %v1426
    %1492 = vmatprep.subr.bf16.mxu0 %v1429
    %1493 = vmatpush1.bf16.xpose.msra.mxu0 %v1428
    %1494 = vmatprep.subr.bf16.mxu0 %v1431
    %1495 = vmatpush1.bf16.xpose.msra.mxu0 %v1430
    %1496 = vmatprep.subr.bf16.mxu0 %v1433
    %1497 = vmatpush1.bf16.xpose.msra.mxu0 %v1432
    %1498 = vmatprep.subr.bf16.mxu0 %v1435
    %1499 = vmatpush1.bf16.xpose.msra.mxu0 %v1434
    %1500 = vmatprep.subr.bf16.mxu0 %v1437
    %1501 = vmatpush1.bf16.xpose.msra.mxu0 %v1436
    %1502 = vmatprep.subr.bf16.mxu0 %v1439
    %1503 = vmatpush1.bf16.xpose.msra.mxu0 %v1438
    %1504 = vmatprep.subr.bf16.mxu0 %v1441
    %1505 = vmatpush1.bf16.xpose.msra.mxu0 %v1440
    %1506 = vmatprep.subr.bf16.mxu0 %v1443
    %1507 = vmatpush1.bf16.xpose.msra.mxu0 %v1442
    %1508 = vmatprep.subr.bf16.mxu0 %v1445
    %1509 = vmatpush1.bf16.xpose.msra.mxu0 %v1444
    %1510 = vmatprep.subr.bf16.mxu0 %v1447
    %1511 = vmatpush1.bf16.xpose.msra.mxu0 %v1446
    %1512 = vmatprep.mubr.bf16.mxu0 %v1413
    %1513 = vmatmul.mubr.bf16.gmra.mrb[0].mxu0 %v1406
    %v1514 = vpop.f32.mrb[0].mxu0
    %v1515 = vadd.f32 0.0, %v1514
    %v1516 = vpop.f32.mrb[0].mxu0
    %v1517 = vadd.f32 0.0, %v1516
    %v1518 = vpop.f32.mrb[0].mxu0
    %v1519 = vpop.f32.mrb[0].mxu0
    %1520 = vdwg.mxu0
    %v1523 = vcombine.low %v1515, %v1517
    %v1525 = vunpack.c.l.s4 1983009808
    %v1526 = vunpack.c.0.s8 %v1525
    %v1527 = vlaneseq
    %v1528 = vshrl.u32 %v1527, 7
    %v1529 = vsub.s32 %v1526, %v1528
    %v1530 = vrot.slane %v1523, %v1529
    %v1532 = vadd.f32 %v1389, %v1530
    %1533 = vst [vmem:[#allocation2] sm:$0xf] %v1532
    // Predicated region
    $region54: #{tpu_custom_call.1} parent=1 // pred_check
      %p1534 = pneg %p89
    $region55: #{tpu_custom_call.1} parent=1 // pred_check_branch
      %1536 = sbr.rel (%p1534) target = $region57
    $region56: #{tpu_custom_call.1} parent=1 // pred_region
      %v1537 = vunpack.c.l.bf16 %v94
      %v1538 = vunpack.c.l.bf16 %v95
      %v1539 = vunpack.c.l.bf16 %v96
      %v1540 = vunpack.c.l.bf16 %v97
      %v1541 = vand.u32 2147483647, %v1537
      %v1542 = vand.u32 2147483647, %v1538
      %v1543 = vand.u32 2147483647, %v1539
      %v1544 = vand.u32 2147483647, %v1540
      %v1545 = vsel %vm146, %v1541, 0.0
      %1546 = vadd.xlane.f32.xlu0 %v1545
      %v1547 = vpop.xlane.xlu0 %1546
      %v1548 = vsel %vm146, %v1542, 0.0
      %1549 = vadd.xlane.f32.xlu0 %v1548
      %v1550 = vpop.xlane.xlu0 %1549
      %v1551 = vsel %vm146, %v1543, 0.0
      %1552 = vadd.xlane.f32.xlu0 %v1551
      %v1553 = vpop.xlane.xlu0 %1552
      %v1554 = vsel %vm146, %v1544, 0.0
      %1555 = vadd.xlane.f32.xlu0 %v1554
      %v1556 = vpop.xlane.xlu0 %1555
      %v1561 = vlaneseq
      %v1562 = vshrl.u32 %v1561, 7
      %v1563 = vsub.s32 0, %v1562
      %v1564 = vrot.slane %v1547, %v1563
      %v1565 = vlaneseq
      %v1566 = vshrl.u32 %v1565, 7
      %v1567 = vsub.s32 1, %v1566
      %v1568 = vrot.slane %v1547, %v1567
      %v1569 = vlaneseq
      %v1570 = vshrl.u32 %v1569, 7
      %v1571 = vsub.s32 2, %v1570
      %v1572 = vrot.slane %v1547, %v1571
      %v1573 = vlaneseq
      %v1574 = vshrl.u32 %v1573, 7
      %v1575 = vsub.s32 3, %v1574
      %v1576 = vrot.slane %v1547, %v1575
      %v1577 = vlaneseq
      %v1578 = vshrl.u32 %v1577, 7
      %v1579 = vsub.s32 4, %v1578
      %v1580 = vrot.slane %v1547, %v1579
      %v1581 = vlaneseq
      %v1582 = vshrl.u32 %v1581, 7
      %v1583 = vsub.s32 5, %v1582
      %v1584 = vrot.slane %v1547, %v1583
      %v1585 = vlaneseq
      %v1586 = vshrl.u32 %v1585, 7
      %v1587 = vsub.s32 6, %v1586
      %v1588 = vrot.slane %v1547, %v1587
      %v1589 = vlaneseq
      %v1590 = vshrl.u32 %v1589, 7
      %v1591 = vsub.s32 7, %v1590
      %v1592 = vrot.slane %v1547, %v1591
      %v1593 = vlaneseq
      %v1594 = vshrl.u32 %v1593, 7
      %v1595 = vsub.s32 0, %v1594
      %v1596 = vrot.slane %v1550, %v1595
      %v1597 = vlaneseq
      %v1598 = vshrl.u32 %v1597, 7
      %v1599 = vsub.s32 1, %v1598
      %v1600 = vrot.slane %v1550, %v1599
      %v1601 = vlaneseq
      %v1602 = vshrl.u32 %v1601, 7
      %v1603 = vsub.s32 2, %v1602
      %v1604 = vrot.slane %v1550, %v1603
      %v1605 = vlaneseq
      %v1606 = vshrl.u32 %v1605, 7
      %v1607 = vsub.s32 3, %v1606
      %v1608 = vrot.slane %v1550, %v1607
      %v1609 = vlaneseq
      %v1610 = vshrl.u32 %v1609, 7
      %v1611 = vsub.s32 4, %v1610
      %v1612 = vrot.slane %v1550, %v1611
      %v1613 = vlaneseq
      %v1614 = vshrl.u32 %v1613, 7
      %v1615 = vsub.s32 5, %v1614
      %v1616 = vrot.slane %v1550, %v1615
      %v1617 = vlaneseq
      %v1618 = vshrl.u32 %v1617, 7
      %v1619 = vsub.s32 6, %v1618
      %v1620 = vrot.slane %v1550, %v1619
      %v1621 = vlaneseq
      %v1622 = vshrl.u32 %v1621, 7
      %v1623 = vsub.s32 7, %v1622
      %v1624 = vrot.slane %v1550, %v1623
      %v1625 = vlaneseq
      %v1626 = vshrl.u32 %v1625, 7
      %v1627 = vsub.s32 0, %v1626
      %v1628 = vrot.slane %v1553, %v1627
      %v1629 = vlaneseq
      %v1630 = vshrl.u32 %v1629, 7
      %v1631 = vsub.s32 1, %v1630
      %v1632 = vrot.slane %v1553, %v1631
      %v1633 = vlaneseq
      %v1634 = vshrl.u32 %v1633, 7
      %v1635 = vsub.s32 2, %v1634
      %v1636 = vrot.slane %v1553, %v1635
      %v1637 = vlaneseq
      %v1638 = vshrl.u32 %v1637, 7
      %v1639 = vsub.s32 3, %v1638
      %v1640 = vrot.slane %v1553, %v1639
      %v1641 = vlaneseq
      %v1642 = vshrl.u32 %v1641, 7
      %v1643 = vsub.s32 4, %v1642
      %v1644 = vrot.slane %v1553, %v1643
      %v1645 = vlaneseq
      %v1646 = vshrl.u32 %v1645, 7
      %v1647 = vsub.s32 5, %v1646
      %v1648 = vrot.slane %v1553, %v1647
      %v1649 = vlaneseq
      %v1650 = vshrl.u32 %v1649, 7
      %v1651 = vsub.s32 6, %v1650
      %v1652 = vrot.slane %v1553, %v1651
      %v1653 = vlaneseq
      %v1654 = vshrl.u32 %v1653, 7
      %v1655 = vsub.s32 7, %v1654
      %v1656 = vrot.slane %v1553, %v1655
      %v1657 = vlaneseq
      %v1658 = vshrl.u32 %v1657, 7
      %v1659 = vsub.s32 0, %v1658
      %v1660 = vrot.slane %v1556, %v1659
      %v1661 = vlaneseq
      %v1662 = vshrl.u32 %v1661, 7
      %v1663 = vsub.s32 1, %v1662
      %v1664 = vrot.slane %v1556, %v1663
      %v1665 = vlaneseq
      %v1666 = vshrl.u32 %v1665, 7
      %v1667 = vsub.s32 2, %v1666
      %v1668 = vrot.slane %v1556, %v1667
      %v1669 = vlaneseq
      %v1670 = vshrl.u32 %v1669, 7
      %v1671 = vsub.s32 3, %v1670
      %v1672 = vrot.slane %v1556, %v1671
      %v1673 = vlaneseq
      %v1674 = vshrl.u32 %v1673, 7
      %v1675 = vsub.s32 4, %v1674
      %v1676 = vrot.slane %v1556, %v1675
      %v1677 = vlaneseq
      %v1678 = vshrl.u32 %v1677, 7
      %v1679 = vsub.s32 5, %v1678
      %v1680 = vrot.slane %v1556, %v1679
      %v1681 = vlaneseq
      %v1682 = vshrl.u32 %v1681, 7
      %v1683 = vsub.s32 6, %v1682
      %v1684 = vrot.slane %v1556, %v1683
      %v1685 = vlaneseq
      %v1686 = vshrl.u32 %v1685, 7
      %v1687 = vsub.s32 7, %v1686
      %v1688 = vrot.slane %v1556, %v1687
      %vm1689 = vcmask 64512
      %v1691 = vsel %vm1689, 1.0, 0
      %v1693 = vsel %vm1689, %v1564, 0
      %v1695 = vsel %vm1689, %v1568, 0
      %v1697 = vsel %vm1689, %v1572, 0
      %v1699 = vsel %vm1689, %v1576, 0
      %v1701 = vsel %vm1689, %v1580, 0
      %v1703 = vsel %vm1689, %v1584, 0
      %v1705 = vsel %vm1689, %v1588, 0
      %v1707 = vsel %vm1689, %v1592, 0
      %v1709 = vsel %vm1689, %v1596, 0
      %v1711 = vsel %vm1689, %v1600, 0
      %v1713 = vsel %vm1689, %v1604, 0
      %v1715 = vsel %vm1689, %v1608, 0
      %v1717 = vsel %vm1689, %v1612, 0
      %v1719 = vsel %vm1689, %v1616, 0
      %v1721 = vsel %vm1689, %v1620, 0
      %v1723 = vsel %vm1689, %v1624, 0
      %v1725 = vsel %vm1689, %v1628, 0
      %v1727 = vsel %vm1689, %v1632, 0
      %v1729 = vsel %vm1689, %v1636, 0
      %v1731 = vsel %vm1689, %v1640, 0
      %v1733 = vsel %vm1689, %v1644, 0
      %v1735 = vsel %vm1689, %v1648, 0
      %v1737 = vsel %vm1689, %v1652, 0
      %v1739 = vsel %vm1689, %v1656, 0
      %v1741 = vsel %vm1689, %v1660, 0
      %v1743 = vsel %vm1689, %v1664, 0
      %v1745 = vsel %vm1689, %v1668, 0
      %v1747 = vsel %vm1689, %v1672, 0
      %v1749 = vsel %vm1689, %v1676, 0
      %v1751 = vsel %vm1689, %v1680, 0
      %v1753 = vsel %vm1689, %v1684, 0
      %v1755 = vsel %vm1689, %v1688, 0
      %1757 = vmatprep.subr.mxu0 0.0
      %1758 = vmatpush1.xpose.msra.mxu0 %v1693
      %1759 = vmatprep.subr.mxu0 0.0
      %1760 = vmatpush1.xpose.msra.mxu0 %v1695
      %1761 = vmatprep.subr.mxu0 0.0
      %1762 = vmatpush1.xpose.msra.mxu0 %v1697
      %1763 = vmatprep.subr.mxu0 0.0
      %1764 = vmatpush1.xpose.msra.mxu0 %v1699
      %1765 = vmatprep.subr.mxu0 0.0
      %1766 = vmatpush1.xpose.msra.mxu0 %v1701
      %1767 = vmatprep.subr.mxu0 0.0
      %1768 = vmatpush1.xpose.msra.mxu0 %v1703
      %1769 = vmatprep.subr.mxu0 0.0
      %1770 = vmatpush1.xpose.msra.mxu0 %v1705
      %1771 = vmatprep.subr.mxu0 0.0
      %1772 = vmatpush1.xpose.msra.mxu0 %v1707
      %1773 = vmatprep.subr.mxu0 0.0
      %1774 = vmatpush1.xpose.msra.mxu0 %v1709
      %1775 = vmatprep.subr.mxu0 0.0
      %1776 = vmatpush1.xpose.msra.mxu0 %v1711
      %1777 = vmatprep.subr.mxu0 0.0
      %1778 = vmatpush1.xpose.msra.mxu0 %v1713
      %1779 = vmatprep.subr.mxu0 0.0
      %1780 = vmatpush1.xpose.msra.mxu0 %v1715
      %1781 = vmatprep.subr.mxu0 0.0
      %1782 = vmatpush1.xpose.msra.mxu0 %v1717
      %1783 = vmatprep.subr.mxu0 0.0
      %1784 = vmatpush1.xpose.msra.mxu0 %v1719
      %1785 = vmatprep.subr.mxu0 0.0
      %1786 = vmatpush1.xpose.msra.mxu0 %v1721
      %1787 = vmatprep.subr.mxu0 0.0
      %1788 = vmatpush1.xpose.msra.mxu0 %v1723
      %1789 = vmatprep.subr.mxu0 0.0
      %1790 = vmatpush1.xpose.msra.mxu0 %v1725
      %1791 = vmatprep.subr.mxu0 0.0
      %1792 = vmatpush1.xpose.msra.mxu0 %v1727
      %1793 = vmatprep.subr.mxu0 0.0
      %1794 = vmatpush1.xpose.msra.mxu0 %v1729
      %1795 = vmatprep.subr.mxu0 0.0
      %1796 = vmatpush1.xpose.msra.mxu0 %v1731
      %1797 = vmatprep.subr.mxu0 0.0
      %1798 = vmatpush1.xpose.msra.mxu0 %v1733
      %1799 = vmatprep.subr.mxu0 0.0
      %1800 = vmatpush1.xpose.msra.mxu0 %v1735
      %1801 = vmatprep.subr.mxu0 0.0
      %1802 = vmatpush1.xpose.msra.mxu0 %v1737
      %1803 = vmatprep.subr.mxu0 0.0
      %1804 = vmatpush1.xpose.msra.mxu0 %v1739
      %1805 = vmatprep.subr.mxu0 0.0
      %1806 = vmatpush1.xpose.msra.mxu0 %v1741
      %1807 = vmatprep.subr.mxu0 0.0
      %1808 = vmatpush1.xpose.msra.mxu0 %v1743
      %1809 = vmatprep.subr.mxu0 0.0
      %1810 = vmatpush1.xpose.msra.mxu0 %v1745
      %1811 = vmatprep.subr.mxu0 0.0
      %1812 = vmatpush1.xpose.msra.mxu0 %v1747
      %1813 = vmatprep.subr.mxu0 0.0
      %1814 = vmatpush1.xpose.msra.mxu0 %v1749
      %1815 = vmatprep.subr.mxu0 0.0
      %1816 = vmatpush1.xpose.msra.mxu0 %v1751
      %1817 = vmatprep.subr.mxu0 0.0
      %1818 = vmatpush1.xpose.msra.mxu0 %v1753
      %1819 = vmatprep.subr.mxu0 0.0
      %1820 = vmatpush1.xpose.msra.mxu0 %v1755
      %1821 = vmatprep.mubr.f32.mxu0 0.0
      %1822 = vmatmul.mubr.f32.gmra.mrb[0].mxu0 %v1691
      %v1823 = vpop.f32.mrb[0].mxu0
      %v1824 = vadd.f32 0.0, %v1823
      %v1825 = vpop.f32.mrb[0].mxu0
      %v1826 = vadd.f32 0.0, %v1825
      %1827 = vdwg.mxu0
      %vm1828 = vcmp.eq.f32.partialorder %v1824, 0.0
      %vm1829 = vcmp.eq.f32.partialorder %v1826, 0.0
      %v1830 = vld [vmem:[#allocation2] sm:$0xf]
      %v1831 = vld [vmem:[%s7] sm:$0x3]
      %1833 = vset.pattern.permute.xlu0 0
      %1834 = vperm.xlu0 %1833, %v1831
      %v1835 = vpop.permute.xlu0 %1834
      %v1837 = vunpack.c.l.s4 269488144
      %v1838 = vunpack.c.0.s8 %v1837
      %v1839 = vlaneseq
      %v1840 = vshrl.u32 %v1839, 7
      %v1841 = vsub.s32 %v1838, %v1840
      %v1842 = vrot.slane %v1835, %v1841
      %v1844 = vadd.f32 %v1830, %v1842
      %v1845 = vsel %vm1828, 1, 0
      %v1846 = vsel %vm1829, 1, 0
      %v1847 = vlaneseq
      %v1848 = vshrl.u32 %v1847, 7
      %v1849 = vsub.s32 0, %v1848
      %v1850 = vrot.slane %v1845, %v1849
      %v1851 = vlaneseq
      %v1852 = vshrl.u32 %v1851, 7
      %v1853 = vsub.s32 0, %v1852
      %v1854 = vrot.slane %v1846, %v1853
      %vm1855 = vcmp.eq.s32.totalorder %v1850, 1
      %vm1856 = vcmp.eq.s32.totalorder %v1854, 1
      %v1859 = vunpack.c.l.s4 1983009808
      %v1860 = vunpack.c.0.s8 %v1859
      %v1861 = vlaneseq
      %v1862 = vshrl.u32 %v1861, 7
      %v1863 = vsub.s32 %v1860, %v1862
      %v1864 = vrot.slane %v1844, %v1863
      %v1865 = vcombine.high %v1864, %v1864
      %v1868 = vsel %vm1855, -inf, %v1864
      %v1869 = vsel %vm1856, -inf, %v1865
      %v1872 = vcombine.low %v1868, %v1869
      %v1875 = vunpack.c.l.s4 1935823168
      %v1876 = vunpack.c.0.s8 %v1875
      %v1877 = vlaneseq
      %v1878 = vshrl.u32 %v1877, 7
      %v1879 = vsub.s32 %v1876, %v1878
      %v1880 = vrot.slane %v1872, %v1879
      %1881 = vst [vmem:[#allocation12] sm:$0xf] %v1880
      %vm1882 = vcmask 1043456
      %v1883 = vsel %vm1882, %v1880, -inf
      %1884 = vmax.xlane.f32.xlu0 %v1883
      %v1885 = vpop.xlane.xlu0 %1884
      %v1886 = vsub.f32 %v1880, %v1885
      %v1887 = vmul.f32 %v1886, 1.442695
      %v1888 = vpow.pop %v1887
      %v1889 = vsel %vm1882, %v1888, 0.0
      %1890 = vadd.xlane.f32.xlu0 %v1889
      %v1891 = vpop.xlane.xlu0 %1890
      %v1892 = vrcp.pop %v1891
      %v1893 = vmul.f32 %v1888, %v1892
      %1894 = vst [vmem:[#allocation11] sm:$0xf] %v1893
    $region57: #{tpu_custom_call.1} parent=1 // pred_fallthru
      _
    // Predicated region
    $region58: #{tpu_custom_call.1} parent=1 // pred_check
      _
    $region59: #{tpu_custom_call.1} parent=1 // pred_check_branch
      %1896 = sbr.rel (0) target = $region61
    $region60: #{tpu_custom_call.1} parent=1 // pred_region
      %s1898 = ssub.s32 64, 64
      %1899 = vsyncadd [#allocation5], %s1898
      %s1901 = sshll.u32 [#allocation11], 4
      %s1902 = int_to_ptr.vmem [resolvable:$true] %s1901
      %1904 = dma.vmem_to_hbm [thread:$0]  %s1902, 64, %s8, [#allocation5]
    $region61: #{tpu_custom_call.1} parent=1 // pred_fallthru
      _
    // Predicated region
    $region62: #{tpu_custom_call.1} parent=1 // pred_check
      _
    $region63: #{tpu_custom_call.1} parent=1 // pred_check_branch
      %1906 = sbr.rel (0) target = $region65
    $region64: #{tpu_custom_call.1} parent=1 // pred_region
      %s1908 = ssub.s32 64, 64
      %1909 = vsyncadd [#allocation13], %s1908
      %s1911 = sshll.u32 [#allocation12], 4
      %s1912 = int_to_ptr.vmem [resolvable:$true] %s1911
      %1914 = dma.vmem_to_hbm [thread:$0]  %s1912, 64, %s9, [#allocation13]
    $region65: #{tpu_custom_call.1} parent=1 // pred_fallthru
      _
    // Predicated region
    $region66: #{tpu_custom_call.1} parent=1 // pred_check
      _
    $region67: #{tpu_custom_call.1} parent=1 // pred_check_branch
      %1916 = sbr.rel (0) target = $region69
    $region68: #{tpu_custom_call.1} parent=1 // pred_region
      %1917 = dma.done [#allocation5], 64
    $region69: #{tpu_custom_call.1} parent=1 // pred_fallthru
      _
    // Predicated region
    $region70: #{tpu_custom_call.1} parent=1 // pred_check
      _
    $region71: #{tpu_custom_call.1} parent=1 // pred_check_branch
      %1919 = sbr.rel (0) target = $region73
    $region72: #{tpu_custom_call.1} parent=1 // pred_region
      %1920 = dma.done [#allocation13], 64
    $region73: #{tpu_custom_call.1} parent=1 // pred_fallthru
      _
    %1921 = vsyncpa [#allocation4], 1
    %1922 = vsyncpa [#allocation7], 1
    %1923 = vsyncpa [#allocation10], 1
    %1924 = vsyncpa [#allocation5], 1
    %1925 = vsyncpa [#allocation13], 1

// kernel: tpu_custom_call.1
$region0: #{tpu_custom_call.1}
  #allocation0 [shape = 'u32[]', space=smem, size = 0x4, offset = 0x4, fixed_abs, tag = 'smem constant byte address 0x4 - core index']
  #allocation1 [shape = 'u32[144,128]{1,0:T(1,128)}', space=vmem, size = 0x12000, scoped, tag = 'internal scratch']
  #allocation2 [shape = 'f32[2,256]{1,0:T(2,128)}', space=vmem, size = 0x800, scoped, tag = 'scratch operand']
  %s0 = inlined_call_operand.hbm [shape: bf16[32,32], index: 0, kind: input, shape index: {}]
  %s1 = inlined_call_operand.hbm [shape: bf16[16,32], index: 1, kind: input, shape index: {}]
  %s2 = inlined_call_operand.hbm [shape: bf16[32,256], index: 2, kind: input, shape index: {}]
  %s3 = inlined_call_operand.vmem [shape: f32[1,256], index: 3, kind: input, shape index: {}]
  %s4 = inlined_call_operand.hbm [shape: bf16[32,256], index: 4, kind: input, shape index: {}]
  %s5 = inlined_call_operand.vmem [shape: f32[1,256], index: 5, kind: input, shape index: {}]
  %s6 = inlined_call_operand.vmem [shape: bf16[2,256], index: 6, kind: input, shape index: {}]
  %s7 = inlined_call_operand.vmem [shape: f32[2,1], index: 7, kind: input, shape index: {}]
  %s8 = inlined_call_operand.hbm [shape: f32[1,4,128], index: 8, kind: output, shape index: {0}]
  %s9 = inlined_call_operand.hbm [shape: f32[1,4,128], index: 9, kind: output, shape index: {1}]
  %10 = xla_tuple %s8, %s9
  %s11 = sld [smem:[#allocation0]]
  $region74: #{tpu_custom_call.1} parent=0
    _
  %s13 = ssub.s32 1, %s11
  %s14 = scalar_select 0, %s13, %s11
  $region1: #{tpu_custom_call.1} parent=0
    #allocation3 [shape = 'u8[8192]{0}', space=vmem, size = 0x2000, scoped, tag = 'input window, operand 0, single buffered']
    #allocation4 [shape = 's32[1]{0}', space=sflag, size = 0x4, scoped, tag = 'scoped memory for tpu_custom_call.1']
    #allocation5 [shape = 's32[1]{0}', space=sflag, size = 0x4, scoped, tag = 'scoped memory for tpu_custom_call.1']
    #allocation6 [shape = 'u8[4096]{0}', space=vmem, size = 0x1000, scoped, tag = 'input window, operand 1, single buffered']
    #allocation7 [shape = 's32[1]{0}', space=sflag, size = 0x4, scoped, tag = 'scoped memory for tpu_custom_call.1']
    #allocation8 [shape = 'u8[16384]{0}', space=vmem, size = 0x4000, scoped, tag = 'input window, operand 2, single buffered']
    #allocation9 [shape = 'u8[16384]{0}', space=vmem, size = 0x4000, scoped, tag = 'input window, operand 4, single buffered']
    #allocation10 [shape = 's32[1]{0}', space=sflag, size = 0x4, scoped, tag = 'scoped memory for tpu_custom_call.1']
    #allocation11 [shape = 'u8[2048]{0}', space=vmem, size = 0x800, scoped, tag = 'output window, operand 0, single buffered']
    #allocation12 [shape = 'u8[2048]{0}', space=vmem, size = 0x800, scoped, tag = 'output window, operand 1, single buffered']
    #allocation13 [shape = 's32[1]{0}', space=sflag, size = 0x4, scoped, tag = 'scoped memory for tpu_custom_call.1']
    %15 = vsyncpa [#allocation4], 0
    %16 = vsyncpa [#allocation7], 0
    %17 = vsyncpa [#allocation10], 0
    %18 = vsyncpa [#allocation5], 0
    %19 = vsyncpa [#allocation13], 0
    // Predicated region
    $region2: #{tpu_custom_call.1} parent=1 // pred_check
      _
    $region3: #{tpu_custom_call.1} parent=1 // pred_check_branch
      %21 = sbr.rel (0) target = $region5
    $region4: #{tpu_custom_call.1} parent=1 // pred_region
      %s23 = ssub.s32 256, 256
      %24 = vsyncadd [#allocation4], %s23
      %s25 = sshll.u32 [#allocation3], 4
      %s26 = int_to_ptr.vmem [resolvable:$true] %s25
      %31 = dma.hbm_to_vmem [thread:$0]  %s0, 256, %s26, [#allocation4], 64, 64, 4
    $region5: #{tpu_custom_call.1} parent=1 // pred_fallthru
      _
    // Predicated region
    $region6: #{tpu_custom_call.1} parent=1 // pred_check
      _
    $region7: #{tpu_custom_call.1} parent=1 // pred_check_branch
      %33 = sbr.rel (0) target = $region9
    $region8: #{tpu_custom_call.1} parent=1 // pred_region
      %s35 = ssub.s32 128, 128
      %36 = vsyncadd [#allocation7], %s35
      %s37 = sshll.u32 [#allocation6], 4
      %s38 = int_to_ptr.vmem [resolvable:$true] %s37
      %43 = dma.hbm_to_vmem [thread:$0]  %s1, 128, %s38, [#allocation7], 64, 64, 4
    $region9: #{tpu_custom_call.1} parent=1 // pred_fallthru
      _
    // Predicated region
    $region10: #{tpu_custom_call.1} parent=1 // pred_check
      _
    $region11: #{tpu_custom_call.1} parent=1 // pred_check_branch
      %45 = sbr.rel (0) target = $region13
    $region12: #{tpu_custom_call.1} parent=1 // pred_region
      %s47 = ssub.s32 512, 512
      %48 = vsyncadd [#allocation7], %s47
      %s49 = sshll.u32 [#allocation8], 4
      %s50 = int_to_ptr.vmem [resolvable:$true] %s49
      %55 = dma.hbm_to_vmem [thread:$0]  %s2, 512, %s50, [#allocation7], 128, 128, 8
    $region13: #{tpu_custom_call.1} parent=1 // pred_fallthru
      _
    // Predicated region
    $region14: #{tpu_custom_call.1} parent=1 // pred_check
      _
    $region15: #{tpu_custom_call.1} parent=1 // pred_check_branch
      %57 = sbr.rel (0) target = $region17
    $region16: #{tpu_custom_call.1} parent=1 // pred_region
      _
    $region17: #{tpu_custom_call.1} parent=1 // pred_fallthru
      _
    // Predicated region
    $region18: #{tpu_custom_call.1} parent=1 // pred_check
      _
    $region19: #{tpu_custom_call.1} parent=1 // pred_check_branch
      %59 = sbr.rel (0) target = $region21
    $region20: #{tpu_custom_call.1} parent=1 // pred_region
      %s61 = ssub.s32 512, 512
      %62 = vsyncadd [#allocation10], %s61
      %s63 = sshll.u32 [#allocation9], 4
      %s64 = int_to_ptr.vmem [resolvable:$true] %s63
      %69 = dma.hbm_to_vmem [thread:$0]  %s4, 512, %s64, [#allocation10], 128, 128, 8
    $region21: #{tpu_custom_call.1} parent=1 // pred_fallthru
      _
    // Predicated region
    $region22: #{tpu_custom_call.1} parent=1 // pred_check
      _
    $region23: #{tpu_custom_call.1} parent=1 // pred_check_branch
      %71 = sbr.rel (0) target = $region25
    $region24: #{tpu_custom_call.1} parent=1 // pred_region
      _
    $region25: #{tpu_custom_call.1} parent=1 // pred_fallthru
      _
    // Predicated region
    $region26: #{tpu_custom_call.1} parent=1 // pred_check
      _
    $region27: #{tpu_custom_call.1} parent=1 // pred_check_branch
      %73 = sbr.rel (0) target = $region29
    $region28: #{tpu_custom_call.1} parent=1 // pred_region
      _
    $region29: #{tpu_custom_call.1} parent=1 // pred_fallthru
      _
    // Predicated region
    $region30: #{tpu_custom_call.1} parent=1 // pred_check
      _
    $region31: #{tpu_custom_call.1} parent=1 // pred_check_branch
      %75 = sbr.rel (0) target = $region33
    $region32: #{tpu_custom_call.1} parent=1 // pred_region
      _
    $region33: #{tpu_custom_call.1} parent=1 // pred_fallthru
      _
    // Predicated region
    $region34: #{tpu_custom_call.1} parent=1 // pred_check
      _
    $region35: #{tpu_custom_call.1} parent=1 // pred_check_branch
      %77 = sbr.rel (0) target = $region37
    $region36: #{tpu_custom_call.1} parent=1 // pred_region
      %78 = dma.done [#allocation4], 256
    $region37: #{tpu_custom_call.1} parent=1 // pred_fallthru
      _
    // Predicated region
    $region38: #{tpu_custom_call.1} parent=1 // pred_check
      _
    $region39: #{tpu_custom_call.1} parent=1 // pred_check_branch
      %80 = sbr.rel (0) target = $region41
    $region40: #{tpu_custom_call.1} parent=1 // pred_region
      %81 = dma.done [#allocation7], 128
    $region41: #{tpu_custom_call.1} parent=1 // pred_fallthru
      _
    // Predicated region
    $region42: #{tpu_custom_call.1} parent=1 // pred_check
      _
    $region43: #{tpu_custom_call.1} parent=1 // pred_check_branch
      %83 = sbr.rel (0) target = $region45
    $region44: #{tpu_custom_call.1} parent=1 // pred_region
      %84 = dma.done [#allocation7], 512
    $region45: #{tpu_custom_call.1} parent=1 // pred_fallthru
      _
    // Predicated region
    $region46: #{tpu_custom_call.1} parent=1 // pred_check
      _
    $region47: #{tpu_custom_call.1} parent=1 // pred_check_branch
      %86 = sbr.rel (0) target = $region49
    $region48: #{tpu_custom_call.1} parent=1 // pred_region
      %87 = dma.done [#allocation10], 512
    $region49: #{tpu_custom_call.1} parent=1 // pred_fallthru
      _
    %p89 = scmp.eq.s32.totalorder 0, 0
    // Predicated region
    $region50: #{tpu_custom_call.1} parent=1 // pred_check
      %p90 = pneg %p89
    $region51: #{tpu_custom_call.1} parent=1 // pred_check_branch
      %92 = sbr.rel (%p90) target = $region53
    $region52: #{tpu_custom_call.1} parent=1 // pred_region
      %93 = vst [vmem:[#allocation2] sm:$0xf] 0.0
    $region53: #{tpu_custom_call.1} parent=1 // pred_fallthru
      _
    %v94 = vld [vmem:[#allocation3] sm:$0xf]
    %v95 = vld [vmem:[#allocation3 + $0x4] sm:$0xf]
    %v96 = vld [vmem:[#allocation3 + $0x8] sm:$0xf]
    %v97 = vld [vmem:[#allocation3 + $0xc] sm:$0xf]
    %v98 = vld [vmem:[#allocation6] sm:$0xf]
    %v99 = vld [vmem:[#allocation6 + $0x4] sm:$0xf]
    %v100 = vld [vmem:[#allocation8] sm:$0xff]
    %v101 = vld [vmem:[#allocation8 + $0x8] sm:$0xff]
    %v102 = vld [vmem:[#allocation8 + $0x10] sm:$0xff]
    %v103 = vld [vmem:[#allocation8 + $0x18] sm:$0xff]
    %v104 = vld [vmem:[%s3] sm:$0x3]
    %v106 = vlaneseq
    %v107 = vshrl.u32 %v106, 7
    %v108 = vsub.s32 0, %v107
    %v109 = vrot.slane %v104, %v108
    %v110 = vlaneseq
    %v111 = vshrl.u32 %v110, 7
    %v112 = vsub.s32 1, %v111
    %v113 = vrot.slane %v104, %v112
    %v120 = vunpack.c.l.b16 %v94
    %v121 = vunpack.c.l.b16 %v95
    %v122 = vunpack.c.l.b16 %v96
    %v123 = vunpack.c.l.b16 %v97
    %v124 = vpack.c.b16 %v121, %v120
    %v125 = vpack.c.b16 %v123, %v122
    %v130 = vunpack.c.l.b16 %v100
    %v131 = vunpack.c.h.b16 %v100
    %v132 = vunpack.c.l.b16 %v101
    %v133 = vunpack.c.h.b16 %v101
    %v134 = vunpack.c.l.b16 %v102
    %v135 = vunpack.c.h.b16 %v102
    %v136 = vunpack.c.l.b16 %v103
    %v137 = vunpack.c.h.b16 %v103
    %v138 = vpack.c.b16 %v132, %v130
    %v139 = vpack.c.b16 %v133, %v131
    %v140 = vpack.c.b16 %v136, %v134
    %v141 = vpack.c.b16 %v137, %v135
    %vm146 = vcmask 261120
    %v148 = vsel %vm146, %v124, 0
    %v151 = vsel %vm146, %v125, 0
    %153 = vmatprep.subr.bf16.mxu0 %v139
    %154 = vmatpush1.bf16.msra.mxu0 %v138
    %155 = vmatprep.subr.bf16.mxu0 %v141
    %156 = vmatpush1.bf16.msra.mxu0 %v140
    %157 = vmatprep.subr.bf16.mxu0 0
    %158 = vmatpush1.bf16.msra.mxu0 0
    %159 = vmatprep.subr.bf16.mxu0 0
    %160 = vmatpush1.bf16.msra.mxu0 0
    %161 = vmatprep.subr.bf16.mxu0 0
    %162 = vmatpush1.bf16.msra.mxu0 0
    %163 = vmatprep.subr.bf16.mxu0 0
    %164 = vmatpush1.bf16.msra.mxu0 0
    %165 = vmatprep.subr.bf16.mxu0 0
    %166 = vmatpush1.bf16.msra.mxu0 0
    %167 = vmatprep.subr.bf16.mxu0 0
    %168 = vmatpush1.bf16.msra.mxu0 0
    %169 = vmatprep.subr.bf16.mxu0 0
    %170 = vmatpush1.bf16.msra.mxu0 0
    %171 = vmatprep.subr.bf16.mxu0 0
    %172 = vmatpush1.bf16.msra.mxu0 0
    %173 = vmatprep.subr.bf16.mxu0 0
    %174 = vmatpush1.bf16.msra.mxu0 0
    %175 = vmatprep.subr.bf16.mxu0 0
    %176 = vmatpush1.bf16.msra.mxu0 0
    %177 = vmatprep.subr.bf16.mxu0 0
    %178 = vmatpush1.bf16.msra.mxu0 0
    %179 = vmatprep.subr.bf16.mxu0 0
    %180 = vmatpush1.bf16.msra.mxu0 0
    %181 = vmatprep.subr.bf16.mxu0 0
    %182 = vmatpush1.bf16.msra.mxu0 0
    %183 = vmatprep.subr.bf16.mxu0 0
    %184 = vmatpush1.bf16.msra.mxu0 0
    %185 = vmatprep.mubr.bf16.mxu0 0
    %186 = vmatmul.mubr.bf16.gmra.mrb[0].mxu0 %v148
    %v187 = vpop.f32.mrb[0].mxu0
    %v188 = vadd.f32 %v109, %v187
    %v189 = vpop.f32.mrb[0].mxu0
    %v190 = vadd.f32 %v113, %v189
    %v191 = vpop.f32.mrb[0].mxu0
    %v192 = vadd.f32 %v109, %v191
    %v193 = vpop.f32.mrb[0].mxu0
    %v194 = vadd.f32 %v113, %v193
    %195 = vmatprep.mubr.bf16.mxu0 0
    %196 = vmatmul.mubr.bf16.gmra.mrb[0].mxu0 %v151
    %v197 = vpop.f32.mrb[0].mxu0
    %v198 = vadd.f32 %v109, %v197
    %v199 = vpop.f32.mrb[0].mxu0
    %v200 = vadd.f32 %v113, %v199
    %v201 = vpop.f32.mrb[0].mxu0
    %v202 = vadd.f32 %v109, %v201
    %v203 = vpop.f32.mrb[0].mxu0
    %v204 = vadd.f32 %v113, %v203
    %205 = vdwg.mxu0
    %v206 = vmax.f32 %v188, 0.0
    %v207 = vmax.f32 %v190, 0.0
    %v208 = vmax.f32 %v192, 0.0
    %v209 = vmax.f32 %v194, 0.0
    %v210 = vmax.f32 %v198, 0.0
    %v211 = vmax.f32 %v200, 0.0
    %v212 = vmax.f32 %v202, 0.0
    %v213 = vmax.f32 %v204, 0.0
    %v214 = vld [vmem:[#allocation9] sm:$0xff]
    %v215 = vld [vmem:[#allocation9 + $0x8] sm:$0xff]
    %v216 = vld [vmem:[#allocation9 + $0x10] sm:$0xff]
    %v217 = vld [vmem:[#allocation9 + $0x18] sm:$0xff]
    %v218 = vld [vmem:[%s5] sm:$0x3]
    %v220 = vlaneseq
    %v221 = vshrl.u32 %v220, 7
    %v222 = vsub.s32 0, %v221
    %v223 = vrot.slane %v218, %v222
    %v224 = vlaneseq
    %v225 = vshrl.u32 %v224, 7
    %v226 = vsub.s32 1, %v225
    %v227 = vrot.slane %v218, %v226
    %v232 = vunpack.c.l.b16 %v98
    %v233 = vunpack.c.l.b16 %v99
    %v234 = vpack.c.b16 %v233, %v232
    %v239 = vunpack.c.l.b16 %v214
    %v240 = vunpack.c.h.b16 %v214
    %v241 = vunpack.c.l.b16 %v215
    %v242 = vunpack.c.h.b16 %v215
    %v243 = vunpack.c.l.b16 %v216
    %v244 = vunpack.c.h.b16 %v216
    %v245 = vunpack.c.l.b16 %v217
    %v246 = vunpack.c.h.b16 %v217
    %v247 = vpack.c.b16 %v241, %v239
    %v248 = vpack.c.b16 %v242, %v240
    %v249 = vpack.c.b16 %v245, %v243
    %v250 = vpack.c.b16 %v246, %v244
    %v256 = vsel %vm146, %v234, 0
    %258 = vmatprep.subr.bf16.mxu0 %v248
    %259 = vmatpush1.bf16.msra.mxu0 %v247
    %260 = vmatprep.subr.bf16.mxu0 %v250
    %261 = vmatpush1.bf16.msra.mxu0 %v249
    %262 = vmatprep.subr.bf16.mxu0 0
    %263 = vmatpush1.bf16.msra.mxu0 0
    %264 = vmatprep.subr.bf16.mxu0 0
    %265 = vmatpush1.bf16.msra.mxu0 0
    %266 = vmatprep.subr.bf16.mxu0 0
    %267 = vmatpush1.bf16.msra.mxu0 0
    %268 = vmatprep.subr.bf16.mxu0 0
    %269 = vmatpush1.bf16.msra.mxu0 0
    %270 = vmatprep.subr.bf16.mxu0 0
    %271 = vmatpush1.bf16.msra.mxu0 0
    %272 = vmatprep.subr.bf16.mxu0 0
    %273 = vmatpush1.bf16.msra.mxu0 0
    %274 = vmatprep.subr.bf16.mxu0 0
    %275 = vmatpush1.bf16.msra.mxu0 0
    %276 = vmatprep.subr.bf16.mxu0 0
    %277 = vmatpush1.bf16.msra.mxu0 0
    %278 = vmatprep.subr.bf16.mxu0 0
    %279 = vmatpush1.bf16.msra.mxu0 0
    %280 = vmatprep.subr.bf16.mxu0 0
    %281 = vmatpush1.bf16.msra.mxu0 0
    %282 = vmatprep.subr.bf16.mxu0 0
    %283 = vmatpush1.bf16.msra.mxu0 0
    %284 = vmatprep.subr.bf16.mxu0 0
    %285 = vmatpush1.bf16.msra.mxu0 0
    %286 = vmatprep.subr.bf16.mxu0 0
    %287 = vmatpush1.bf16.msra.mxu0 0
    %288 = vmatprep.subr.bf16.mxu0 0
    %289 = vmatpush1.bf16.msra.mxu0 0
    %290 = vmatprep.mubr.bf16.mxu0 0
    %291 = vmatmul.mubr.bf16.gmra.mrb[0].mxu0 %v256
    %v292 = vpop.f32.mrb[0].mxu0
    %v293 = vadd.f32 %v223, %v292
    %v294 = vpop.f32.mrb[0].mxu0
    %v295 = vadd.f32 %v227, %v294
    %v296 = vpop.f32.mrb[0].mxu0
    %v297 = vadd.f32 %v223, %v296
    %v298 = vpop.f32.mrb[0].mxu0
    %v299 = vadd.f32 %v227, %v298
    %300 = vdwg.mxu0
    %v301 = vmax.f32 %v293, 0.0
    %v302 = vmax.f32 %v295, 0.0
    %v303 = vmax.f32 %v297, 0.0
    %v304 = vmax.f32 %v299, 0.0
    %v305 = vpack.c.bf16 %v208, %v206
    %v306 = vpack.c.bf16 %v209, %v207
    %v307 = vpack.c.bf16 %v212, %v210
    %v308 = vpack.c.bf16 %v213, %v211
    %v313 = vcombine.low %v305, %v306
    %v314 = vcombine.high %v305, %v306
    %v316 = vunpack.c.l.s4 1966171168
    %v317 = vunpack.c.0.s8 %v316
    %v318 = vlaneseq
    %v319 = vshrl.u32 %v318, 7
    %v320 = vsub.s32 %v317, %v319
    %v321 = vrot.slane %v313, %v320
    %v323 = vunpack.c.l.s4 1966171168
    %v324 = vunpack.c.0.s8 %v323
    %v325 = vlaneseq
    %v326 = vshrl.u32 %v325, 7
    %v327 = vsub.s32 %v324, %v326
    %v328 = vrot.slane %v314, %v327
    %v329 = vcombine.high %v321, %v321
    %v330 = vcombine.high %v328, %v328
    %v332 = vunpack.c.l.s4 1966171168
    %v333 = vunpack.c.0.s8 %v332
    %v334 = vlaneseq
    %v335 = vshrl.u32 %v334, 7
    %v336 = vsub.s32 %v333, %v335
    %v337 = vrot.slane %v321, %v336
    %v339 = vunpack.c.l.s4 1966171168
    %v340 = vunpack.c.0.s8 %v339
    %v341 = vlaneseq
    %v342 = vshrl.u32 %v341, 7
    %v343 = vsub.s32 %v340, %v342
    %v344 = vrot.slane %v328, %v343
    %v346 = vunpack.c.l.s4 1966171168
    %v347 = vunpack.c.0.s8 %v346
    %v348 = vlaneseq
    %v349 = vshrl.u32 %v348, 7
    %v350 = vsub.s32 %v347, %v349
    %v351 = vrot.slane %v329, %v350
    %v353 = vunpack.c.l.s4 1966171168
    %v354 = vunpack.c.0.s8 %v353
    %v355 = vlaneseq
    %v356 = vshrl.u32 %v355, 7
    %v357 = vsub.s32 %v354, %v356
    %v358 = vrot.slane %v330, %v357
    %v359 = vcombine.high %v337, %v337
    %v360 = vcombine.high %v344, %v344
    %v361 = vcombine.high %v351, %v351
    %v362 = vcombine.high %v358, %v358
    %v363 = vcombine.low %v307, %v308
    %v364 = vcombine.high %v307, %v308
    %v366 = vunpack.c.l.s4 1966171168
    %v367 = vunpack.c.0.s8 %v366
    %v368 = vlaneseq
    %v369 = vshrl.u32 %v368, 7
    %v370 = vsub.s32 %v367, %v369
    %v371 = vrot.slane %v363, %v370
    %v373 = vunpack.c.l.s4 1966171168
    %v374 = vunpack.c.0.s8 %v373
    %v375 = vlaneseq
    %v376 = vshrl.u32 %v375, 7
    %v377 = vsub.s32 %v374, %v376
    %v378 = vrot.slane %v364, %v377
    %v379 = vcombine.high %v371, %v371
    %v380 = vcombine.high %v378, %v378
    %v382 = vunpack.c.l.s4 1966171168
    %v383 = vunpack.c.0.s8 %v382
    %v384 = vlaneseq
    %v385 = vshrl.u32 %v384, 7
    %v386 = vsub.s32 %v383, %v385
    %v387 = vrot.slane %v371, %v386
    %v389 = vunpack.c.l.s4 1966171168
    %v390 = vunpack.c.0.s8 %v389
    %v391 = vlaneseq
    %v392 = vshrl.u32 %v391, 7
    %v393 = vsub.s32 %v390, %v392
    %v394 = vrot.slane %v378, %v393
    %v396 = vunpack.c.l.s4 1966171168
    %v397 = vunpack.c.0.s8 %v396
    %v398 = vlaneseq
    %v399 = vshrl.u32 %v398, 7
    %v400 = vsub.s32 %v397, %v399
    %v401 = vrot.slane %v379, %v400
    %v403 = vunpack.c.l.s4 1966171168
    %v404 = vunpack.c.0.s8 %v403
    %v405 = vlaneseq
    %v406 = vshrl.u32 %v405, 7
    %v407 = vsub.s32 %v404, %v406
    %v408 = vrot.slane %v380, %v407
    %v409 = vcombine.high %v387, %v387
    %v410 = vcombine.high %v394, %v394
    %v411 = vcombine.high %v401, %v401
    %v412 = vcombine.high %v408, %v408
    %v413 = vunpack.i.l.s16 %v337
    %v414 = vunpack.i.h.s16 %v337
    %v415 = vunpack.i.l.s16 %v351
    %v416 = vunpack.i.h.s16 %v351
    %v417 = vunpack.i.l.s16 %v359
    %v418 = vunpack.i.h.s16 %v359
    %v419 = vunpack.i.l.s16 %v361
    %v420 = vunpack.i.h.s16 %v361
    %v421 = vunpack.i.l.s16 %v344
    %v422 = vunpack.i.h.s16 %v344
    %v423 = vunpack.i.l.s16 %v358
    %v424 = vunpack.i.h.s16 %v358
    %v425 = vunpack.i.l.s16 %v360
    %v426 = vunpack.i.h.s16 %v360
    %v427 = vunpack.i.l.s16 %v362
    %v428 = vunpack.i.h.s16 %v362
    %v429 = vunpack.i.l.s16 %v387
    %v430 = vunpack.i.h.s16 %v387
    %v431 = vunpack.i.l.s16 %v401
    %v432 = vunpack.i.h.s16 %v401
    %v433 = vunpack.i.l.s16 %v409
    %v434 = vunpack.i.h.s16 %v409
    %v435 = vunpack.i.l.s16 %v411
    %v436 = vunpack.i.h.s16 %v411
    %v437 = vunpack.i.l.s16 %v394
    %v438 = vunpack.i.h.s16 %v394
    %v439 = vunpack.i.l.s16 %v408
    %v440 = vunpack.i.h.s16 %v408
    %v441 = vunpack.i.l.s16 %v410
    %v442 = vunpack.i.h.s16 %v410
    %v443 = vunpack.i.l.s16 %v412
    %v444 = vunpack.i.h.s16 %v412
    %v445 = vpack.c.bf16 %v303, %v301
    %v446 = vpack.c.bf16 %v304, %v302
    %v449 = vunpack.c.l.b16 %v445
    %v450 = vunpack.c.l.b16 %v446
    %v451 = vunpack.c.h.b16 %v445
    %v452 = vunpack.c.h.b16 %v446
    %v453 = vpack.i.b16 %v413, %v413
    %v454 = vpack.i.b16 %v414, %v414
    %v455 = vpack.i.b16 %v415, %v415
    %v456 = vpack.i.b16 %v416, %v416
    %v457 = vpack.i.b16 %v417, %v417
    %v458 = vpack.i.b16 %v418, %v418
    %v459 = vpack.i.b16 %v419, %v419
    %v460 = vpack.i.b16 %v420, %v420
    %v461 = vpack.i.b16 %v421, %v421
    %v462 = vpack.i.b16 %v422, %v422
    %v463 = vpack.i.b16 %v423, %v423
    %v464 = vpack.i.b16 %v424, %v424
    %v465 = vpack.i.b16 %v425, %v425
    %v466 = vpack.i.b16 %v426, %v426
    %v467 = vpack.i.b16 %v427, %v427
    %v468 = vpack.i.b16 %v428, %v428
    %v469 = vpack.i.b16 %v429, %v429
    %v470 = vpack.i.b16 %v430, %v430
    %v471 = vpack.i.b16 %v431, %v431
    %v472 = vpack.i.b16 %v432, %v432
    %v473 = vpack.i.b16 %v433, %v433
    %v474 = vpack.i.b16 %v434, %v434
    %v475 = vpack.i.b16 %v435, %v435
    %v476 = vpack.i.b16 %v436, %v436
    %v477 = vpack.i.b16 %v437, %v437
    %v478 = vpack.i.b16 %v438, %v438
    %v479 = vpack.i.b16 %v439, %v439
    %v480 = vpack.i.b16 %v440, %v440
    %v481 = vpack.i.b16 %v441, %v441
    %v482 = vpack.i.b16 %v442, %v442
    %v483 = vpack.i.b16 %v443, %v443
    %v484 = vpack.i.b16 %v444, %v444
    %v485 = vlaneseq
    %v486 = vshrl.u32 %v485, 7
    %v487 = vsub.s32 0, %v486
    %v488 = vrot.slane %v453, %v487
    %v489 = vlaneseq
    %v490 = vshrl.u32 %v489, 7
    %v491 = vsub.s32 1, %v490
    %v492 = vrot.slane %v453, %v491
    %v493 = vlaneseq
    %v494 = vshrl.u32 %v493, 7
    %v495 = vsub.s32 0, %v494
    %v496 = vrot.slane %v454, %v495
    %v497 = vlaneseq
    %v498 = vshrl.u32 %v497, 7
    %v499 = vsub.s32 1, %v498
    %v500 = vrot.slane %v454, %v499
    %v501 = vlaneseq
    %v502 = vshrl.u32 %v501, 7
    %v503 = vsub.s32 0, %v502
    %v504 = vrot.slane %v455, %v503
    %v505 = vlaneseq
    %v506 = vshrl.u32 %v505, 7
    %v507 = vsub.s32 1, %v506
    %v508 = vrot.slane %v455, %v507
    %v509 = vlaneseq
    %v510 = vshrl.u32 %v509, 7
    %v511 = vsub.s32 0, %v510
    %v512 = vrot.slane %v456, %v511
    %v513 = vlaneseq
    %v514 = vshrl.u32 %v513, 7
    %v515 = vsub.s32 1, %v514
    %v516 = vrot.slane %v456, %v515
    %v517 = vlaneseq
    %v518 = vshrl.u32 %v517, 7
    %v519 = vsub.s32 0, %v518
    %v520 = vrot.slane %v457, %v519
    %v521 = vlaneseq
    %v522 = vshrl.u32 %v521, 7
    %v523 = vsub.s32 1, %v522
    %v524 = vrot.slane %v457, %v523
    %v525 = vlaneseq
    %v526 = vshrl.u32 %v525, 7
    %v527 = vsub.s32 0, %v526
    %v528 = vrot.slane %v458, %v527
    %v529 = vlaneseq
    %v530 = vshrl.u32 %v529, 7
    %v531 = vsub.s32 1, %v530
    %v532 = vrot.slane %v458, %v531
    %v533 = vlaneseq
    %v534 = vshrl.u32 %v533, 7
    %v535 = vsub.s32 0, %v534
    %v536 = vrot.slane %v459, %v535
    %v537 = vlaneseq
    %v538 = vshrl.u32 %v537, 7
    %v539 = vsub.s32 1, %v538
    %v540 = vrot.slane %v459, %v539
    %v541 = vlaneseq
    %v542 = vshrl.u32 %v541, 7
    %v543 = vsub.s32 0, %v542
    %v544 = vrot.slane %v460, %v543
    %v545 = vlaneseq
    %v546 = vshrl.u32 %v545, 7
    %v547 = vsub.s32 1, %v546
    %v548 = vrot.slane %v460, %v547
    %v549 = vlaneseq
    %v550 = vshrl.u32 %v549, 7
    %v551 = vsub.s32 0, %v550
    %v552 = vrot.slane %v461, %v551
    %v553 = vlaneseq
    %v554 = vshrl.u32 %v553, 7
    %v555 = vsub.s32 1, %v554
    %v556 = vrot.slane %v461, %v555
    %v557 = vlaneseq
    %v558 = vshrl.u32 %v557, 7
    %v559 = vsub.s32 0, %v558
    %v560 = vrot.slane %v462, %v559
    %v561 = vlaneseq
    %v562 = vshrl.u32 %v561, 7
    %v563 = vsub.s32 1, %v562
    %v564 = vrot.slane %v462, %v563
    %v565 = vlaneseq
    %v566 = vshrl.u32 %v565, 7
    %v567 = vsub.s32 0, %v566
    %v568 = vrot.slane %v463, %v567
    %v569 = vlaneseq
    %v570 = vshrl.u32 %v569, 7
    %v571 = vsub.s32 1, %v570
    %v572 = vrot.slane %v463, %v571
    %v573 = vlaneseq
    %v574 = vshrl.u32 %v573, 7
    %v575 = vsub.s32 0, %v574
    %v576 = vrot.slane %v464, %v575
    %v577 = vlaneseq
    %v578 = vshrl.u32 %v577, 7
    %v579 = vsub.s32 1, %v578
    %v580 = vrot.slane %v464, %v579
    %v581 = vlaneseq
    %v582 = vshrl.u32 %v581, 7
    %v583 = vsub.s32 0, %v582
    %v584 = vrot.slane %v465, %v583
    %v585 = vlaneseq
    %v586 = vshrl.u32 %v585, 7
    %v587 = vsub.s32 1, %v586
    %v588 = vrot.slane %v465, %v587
    %v589 = vlaneseq
    %v590 = vshrl.u32 %v589, 7
    %v591 = vsub.s32 0, %v590
    %v592 = vrot.slane %v466, %v591
    %v593 = vlaneseq
    %v594 = vshrl.u32 %v593, 7
    %v595 = vsub.s32 1, %v594
    %v596 = vrot.slane %v466, %v595
    %v597 = vlaneseq
    %v598 = vshrl.u32 %v597, 7
    %v599 = vsub.s32 0, %v598
    %v600 = vrot.slane %v467, %v599
    %v601 = vlaneseq
    %v602 = vshrl.u32 %v601, 7
    %v603 = vsub.s32 1, %v602
    %v604 = vrot.slane %v467, %v603
    %v605 = vlaneseq
    %v606 = vshrl.u32 %v605, 7
    %v607 = vsub.s32 0, %v606
    %v608 = vrot.slane %v468, %v607
    %v609 = vlaneseq
    %v610 = vshrl.u32 %v609, 7
    %v611 = vsub.s32 1, %v610
    %v612 = vrot.slane %v468, %v611
    %v613 = vlaneseq
    %v614 = vshrl.u32 %v613, 7
    %v615 = vsub.s32 0, %v614
    %v616 = vrot.slane %v469, %v615
    %v617 = vlaneseq
    %v618 = vshrl.u32 %v617, 7
    %v619 = vsub.s32 1, %v618
    %v620 = vrot.slane %v469, %v619
    %v621 = vlaneseq
    %v622 = vshrl.u32 %v621, 7
    %v623 = vsub.s32 0, %v622
    %v624 = vrot.slane %v470, %v623
    %v625 = vlaneseq
    %v626 = vshrl.u32 %v625, 7
    %v627 = vsub.s32 1, %v626
    %v628 = vrot.slane %v470, %v627
    %v629 = vlaneseq
    %v630 = vshrl.u32 %v629, 7
    %v631 = vsub.s32 0, %v630
    %v632 = vrot.slane %v471, %v631
    %v633 = vlaneseq
    %v634 = vshrl.u32 %v633, 7
    %v635 = vsub.s32 1, %v634
    %v636 = vrot.slane %v471, %v635
    %v637 = vlaneseq
    %v638 = vshrl.u32 %v637, 7
    %v639 = vsub.s32 0, %v638
    %v640 = vrot.slane %v472, %v639
    %v641 = vlaneseq
    %v642 = vshrl.u32 %v641, 7
    %v643 = vsub.s32 1, %v642
    %v644 = vrot.slane %v472, %v643
    %v645 = vlaneseq
    %v646 = vshrl.u32 %v645, 7
    %v647 = vsub.s32 0, %v646
    %v648 = vrot.slane %v473, %v647
    %v649 = vlaneseq
    %v650 = vshrl.u32 %v649, 7
    %v651 = vsub.s32 1, %v650
    %v652 = vrot.slane %v473, %v651
    %v653 = vlaneseq
    %v654 = vshrl.u32 %v653, 7
    %v655 = vsub.s32 0, %v654
    %v656 = vrot.slane %v474, %v655
    %v657 = vlaneseq
    %v658 = vshrl.u32 %v657, 7
    %v659 = vsub.s32 1, %v658
    %v660 = vrot.slane %v474, %v659
    %v661 = vlaneseq
    %v662 = vshrl.u32 %v661, 7
    %v663 = vsub.s32 0, %v662
    %v664 = vrot.slane %v475, %v663
    %v665 = vlaneseq
    %v666 = vshrl.u32 %v665, 7
    %v667 = vsub.s32 1, %v666
    %v668 = vrot.slane %v475, %v667
    %v669 = vlaneseq
    %v670 = vshrl.u32 %v669, 7
    %v671 = vsub.s32 0, %v670
    %v672 = vrot.slane %v476, %v671
    %v673 = vlaneseq
    %v674 = vshrl.u32 %v673, 7
    %v675 = vsub.s32 1, %v674
    %v676 = vrot.slane %v476, %v675
    %v677 = vlaneseq
    %v678 = vshrl.u32 %v677, 7
    %v679 = vsub.s32 0, %v678
    %v680 = vrot.slane %v477, %v679
    %v681 = vlaneseq
    %v682 = vshrl.u32 %v681, 7
    %v683 = vsub.s32 1, %v682
    %v684 = vrot.slane %v477, %v683
    %v685 = vlaneseq
    %v686 = vshrl.u32 %v685, 7
    %v687 = vsub.s32 0, %v686
    %v688 = vrot.slane %v478, %v687
    %v689 = vlaneseq
    %v690 = vshrl.u32 %v689, 7
    %v691 = vsub.s32 1, %v690
    %v692 = vrot.slane %v478, %v691
    %v693 = vlaneseq
    %v694 = vshrl.u32 %v693, 7
    %v695 = vsub.s32 0, %v694
    %v696 = vrot.slane %v479, %v695
    %v697 = vlaneseq
    %v698 = vshrl.u32 %v697, 7
    %v699 = vsub.s32 1, %v698
    %v700 = vrot.slane %v479, %v699
    %v701 = vlaneseq
    %v702 = vshrl.u32 %v701, 7
    %v703 = vsub.s32 0, %v702
    %v704 = vrot.slane %v480, %v703
    %v705 = vlaneseq
    %v706 = vshrl.u32 %v705, 7
    %v707 = vsub.s32 1, %v706
    %v708 = vrot.slane %v480, %v707
    %v709 = vlaneseq
    %v710 = vshrl.u32 %v709, 7
    %v711 = vsub.s32 0, %v710
    %v712 = vrot.slane %v481, %v711
    %v713 = vlaneseq
    %v714 = vshrl.u32 %v713, 7
    %v715 = vsub.s32 1, %v714
    %v716 = vrot.slane %v481, %v715
    %v717 = vlaneseq
    %v718 = vshrl.u32 %v717, 7
    %v719 = vsub.s32 0, %v718
    %v720 = vrot.slane %v482, %v719
    %v721 = vlaneseq
    %v722 = vshrl.u32 %v721, 7
    %v723 = vsub.s32 1, %v722
    %v724 = vrot.slane %v482, %v723
    %v725 = vlaneseq
    %v726 = vshrl.u32 %v725, 7
    %v727 = vsub.s32 0, %v726
    %v728 = vrot.slane %v483, %v727
    %v729 = vlaneseq
    %v730 = vshrl.u32 %v729, 7
    %v731 = vsub.s32 1, %v730
    %v732 = vrot.slane %v483, %v731
    %v733 = vlaneseq
    %v734 = vshrl.u32 %v733, 7
    %v735 = vsub.s32 0, %v734
    %v736 = vrot.slane %v484, %v735
    %v737 = vlaneseq
    %v738 = vshrl.u32 %v737, 7
    %v739 = vsub.s32 1, %v738
    %v740 = vrot.slane %v484, %v739
    %v742 = vpack.i.b16 %v488, %v488
    %v744 = vlaneseq
    %v745 = vshrl.u32 %v744, 7
    %v746 = vsub.s32 0, %v745
    %v747 = vrot.slane %v742, %v746
    %v749 = vpack.i.b16 %v492, %v492
    %v751 = vlaneseq
    %v752 = vshrl.u32 %v751, 7
    %v753 = vsub.s32 0, %v752
    %v754 = vrot.slane %v749, %v753
    %v756 = vpack.i.b16 %v496, %v496
    %v758 = vlaneseq
    %v759 = vshrl.u32 %v758, 7
    %v760 = vsub.s32 0, %v759
    %v761 = vrot.slane %v756, %v760
    %v763 = vpack.i.b16 %v500, %v500
    %v765 = vlaneseq
    %v766 = vshrl.u32 %v765, 7
    %v767 = vsub.s32 0, %v766
    %v768 = vrot.slane %v763, %v767
    %v770 = vpack.i.b16 %v504, %v504
    %v772 = vlaneseq
    %v773 = vshrl.u32 %v772, 7
    %v774 = vsub.s32 0, %v773
    %v775 = vrot.slane %v770, %v774
    %v777 = vpack.i.b16 %v508, %v508
    %v779 = vlaneseq
    %v780 = vshrl.u32 %v779, 7
    %v781 = vsub.s32 0, %v780
    %v782 = vrot.slane %v777, %v781
    %v784 = vpack.i.b16 %v512, %v512
    %v786 = vlaneseq
    %v787 = vshrl.u32 %v786, 7
    %v788 = vsub.s32 0, %v787
    %v789 = vrot.slane %v784, %v788
    %v791 = vpack.i.b16 %v516, %v516
    %v793 = vlaneseq
    %v794 = vshrl.u32 %v793, 7
    %v795 = vsub.s32 0, %v794
    %v796 = vrot.slane %v791, %v795
    %v798 = vpack.i.b16 %v520, %v520
    %v800 = vlaneseq
    %v801 = vshrl.u32 %v800, 7
    %v802 = vsub.s32 0, %v801
    %v803 = vrot.slane %v798, %v802
    %v805 = vpack.i.b16 %v524, %v524
    %v807 = vlaneseq
    %v808 = vshrl.u32 %v807, 7
    %v809 = vsub.s32 0, %v808
    %v810 = vrot.slane %v805, %v809
    %v812 = vpack.i.b16 %v528, %v528
    %v814 = vlaneseq
    %v815 = vshrl.u32 %v814, 7
    %v816 = vsub.s32 0, %v815
    %v817 = vrot.slane %v812, %v816
    %v819 = vpack.i.b16 %v532, %v532
    %v821 = vlaneseq
    %v822 = vshrl.u32 %v821, 7
    %v823 = vsub.s32 0, %v822
    %v824 = vrot.slane %v819, %v823
    %v826 = vpack.i.b16 %v536, %v536
    %v828 = vlaneseq
    %v829 = vshrl.u32 %v828, 7
    %v830 = vsub.s32 0, %v829
    %v831 = vrot.slane %v826, %v830
    %v833 = vpack.i.b16 %v540, %v540
    %v835 = vlaneseq
    %v836 = vshrl.u32 %v835, 7
    %v837 = vsub.s32 0, %v836
    %v838 = vrot.slane %v833, %v837
    %v840 = vpack.i.b16 %v544, %v544
    %v842 = vlaneseq
    %v843 = vshrl.u32 %v842, 7
    %v844 = vsub.s32 0, %v843
    %v845 = vrot.slane %v840, %v844
    %v847 = vpack.i.b16 %v548, %v548
    %v849 = vlaneseq
    %v850 = vshrl.u32 %v849, 7
    %v851 = vsub.s32 0, %v850
    %v852 = vrot.slane %v847, %v851
    %v854 = vpack.i.b16 %v552, %v552
    %v856 = vlaneseq
    %v857 = vshrl.u32 %v856, 7
    %v858 = vsub.s32 0, %v857
    %v859 = vrot.slane %v854, %v858
    %v861 = vpack.i.b16 %v556, %v556
    %v863 = vlaneseq
    %v864 = vshrl.u32 %v863, 7
    %v865 = vsub.s32 0, %v864
    %v866 = vrot.slane %v861, %v865
    %v868 = vpack.i.b16 %v560, %v560
    %v870 = vlaneseq
    %v871 = vshrl.u32 %v870, 7
    %v872 = vsub.s32 0, %v871
    %v873 = vrot.slane %v868, %v872
    %v875 = vpack.i.b16 %v564, %v564
    %v877 = vlaneseq
    %v878 = vshrl.u32 %v877, 7
    %v879 = vsub.s32 0, %v878
    %v880 = vrot.slane %v875, %v879
    %v882 = vpack.i.b16 %v568, %v568
    %v884 = vlaneseq
    %v885 = vshrl.u32 %v884, 7
    %v886 = vsub.s32 0, %v885
    %v887 = vrot.slane %v882, %v886
    %v889 = vpack.i.b16 %v572, %v572
    %v891 = vlaneseq
    %v892 = vshrl.u32 %v891, 7
    %v893 = vsub.s32 0, %v892
    %v894 = vrot.slane %v889, %v893
    %v896 = vpack.i.b16 %v576, %v576
    %v898 = vlaneseq
    %v899 = vshrl.u32 %v898, 7
    %v900 = vsub.s32 0, %v899
    %v901 = vrot.slane %v896, %v900
    %v903 = vpack.i.b16 %v580, %v580
    %v905 = vlaneseq
    %v906 = vshrl.u32 %v905, 7
    %v907 = vsub.s32 0, %v906
    %v908 = vrot.slane %v903, %v907
    %v910 = vpack.i.b16 %v584, %v584
    %v912 = vlaneseq
    %v913 = vshrl.u32 %v912, 7
    %v914 = vsub.s32 0, %v913
    %v915 = vrot.slane %v910, %v914
    %v917 = vpack.i.b16 %v588, %v588
    %v919 = vlaneseq
    %v920 = vshrl.u32 %v919, 7
    %v921 = vsub.s32 0, %v920
    %v922 = vrot.slane %v917, %v921
    %v924 = vpack.i.b16 %v592, %v592
    %v926 = vlaneseq
    %v927 = vshrl.u32 %v926, 7
    %v928 = vsub.s32 0, %v927
    %v929 = vrot.slane %v924, %v928
    %v931 = vpack.i.b16 %v596, %v596
    %v933 = vlaneseq
    %v934 = vshrl.u32 %v933, 7
    %v935 = vsub.s32 0, %v934
    %v936 = vrot.slane %v931, %v935
    %v938 = vpack.i.b16 %v600, %v600
    %v940 = vlaneseq
    %v941 = vshrl.u32 %v940, 7
    %v942 = vsub.s32 0, %v941
    %v943 = vrot.slane %v938, %v942
    %v945 = vpack.i.b16 %v604, %v604
    %v947 = vlaneseq
    %v948 = vshrl.u32 %v947, 7
    %v949 = vsub.s32 0, %v948
    %v950 = vrot.slane %v945, %v949
    %v952 = vpack.i.b16 %v608, %v608
    %v954 = vlaneseq
    %v955 = vshrl.u32 %v954, 7
    %v956 = vsub.s32 0, %v955
    %v957 = vrot.slane %v952, %v956
    %v959 = vpack.i.b16 %v612, %v612
    %v961 = vlaneseq
    %v962 = vshrl.u32 %v961, 7
    %v963 = vsub.s32 0, %v962
    %v964 = vrot.slane %v959, %v963
    %v966 = vpack.i.b16 %v616, %v616
    %v968 = vlaneseq
    %v969 = vshrl.u32 %v968, 7
    %v970 = vsub.s32 0, %v969
    %v971 = vrot.slane %v966, %v970
    %v973 = vpack.i.b16 %v620, %v620
    %v975 = vlaneseq
    %v976 = vshrl.u32 %v975, 7
    %v977 = vsub.s32 0, %v976
    %v978 = vrot.slane %v973, %v977
    %v980 = vpack.i.b16 %v624, %v624
    %v982 = vlaneseq
    %v983 = vshrl.u32 %v982, 7
    %v984 = vsub.s32 0, %v983
    %v985 = vrot.slane %v980, %v984
    %v987 = vpack.i.b16 %v628, %v628
    %v989 = vlaneseq
    %v990 = vshrl.u32 %v989, 7
    %v991 = vsub.s32 0, %v990
    %v992 = vrot.slane %v987, %v991
    %v994 = vpack.i.b16 %v632, %v632
    %v996 = vlaneseq
    %v997 = vshrl.u32 %v996, 7
    %v998 = vsub.s32 0, %v997
    %v999 = vrot.slane %v994, %v998
    %v1001 = vpack.i.b16 %v636, %v636
    %v1003 = vlaneseq
    %v1004 = vshrl.u32 %v1003, 7
    %v1005 = vsub.s32 0, %v1004
    %v1006 = vrot.slane %v1001, %v1005
    %v1008 = vpack.i.b16 %v640, %v640
    %v1010 = vlaneseq
    %v1011 = vshrl.u32 %v1010, 7
    %v1012 = vsub.s32 0, %v1011
    %v1013 = vrot.slane %v1008, %v1012
    %v1015 = vpack.i.b16 %v644, %v644
    %v1017 = vlaneseq
    %v1018 = vshrl.u32 %v1017, 7
    %v1019 = vsub.s32 0, %v1018
    %v1020 = vrot.slane %v1015, %v1019
    %v1022 = vpack.i.b16 %v648, %v648
    %v1024 = vlaneseq
    %v1025 = vshrl.u32 %v1024, 7
    %v1026 = vsub.s32 0, %v1025
    %v1027 = vrot.slane %v1022, %v1026
    %v1029 = vpack.i.b16 %v652, %v652
    %v1031 = vlaneseq
    %v1032 = vshrl.u32 %v1031, 7
    %v1033 = vsub.s32 0, %v1032
    %v1034 = vrot.slane %v1029, %v1033
    %v1036 = vpack.i.b16 %v656, %v656
    %v1038 = vlaneseq
    %v1039 = vshrl.u32 %v1038, 7
    %v1040 = vsub.s32 0, %v1039
    %v1041 = vrot.slane %v1036, %v1040
    %v1043 = vpack.i.b16 %v660, %v660
    %v1045 = vlaneseq
    %v1046 = vshrl.u32 %v1045, 7
    %v1047 = vsub.s32 0, %v1046
    %v1048 = vrot.slane %v1043, %v1047
    %v1050 = vpack.i.b16 %v664, %v664
    %v1052 = vlaneseq
    %v1053 = vshrl.u32 %v1052, 7
    %v1054 = vsub.s32 0, %v1053
    %v1055 = vrot.slane %v1050, %v1054
    %v1057 = vpack.i.b16 %v668, %v668
    %v1059 = vlaneseq
    %v1060 = vshrl.u32 %v1059, 7
    %v1061 = vsub.s32 0, %v1060
    %v1062 = vrot.slane %v1057, %v1061
    %v1064 = vpack.i.b16 %v672, %v672
    %v1066 = vlaneseq
    %v1067 = vshrl.u32 %v1066, 7
    %v1068 = vsub.s32 0, %v1067
    %v1069 = vrot.slane %v1064, %v1068
    %v1071 = vpack.i.b16 %v676, %v676
    %v1073 = vlaneseq
    %v1074 = vshrl.u32 %v1073, 7
    %v1075 = vsub.s32 0, %v1074
    %v1076 = vrot.slane %v1071, %v1075
    %v1078 = vpack.i.b16 %v680, %v680
    %v1080 = vlaneseq
    %v1081 = vshrl.u32 %v1080, 7
    %v1082 = vsub.s32 0, %v1081
    %v1083 = vrot.slane %v1078, %v1082
    %v1085 = vpack.i.b16 %v684, %v684
    %v1087 = vlaneseq
    %v1088 = vshrl.u32 %v1087, 7
    %v1089 = vsub.s32 0, %v1088
    %v1090 = vrot.slane %v1085, %v1089
    %v1092 = vpack.i.b16 %v688, %v688
    %v1094 = vlaneseq
    %v1095 = vshrl.u32 %v1094, 7
    %v1096 = vsub.s32 0, %v1095
    %v1097 = vrot.slane %v1092, %v1096
    %v1099 = vpack.i.b16 %v692, %v692
    %v1101 = vlaneseq
    %v1102 = vshrl.u32 %v1101, 7
    %v1103 = vsub.s32 0, %v1102
    %v1104 = vrot.slane %v1099, %v1103
    %v1106 = vpack.i.b16 %v696, %v696
    %v1108 = vlaneseq
    %v1109 = vshrl.u32 %v1108, 7
    %v1110 = vsub.s32 0, %v1109
    %v1111 = vrot.slane %v1106, %v1110
    %v1113 = vpack.i.b16 %v700, %v700
    %v1115 = vlaneseq
    %v1116 = vshrl.u32 %v1115, 7
    %v1117 = vsub.s32 0, %v1116
    %v1118 = vrot.slane %v1113, %v1117
    %v1120 = vpack.i.b16 %v704, %v704
    %v1122 = vlaneseq
    %v1123 = vshrl.u32 %v1122, 7
    %v1124 = vsub.s32 0, %v1123
    %v1125 = vrot.slane %v1120, %v1124
    %v1127 = vpack.i.b16 %v708, %v708
    %v1129 = vlaneseq
    %v1130 = vshrl.u32 %v1129, 7
    %v1131 = vsub.s32 0, %v1130
    %v1132 = vrot.slane %v1127, %v1131
    %v1134 = vpack.i.b16 %v712, %v712
    %v1136 = vlaneseq
    %v1137 = vshrl.u32 %v1136, 7
    %v1138 = vsub.s32 0, %v1137
    %v1139 = vrot.slane %v1134, %v1138
    %v1141 = vpack.i.b16 %v716, %v716
    %v1143 = vlaneseq
    %v1144 = vshrl.u32 %v1143, 7
    %v1145 = vsub.s32 0, %v1144
    %v1146 = vrot.slane %v1141, %v1145
    %v1148 = vpack.i.b16 %v720, %v720
    %v1150 = vlaneseq
    %v1151 = vshrl.u32 %v1150, 7
    %v1152 = vsub.s32 0, %v1151
    %v1153 = vrot.slane %v1148, %v1152
    %v1155 = vpack.i.b16 %v724, %v724
    %v1157 = vlaneseq
    %v1158 = vshrl.u32 %v1157, 7
    %v1159 = vsub.s32 0, %v1158
    %v1160 = vrot.slane %v1155, %v1159
    %v1162 = vpack.i.b16 %v728, %v728
    %v1164 = vlaneseq
    %v1165 = vshrl.u32 %v1164, 7
    %v1166 = vsub.s32 0, %v1165
    %v1167 = vrot.slane %v1162, %v1166
    %v1169 = vpack.i.b16 %v732, %v732
    %v1171 = vlaneseq
    %v1172 = vshrl.u32 %v1171, 7
    %v1173 = vsub.s32 0, %v1172
    %v1174 = vrot.slane %v1169, %v1173
    %v1176 = vpack.i.b16 %v736, %v736
    %v1178 = vlaneseq
    %v1179 = vshrl.u32 %v1178, 7
    %v1180 = vsub.s32 0, %v1179
    %v1181 = vrot.slane %v1176, %v1180
    %v1183 = vpack.i.b16 %v740, %v740
    %v1185 = vlaneseq
    %v1186 = vshrl.u32 %v1185, 7
    %v1187 = vsub.s32 0, %v1186
    %v1188 = vrot.slane %v1183, %v1187
    %v1189 = vpack.c.b16 %v449, %v449
    %v1190 = vpack.c.b16 %v450, %v450
    %v1191 = vpack.c.b16 %v451, %v451
    %v1192 = vpack.c.b16 %v452, %v452
    %v1197 = vmul.bf16 %v747, %v1189
    %v1198 = vmul.bf16 %v754, %v1190
    %v1199 = vmul.bf16 %v761, %v1189
    %v1200 = vmul.bf16 %v768, %v1190
    %v1201 = vmul.bf16 %v775, %v1189
    %v1202 = vmul.bf16 %v782, %v1190
    %v1203 = vmul.bf16 %v789, %v1189
    %v1204 = vmul.bf16 %v796, %v1190
    %v1205 = vmul.bf16 %v803, %v1189
    %v1206 = vmul.bf16 %v810, %v1190
    %v1207 = vmul.bf16 %v817, %v1189
    %v1208 = vmul.bf16 %v824, %v1190
    %v1209 = vmul.bf16 %v831, %v1189
    %v1210 = vmul.bf16 %v838, %v1190
    %v1211 = vmul.bf16 %v845, %v1189
    %v1212 = vmul.bf16 %v852, %v1190
    %v1213 = vmul.bf16 %v859, %v1189
    %v1214 = vmul.bf16 %v866, %v1190
    %v1215 = vmul.bf16 %v873, %v1189
    %v1216 = vmul.bf16 %v880, %v1190
    %v1217 = vmul.bf16 %v887, %v1189
    %v1218 = vmul.bf16 %v894, %v1190
    %v1219 = vmul.bf16 %v901, %v1189
    %v1220 = vmul.bf16 %v908, %v1190
    %v1221 = vmul.bf16 %v915, %v1189
    %v1222 = vmul.bf16 %v922, %v1190
    %v1223 = vmul.bf16 %v929, %v1189
    %v1224 = vmul.bf16 %v936, %v1190
    %v1225 = vmul.bf16 %v943, %v1189
    %v1226 = vmul.bf16 %v950, %v1190
    %v1227 = vmul.bf16 %v957, %v1189
    %v1228 = vmul.bf16 %v964, %v1190
    %v1229 = vmul.bf16 %v971, %v1191
    %v1230 = vmul.bf16 %v978, %v1192
    %v1231 = vmul.bf16 %v985, %v1191
    %v1232 = vmul.bf16 %v992, %v1192
    %v1233 = vmul.bf16 %v999, %v1191
    %v1234 = vmul.bf16 %v1006, %v1192
    %v1235 = vmul.bf16 %v1013, %v1191
    %v1236 = vmul.bf16 %v1020, %v1192
    %v1237 = vmul.bf16 %v1027, %v1191
    %v1238 = vmul.bf16 %v1034, %v1192
    %v1239 = vmul.bf16 %v1041, %v1191
    %v1240 = vmul.bf16 %v1048, %v1192
    %v1241 = vmul.bf16 %v1055, %v1191
    %v1242 = vmul.bf16 %v1062, %v1192
    %v1243 = vmul.bf16 %v1069, %v1191
    %v1244 = vmul.bf16 %v1076, %v1192
    %v1245 = vmul.bf16 %v1083, %v1191
    %v1246 = vmul.bf16 %v1090, %v1192
    %v1247 = vmul.bf16 %v1097, %v1191
    %v1248 = vmul.bf16 %v1104, %v1192
    %v1249 = vmul.bf16 %v1111, %v1191
    %v1250 = vmul.bf16 %v1118, %v1192
    %v1251 = vmul.bf16 %v1125, %v1191
    %v1252 = vmul.bf16 %v1132, %v1192
    %v1253 = vmul.bf16 %v1139, %v1191
    %v1254 = vmul.bf16 %v1146, %v1192
    %v1255 = vmul.bf16 %v1153, %v1191
    %v1256 = vmul.bf16 %v1160, %v1192
    %v1257 = vmul.bf16 %v1167, %v1191
    %v1258 = vmul.bf16 %v1174, %v1192
    %v1259 = vmul.bf16 %v1181, %v1191
    %v1260 = vmul.bf16 %v1188, %v1192
    %v1325 = vunpack.c.l.b16 %v1197
    %v1326 = vunpack.c.l.b16 %v1198
    %v1327 = vunpack.c.l.b16 %v1199
    %v1328 = vunpack.c.l.b16 %v1200
    %v1329 = vunpack.c.l.b16 %v1201
    %v1330 = vunpack.c.l.b16 %v1202
    %v1331 = vunpack.c.l.b16 %v1203
    %v1332 = vunpack.c.l.b16 %v1204
    %v1333 = vunpack.c.l.b16 %v1205
    %v1334 = vunpack.c.l.b16 %v1206
    %v1335 = vunpack.c.l.b16 %v1207
    %v1336 = vunpack.c.l.b16 %v1208
    %v1337 = vunpack.c.l.b16 %v1209
    %v1338 = vunpack.c.l.b16 %v1210
    %v1339 = vunpack.c.l.b16 %v1211
    %v1340 = vunpack.c.l.b16 %v1212
    %v1341 = vunpack.c.l.b16 %v1213
    %v1342 = vunpack.c.l.b16 %v1214
    %v1343 = vunpack.c.l.b16 %v1215
    %v1344 = vunpack.c.l.b16 %v1216
    %v1345 = vunpack.c.l.b16 %v1217
    %v1346 = vunpack.c.l.b16 %v1218
    %v1347 = vunpack.c.l.b16 %v1219
    %v1348 = vunpack.c.l.b16 %v1220
    %v1349 = vunpack.c.l.b16 %v1221
    %v1350 = vunpack.c.l.b16 %v1222
    %v1351 = vunpack.c.l.b16 %v1223
    %v1352 = vunpack.c.l.b16 %v1224
    %v1353 = vunpack.c.l.b16 %v1225
    %v1354 = vunpack.c.l.b16 %v1226
    %v1355 = vunpack.c.l.b16 %v1227
    %v1356 = vunpack.c.l.b16 %v1228
    %v1357 = vunpack.c.l.b16 %v1229
    %v1358 = vunpack.c.l.b16 %v1230
    %v1359 = vunpack.c.l.b16 %v1231
    %v1360 = vunpack.c.l.b16 %v1232
    %v1361 = vunpack.c.l.b16 %v1233
    %v1362 = vunpack.c.l.b16 %v1234
    %v1363 = vunpack.c.l.b16 %v1235
    %v1364 = vunpack.c.l.b16 %v1236
    %v1365 = vunpack.c.l.b16 %v1237
    %v1366 = vunpack.c.l.b16 %v1238
    %v1367 = vunpack.c.l.b16 %v1239
    %v1368 = vunpack.c.l.b16 %v1240
    %v1369 = vunpack.c.l.b16 %v1241
    %v1370 = vunpack.c.l.b16 %v1242
    %v1371 = vunpack.c.l.b16 %v1243
    %v1372 = vunpack.c.l.b16 %v1244
    %v1373 = vunpack.c.l.b16 %v1245
    %v1374 = vunpack.c.l.b16 %v1246
    %v1375 = vunpack.c.l.b16 %v1247
    %v1376 = vunpack.c.l.b16 %v1248
    %v1377 = vunpack.c.l.b16 %v1249
    %v1378 = vunpack.c.l.b16 %v1250
    %v1379 = vunpack.c.l.b16 %v1251
    %v1380 = vunpack.c.l.b16 %v1252
    %v1381 = vunpack.c.l.b16 %v1253
    %v1382 = vunpack.c.l.b16 %v1254
    %v1383 = vunpack.c.l.b16 %v1255
    %v1384 = vunpack.c.l.b16 %v1256
    %v1385 = vunpack.c.l.b16 %v1257
    %v1386 = vunpack.c.l.b16 %v1258
    %v1387 = vunpack.c.l.b16 %v1259
    %v1388 = vunpack.c.l.b16 %v1260
    %v1389 = vld [vmem:[#allocation2] sm:$0xf]
    %v1390 = vld [vmem:[%s6] sm:$0x3]
    %v1393 = vunpack.c.l.s4 1966171168
    %v1394 = vunpack.c.0.s8 %v1393
    %v1395 = vlaneseq
    %v1396 = vshrl.u32 %v1395, 7
    %v1397 = vsub.s32 %v1394, %v1396
    %v1398 = vrot.slane %v1390, %v1397
    %v1399 = vcombine.high %v1398, %v1398
    %v1401 = vunpack.c.l.s4 1966171168
    %v1402 = vunpack.c.0.s8 %v1401
    %v1403 = vlaneseq
    %v1404 = vshrl.u32 %v1403, 7
    %v1405 = vsub.s32 %v1402, %v1404
    %v1406 = vrot.slane %v1398, %v1405
    %v1408 = vunpack.c.l.s4 1966171168
    %v1409 = vunpack.c.0.s8 %v1408
    %v1410 = vlaneseq
    %v1411 = vshrl.u32 %v1410, 7
    %v1412 = vsub.s32 %v1409, %v1411
    %v1413 = vrot.slane %v1399, %v1412
    %v1416 = vpack.c.b16 %v1327, %v1325
    %v1417 = vpack.c.b16 %v1328, %v1326
    %v1418 = vpack.c.b16 %v1331, %v1329
    %v1419 = vpack.c.b16 %v1332, %v1330
    %v1420 = vpack.c.b16 %v1335, %v1333
    %v1421 = vpack.c.b16 %v1336, %v1334
    %v1422 = vpack.c.b16 %v1339, %v1337
    %v1423 = vpack.c.b16 %v1340, %v1338
    %v1424 = vpack.c.b16 %v1343, %v1341
    %v1425 = vpack.c.b16 %v1344, %v1342
    %v1426 = vpack.c.b16 %v1347, %v1345
    %v1427 = vpack.c.b16 %v1348, %v1346
    %v1428 = vpack.c.b16 %v1351, %v1349
    %v1429 = vpack.c.b16 %v1352, %v1350
    %v1430 = vpack.c.b16 %v1355, %v1353
    %v1431 = vpack.c.b16 %v1356, %v1354
    %v1432 = vpack.c.b16 %v1359, %v1357
    %v1433 = vpack.c.b16 %v1360, %v1358
    %v1434 = vpack.c.b16 %v1363, %v1361
    %v1435 = vpack.c.b16 %v1364, %v1362
    %v1436 = vpack.c.b16 %v1367, %v1365
    %v1437 = vpack.c.b16 %v1368, %v1366
    %v1438 = vpack.c.b16 %v1371, %v1369
    %v1439 = vpack.c.b16 %v1372, %v1370
    %v1440 = vpack.c.b16 %v1375, %v1373
    %v1441 = vpack.c.b16 %v1376, %v1374
    %v1442 = vpack.c.b16 %v1379, %v1377
    %v1443 = vpack.c.b16 %v1380, %v1378
    %v1444 = vpack.c.b16 %v1383, %v1381
    %v1445 = vpack.c.b16 %v1384, %v1382
    %v1446 = vpack.c.b16 %v1387, %v1385
    %v1447 = vpack.c.b16 %v1388, %v1386
    %1480 = vmatprep.subr.bf16.mxu0 %v1417
    %1481 = vmatpush1.bf16.xpose.msra.mxu0 %v1416
    %1482 = vmatprep.subr.bf16.mxu0 %v1419
    %1483 = vmatpush1.bf16.xpose.msra.mxu0 %v1418
    %1484 = vmatprep.subr.bf16.mxu0 %v1421
    %1485 = vmatpush1.bf16.xpose.msra.mxu0 %v1420
    %1486 = vmatprep.subr.bf16.mxu0 %v1423
    %1487 = vmatpush1.bf16.xpose.msra.mxu0 %v1422
    %1488 = vmatprep.subr.bf16.mxu0 %v1425
    %1489 = vmatpush1.bf16.xpose.msra.mxu0 %v1424
    %1490 = vmatprep.subr.bf16.mxu0 %v1427
    %1491 = vmatpush1.bf16.xpose.msra.mxu0 %v1426
    %1492 = vmatprep.subr.bf16.mxu0 %v1429
    %1493 = vmatpush1.bf16.xpose.msra.mxu0 %v1428
    %1494 = vmatprep.subr.bf16.mxu0 %v1431
    %1495 = vmatpush1.bf16.xpose.msra.mxu0 %v1430
    %1496 = vmatprep.subr.bf16.mxu0 %v1433
    %1497 = vmatpush1.bf16.xpose.msra.mxu0 %v1432
    %1498 = vmatprep.subr.bf16.mxu0 %v1435
    %1499 = vmatpush1.bf16.xpose.msra.mxu0 %v1434
    %1500 = vmatprep.subr.bf16.mxu0 %v1437
    %1501 = vmatpush1.bf16.xpose.msra.mxu0 %v1436
    %1502 = vmatprep.subr.bf16.mxu0 %v1439
    %1503 = vmatpush1.bf16.xpose.msra.mxu0 %v1438
    %1504 = vmatprep.subr.bf16.mxu0 %v1441
    %1505 = vmatpush1.bf16.xpose.msra.mxu0 %v1440
    %1506 = vmatprep.subr.bf16.mxu0 %v1443
    %1507 = vmatpush1.bf16.xpose.msra.mxu0 %v1442
    %1508 = vmatprep.subr.bf16.mxu0 %v1445
    %1509 = vmatpush1.bf16.xpose.msra.mxu0 %v1444
    %1510 = vmatprep.subr.bf16.mxu0 %v1447
    %1511 = vmatpush1.bf16.xpose.msra.mxu0 %v1446
    %1512 = vmatprep.mubr.bf16.mxu0 %v1413
    %1513 = vmatmul.mubr.bf16.gmra.mrb[0].mxu0 %v1406
    %v1514 = vpop.f32.mrb[0].mxu0
    %v1515 = vadd.f32 0.0, %v1514
    %v1516 = vpop.f32.mrb[0].mxu0
    %v1517 = vadd.f32 0.0, %v1516
    %v1518 = vpop.f32.mrb[0].mxu0
    %v1519 = vpop.f32.mrb[0].mxu0
    %1520 = vdwg.mxu0
    %v1523 = vcombine.low %v1515, %v1517
    %v1525 = vunpack.c.l.s4 1983009808
    %v1526 = vunpack.c.0.s8 %v1525
    %v1527 = vlaneseq
    %v1528 = vshrl.u32 %v1527, 7
    %v1529 = vsub.s32 %v1526, %v1528
    %v1530 = vrot.slane %v1523, %v1529
    %v1532 = vadd.f32 %v1389, %v1530
    %1533 = vst [vmem:[#allocation2] sm:$0xf] %v1532
    // Predicated region
    $region54: #{tpu_custom_call.1} parent=1 // pred_check
      %p1534 = pneg %p89
    $region55: #{tpu_custom_call.1} parent=1 // pred_check_branch
      %1536 = sbr.rel (%p1534) target = $region57
    $region56: #{tpu_custom_call.1} parent=1 // pred_region
      %v1537 = vunpack.c.l.bf16 %v94
      %v1538 = vunpack.c.l.bf16 %v95
      %v1539 = vunpack.c.l.bf16 %v96
      %v1540 = vunpack.c.l.bf16 %v97
      %v1541 = vand.u32 2147483647, %v1537
      %v1542 = vand.u32 2147483647, %v1538
      %v1543 = vand.u32 2147483647, %v1539
      %v1544 = vand.u32 2147483647, %v1540
      %v1545 = vsel %vm146, %v1541, 0.0
      %1546 = vadd.xlane.f32.xlu0 %v1545
      %v1547 = vpop.xlane.xlu0 %1546
      %v1548 = vsel %vm146, %v1542, 0.0
      %1549 = vadd.xlane.f32.xlu0 %v1548
      %v1550 = vpop.xlane.xlu0 %1549
      %v1551 = vsel %vm146, %v1543, 0.0
      %1552 = vadd.xlane.f32.xlu0 %v1551
      %v1553 = vpop.xlane.xlu0 %1552
      %v1554 = vsel %vm146, %v1544, 0.0
      %1555 = vadd.xlane.f32.xlu0 %v1554
      %v1556 = vpop.xlane.xlu0 %1555
      %v1561 = vlaneseq
      %v1562 = vshrl.u32 %v1561, 7
      %v1563 = vsub.s32 0, %v1562
      %v1564 = vrot.slane %v1547, %v1563
      %v1565 = vlaneseq
      %v1566 = vshrl.u32 %v1565, 7
      %v1567 = vsub.s32 1, %v1566
      %v1568 = vrot.slane %v1547, %v1567
      %v1569 = vlaneseq
      %v1570 = vshrl.u32 %v1569, 7
      %v1571 = vsub.s32 2, %v1570
      %v1572 = vrot.slane %v1547, %v1571
      %v1573 = vlaneseq
      %v1574 = vshrl.u32 %v1573, 7
      %v1575 = vsub.s32 3, %v1574
      %v1576 = vrot.slane %v1547, %v1575
      %v1577 = vlaneseq
      %v1578 = vshrl.u32 %v1577, 7
      %v1579 = vsub.s32 4, %v1578
      %v1580 = vrot.slane %v1547, %v1579
      %v1581 = vlaneseq
      %v1582 = vshrl.u32 %v1581, 7
      %v1583 = vsub.s32 5, %v1582
      %v1584 = vrot.slane %v1547, %v1583
      %v1585 = vlaneseq
      %v1586 = vshrl.u32 %v1585, 7
      %v1587 = vsub.s32 6, %v1586
      %v1588 = vrot.slane %v1547, %v1587
      %v1589 = vlaneseq
      %v1590 = vshrl.u32 %v1589, 7
      %v1591 = vsub.s32 7, %v1590
      %v1592 = vrot.slane %v1547, %v1591
      %v1593 = vlaneseq
      %v1594 = vshrl.u32 %v1593, 7
      %v1595 = vsub.s32 0, %v1594
      %v1596 = vrot.slane %v1550, %v1595
      %v1597 = vlaneseq
      %v1598 = vshrl.u32 %v1597, 7
      %v1599 = vsub.s32 1, %v1598
      %v1600 = vrot.slane %v1550, %v1599
      %v1601 = vlaneseq
      %v1602 = vshrl.u32 %v1601, 7
      %v1603 = vsub.s32 2, %v1602
      %v1604 = vrot.slane %v1550, %v1603
      %v1605 = vlaneseq
      %v1606 = vshrl.u32 %v1605, 7
      %v1607 = vsub.s32 3, %v1606
      %v1608 = vrot.slane %v1550, %v1607
      %v1609 = vlaneseq
      %v1610 = vshrl.u32 %v1609, 7
      %v1611 = vsub.s32 4, %v1610
      %v1612 = vrot.slane %v1550, %v1611
      %v1613 = vlaneseq
      %v1614 = vshrl.u32 %v1613, 7
      %v1615 = vsub.s32 5, %v1614
      %v1616 = vrot.slane %v1550, %v1615
      %v1617 = vlaneseq
      %v1618 = vshrl.u32 %v1617, 7
      %v1619 = vsub.s32 6, %v1618
      %v1620 = vrot.slane %v1550, %v1619
      %v1621 = vlaneseq
      %v1622 = vshrl.u32 %v1621, 7
      %v1623 = vsub.s32 7, %v1622
      %v1624 = vrot.slane %v1550, %v1623
      %v1625 = vlaneseq
      %v1626 = vshrl.u32 %v1625, 7
      %v1627 = vsub.s32 0, %v1626
      %v1628 = vrot.slane %v1553, %v1627
      %v1629 = vlaneseq
      %v1630 = vshrl.u32 %v1629, 7
      %v1631 = vsub.s32 1, %v1630
      %v1632 = vrot.slane %v1553, %v1631
      %v1633 = vlaneseq
      %v1634 = vshrl.u32 %v1633, 7
      %v1635 = vsub.s32 2, %v1634
      %v1636 = vrot.slane %v1553, %v1635
      %v1637 = vlaneseq
      %v1638 = vshrl.u32 %v1637, 7
      %v1639 = vsub.s32 3, %v1638
      %v1640 = vrot.slane %v1553, %v1639
      %v1641 = vlaneseq
      %v1642 = vshrl.u32 %v1641, 7
      %v1643 = vsub.s32 4, %v1642
      %v1644 = vrot.slane %v1553, %v1643
      %v1645 = vlaneseq
      %v1646 = vshrl.u32 %v1645, 7
      %v1647 = vsub.s32 5, %v1646
      %v1648 = vrot.slane %v1553, %v1647
      %v1649 = vlaneseq
      %v1650 = vshrl.u32 %v1649, 7
      %v1651 = vsub.s32 6, %v1650
      %v1652 = vrot.slane %v1553, %v1651
      %v1653 = vlaneseq
      %v1654 = vshrl.u32 %v1653, 7
      %v1655 = vsub.s32 7, %v1654
      %v1656 = vrot.slane %v1553, %v1655
      %v1657 = vlaneseq
      %v1658 = vshrl.u32 %v1657, 7
      %v1659 = vsub.s32 0, %v1658
      %v1660 = vrot.slane %v1556, %v1659
      %v1661 = vlaneseq
      %v1662 = vshrl.u32 %v1661, 7
      %v1663 = vsub.s32 1, %v1662
      %v1664 = vrot.slane %v1556, %v1663
      %v1665 = vlaneseq
      %v1666 = vshrl.u32 %v1665, 7
      %v1667 = vsub.s32 2, %v1666
      %v1668 = vrot.slane %v1556, %v1667
      %v1669 = vlaneseq
      %v1670 = vshrl.u32 %v1669, 7
      %v1671 = vsub.s32 3, %v1670
      %v1672 = vrot.slane %v1556, %v1671
      %v1673 = vlaneseq
      %v1674 = vshrl.u32 %v1673, 7
      %v1675 = vsub.s32 4, %v1674
      %v1676 = vrot.slane %v1556, %v1675
      %v1677 = vlaneseq
      %v1678 = vshrl.u32 %v1677, 7
      %v1679 = vsub.s32 5, %v1678
      %v1680 = vrot.slane %v1556, %v1679
      %v1681 = vlaneseq
      %v1682 = vshrl.u32 %v1681, 7
      %v1683 = vsub.s32 6, %v1682
      %v1684 = vrot.slane %v1556, %v1683
      %v1685 = vlaneseq
      %v1686 = vshrl.u32 %v1685, 7
      %v1687 = vsub.s32 7, %v1686
      %v1688 = vrot.slane %v1556, %v1687
      %vm1689 = vcmask 64512
      %v1691 = vsel %vm1689, 1.0, 0
      %v1693 = vsel %vm1689, %v1564, 0
      %v1695 = vsel %vm1689, %v1568, 0
      %v1697 = vsel %vm1689, %v1572, 0
      %v1699 = vsel %vm1689, %v1576, 0
      %v1701 = vsel %vm1689, %v1580, 0
      %v1703 = vsel %vm1689, %v1584, 0
      %v1705 = vsel %vm1689, %v1588, 0
      %v1707 = vsel %vm1689, %v1592, 0
      %v1709 = vsel %vm1689, %v1596, 0
      %v1711 = vsel %vm1689, %v1600, 0
      %v1713 = vsel %vm1689, %v1604, 0
      %v1715 = vsel %vm1689, %v1608, 0
      %v1717 = vsel %vm1689, %v1612, 0
      %v1719 = vsel %vm1689, %v1616, 0
      %v1721 = vsel %vm1689, %v1620, 0
      %v1723 = vsel %vm1689, %v1624, 0
      %v1725 = vsel %vm1689, %v1628, 0
      %v1727 = vsel %vm1689, %v1632, 0
      %v1729 = vsel %vm1689, %v1636, 0
      %v1731 = vsel %vm1689, %v1640, 0
      %v1733 = vsel %vm1689, %v1644, 0
      %v1735 = vsel %vm1689, %v1648, 0
      %v1737 = vsel %vm1689, %v1652, 0
      %v1739 = vsel %vm1689, %v1656, 0
      %v1741 = vsel %vm1689, %v1660, 0
      %v1743 = vsel %vm1689, %v1664, 0
      %v1745 = vsel %vm1689, %v1668, 0
      %v1747 = vsel %vm1689, %v1672, 0
      %v1749 = vsel %vm1689, %v1676, 0
      %v1751 = vsel %vm1689, %v1680, 0
      %v1753 = vsel %vm1689, %v1684, 0
      %v1755 = vsel %vm1689, %v1688, 0
      %1757 = vmatprep.subr.mxu0 0.0
      %1758 = vmatpush1.xpose.msra.mxu0 %v1693
      %1759 = vmatprep.subr.mxu0 0.0
      %1760 = vmatpush1.xpose.msra.mxu0 %v1695
      %1761 = vmatprep.subr.mxu0 0.0
      %1762 = vmatpush1.xpose.msra.mxu0 %v1697
      %1763 = vmatprep.subr.mxu0 0.0
      %1764 = vmatpush1.xpose.msra.mxu0 %v1699
      %1765 = vmatprep.subr.mxu0 0.0
      %1766 = vmatpush1.xpose.msra.mxu0 %v1701
      %1767 = vmatprep.subr.mxu0 0.0
      %1768 = vmatpush1.xpose.msra.mxu0 %v1703
      %1769 = vmatprep.subr.mxu0 0.0
      %1770 = vmatpush1.xpose.msra.mxu0 %v1705
      %1771 = vmatprep.subr.mxu0 0.0
      %1772 = vmatpush1.xpose.msra.mxu0 %v1707
      %1773 = vmatprep.subr.mxu0 0.0
      %1774 = vmatpush1.xpose.msra.mxu0 %v1709
      %1775 = vmatprep.subr.mxu0 0.0
      %1776 = vmatpush1.xpose.msra.mxu0 %v1711
      %1777 = vmatprep.subr.mxu0 0.0
      %1778 = vmatpush1.xpose.msra.mxu0 %v1713
      %1779 = vmatprep.subr.mxu0 0.0
      %1780 = vmatpush1.xpose.msra.mxu0 %v1715
      %1781 = vmatprep.subr.mxu0 0.0
      %1782 = vmatpush1.xpose.msra.mxu0 %v1717
      %1783 = vmatprep.subr.mxu0 0.0
      %1784 = vmatpush1.xpose.msra.mxu0 %v1719
      %1785 = vmatprep.subr.mxu0 0.0
      %1786 = vmatpush1.xpose.msra.mxu0 %v1721
      %1787 = vmatprep.subr.mxu0 0.0
      %1788 = vmatpush1.xpose.msra.mxu0 %v1723
      %1789 = vmatprep.subr.mxu0 0.0
      %1790 = vmatpush1.xpose.msra.mxu0 %v1725
      %1791 = vmatprep.subr.mxu0 0.0
      %1792 = vmatpush1.xpose.msra.mxu0 %v1727
      %1793 = vmatprep.subr.mxu0 0.0
      %1794 = vmatpush1.xpose.msra.mxu0 %v1729
      %1795 = vmatprep.subr.mxu0 0.0
      %1796 = vmatpush1.xpose.msra.mxu0 %v1731
      %1797 = vmatprep.subr.mxu0 0.0
      %1798 = vmatpush1.xpose.msra.mxu0 %v1733
      %1799 = vmatprep.subr.mxu0 0.0
      %1800 = vmatpush1.xpose.msra.mxu0 %v1735
      %1801 = vmatprep.subr.mxu0 0.0
      %1802 = vmatpush1.xpose.msra.mxu0 %v1737
      %1803 = vmatprep.subr.mxu0 0.0
      %1804 = vmatpush1.xpose.msra.mxu0 %v1739
      %1805 = vmatprep.subr.mxu0 0.0
      %1806 = vmatpush1.xpose.msra.mxu0 %v1741
      %1807 = vmatprep.subr.mxu0 0.0
      %1808 = vmatpush1.xpose.msra.mxu0 %v1743
      %1809 = vmatprep.subr.mxu0 0.0
      %1810 = vmatpush1.xpose.msra.mxu0 %v1745
      %1811 = vmatprep.subr.mxu0 0.0
      %1812 = vmatpush1.xpose.msra.mxu0 %v1747
      %1813 = vmatprep.subr.mxu0 0.0
      %1814 = vmatpush1.xpose.msra.mxu0 %v1749
      %1815 = vmatprep.subr.mxu0 0.0
      %1816 = vmatpush1.xpose.msra.mxu0 %v1751
      %1817 = vmatprep.subr.mxu0 0.0
      %1818 = vmatpush1.xpose.msra.mxu0 %v1753
      %1819 = vmatprep.subr.mxu0 0.0
      %1820 = vmatpush1.xpose.msra.mxu0 %v1755
      %1821 = vmatprep.mubr.f32.mxu0 0.0
      %1822 = vmatmul.mubr.f32.gmra.mrb[0].mxu0 %v1691
      %v1823 = vpop.f32.mrb[0].mxu0
      %v1824 = vadd.f32 0.0, %v1823
      %v1825 = vpop.f32.mrb[0].mxu0
      %v1826 = vadd.f32 0.0, %v1825
      %1827 = vdwg.mxu0
      %vm1828 = vcmp.eq.f32.partialorder %v1824, 0.0
      %vm1829 = vcmp.eq.f32.partialorder %v1826, 0.0
      %v1830 = vld [vmem:[#allocation2] sm:$0xf]
      %v1831 = vld [vmem:[%s7] sm:$0x3]
      %1833 = vset.pattern.permute.xlu0 0
      %1834 = vperm.xlu0 %1833, %v1831
      %v1835 = vpop.permute.xlu0 %1834
      %v1837 = vunpack.c.l.s4 269488144
      %v1838 = vunpack.c.0.s8 %v1837
      %v1839 = vlaneseq
      %v1840 = vshrl.u32 %v1839, 7
      %v1841 = vsub.s32 %v1838, %v1840
      %v1842 = vrot.slane %v1835, %v1841
      %v1844 = vadd.f32 %v1830, %v1842
      %v1845 = vsel %vm1828, 1, 0
      %v1846 = vsel %vm1829, 1, 0
      %v1847 = vlaneseq
      %v1848 = vshrl.u32 %v1847, 7
      %v1849 = vsub.s32 0, %v1848
      %v1850 = vrot.slane %v1845, %v1849
      %v1851 = vlaneseq
      %v1852 = vshrl.u32 %v1851, 7
      %v1853 = vsub.s32 0, %v1852
      %v1854 = vrot.slane %v1846, %v1853
      %vm1855 = vcmp.eq.s32.totalorder %v1850, 1
      %vm1856 = vcmp.eq.s32.totalorder %v1854, 1
      %v1859 = vunpack.c.l.s4 1983009808
      %v1860 = vunpack.c.0.s8 %v1859
      %v1861 = vlaneseq
      %v1862 = vshrl.u32 %v1861, 7
      %v1863 = vsub.s32 %v1860, %v1862
      %v1864 = vrot.slane %v1844, %v1863
      %v1865 = vcombine.high %v1864, %v1864
      %v1868 = vsel %vm1855, -inf, %v1864
      %v1869 = vsel %vm1856, -inf, %v1865
      %v1872 = vcombine.low %v1868, %v1869
      %v1875 = vunpack.c.l.s4 1935823168
      %v1876 = vunpack.c.0.s8 %v1875
      %v1877 = vlaneseq
      %v1878 = vshrl.u32 %v1877, 7
      %v1879 = vsub.s32 %v1876, %v1878
      %v1880 = vrot.slane %v1872, %v1879
      %1881 = vst [vmem:[#allocation12] sm:$0xf] %v1880
      %vm1882 = vcmask 1043456
      %v1883 = vsel %vm1882, %v1880, -inf
      %1884 = vmax.xlane.f32.xlu0 %v1883
      %v1885 = vpop.xlane.xlu0 %1884
      %v1886 = vsub.f32 %v1880, %v1885
      %v1887 = vmul.f32 %v1886, 1.442695
      %v1888 = vpow.pop %v1887
      %v1889 = vsel %vm1882, %v1888, 0.0
      %1890 = vadd.xlane.f32.xlu0 %v1889
      %v1891 = vpop.xlane.xlu0 %1890
      %v1892 = vrcp.pop %v1891
      %v1893 = vmul.f32 %v1888, %v1892
      %1894 = vst [vmem:[#allocation11] sm:$0xf] %v1893
    $region57: #{tpu_custom_call.1} parent=1 // pred_fallthru
      _
    // Predicated region
    $region58: #{tpu_custom_call.1} parent=1 // pred_check
      _
    $region59: #{tpu_custom_call.1} parent=1 // pred_check_branch
      %1896 = sbr.rel (0) target = $region61
    $region60: #{tpu_custom_call.1} parent=1 // pred_region
      %s1898 = ssub.s32 64, 64
      %1899 = vsyncadd [#allocation5], %s1898
      %s1901 = sshll.u32 [#allocation11], 4
      %s1902 = int_to_ptr.vmem [resolvable:$true] %s1901
      %1904 = dma.vmem_to_hbm [thread:$0]  %s1902, 64, %s8, [#allocation5]
    $region61: #{tpu_custom_call.1} parent=1 // pred_fallthru
      _
    // Predicated region
    $region62: #{tpu_custom_call.1} parent=1 // pred_check
      _
    $region63: #{tpu_custom_call.1} parent=1 // pred_check_branch
      %1906 = sbr.rel (0) target = $region65
    $region64: #{tpu_custom_call.1} parent=1 // pred_region
      %s1908 = ssub.s32 64, 64
      %1909 = vsyncadd [#allocation13], %s1908
      %s1911 = sshll.u32 [#allocation12], 4
      %s1912 = int_to_ptr.vmem [resolvable:$true] %s1911
      %1914 = dma.vmem_to_hbm [thread:$0]  %s1912, 64, %s9, [#allocation13]
    $region65: #{tpu_custom_call.1} parent=1 // pred_fallthru
      _
    // Predicated region
    $region66: #{tpu_custom_call.1} parent=1 // pred_check
      _
    $region67: #{tpu_custom_call.1} parent=1 // pred_check_branch
      %1916 = sbr.rel (0) target = $region69
    $region68: #{tpu_custom_call.1} parent=1 // pred_region
      %1917 = dma.done [#allocation5], 64
    $region69: #{tpu_custom_call.1} parent=1 // pred_fallthru
      _
    // Predicated region
    $region70: #{tpu_custom_call.1} parent=1 // pred_check
      _
    $region71: #{tpu_custom_call.1} parent=1 // pred_check_branch
      %1919 = sbr.rel (0) target = $region73
    $region72: #{tpu_custom_call.1} parent=1 // pred_region
      %1920 = dma.done [#allocation13], 64
    $region73: #{tpu_custom_call.1} parent=1 // pred_fallthru
      _
    %1921 = vsyncpa [#allocation4], 1
    %1922 = vsyncpa [#allocation7], 1
    %1923 = vsyncpa [#allocation10], 1
    %1924 = vsyncpa [#allocation5], 1
    %1925 = vsyncpa [#allocation13], 1

</llo_original>
